<compile_context>
chip_gen: v7x
topology: tpu7x:2x2x1
jax: 0.10.0
libtpu: 0.0.40
codegen_flags: <defaults>
</compile_context>

<pallas_src>
import functools

import jax
import jax.numpy as jnp
from jax import lax
from jax.experimental import pallas as pl
from jax.experimental.pallas import tpu as pltpu

EPS = 1e-5
LANE = 128


def _round_up(x, m):
    return (x + m - 1) // m * m


def _vmem_limit_bytes():
    # Generation-aware scoped-VMEM budget: ~3/4 of physical VMEM, capped at
    # 100 MiB (v5e/v6e: 128 MiB phys -> ~96 MiB; v7x: 64 MiB phys -> 48 MiB).
    try:
        cap = int(pltpu.get_tpu_info().vmem_capacity_bytes)
    except Exception:
        cap = 64 * 1024 * 1024
    return int(min(cap * 3 // 4, 100 * 1024 * 1024))


def _pick_tile_h(H, W, c_max, vmem_budget):
    # Largest H-row tile that divides H and fits comfortably in the scoped
    # VMEM budget (double-buffered in/out blocks + packed-lhs temporaries),
    # preferring an even number of row tiles (balances v7x's 2 TensorCores on
    # the "parallel" grid axes) and M = tile_h*W in [256, 1024] (MXU-friendly,
    # amortizes the ~0.35us per-grid-step overhead).
    def fits(th):
        in_blk = th * W * c_max * 2            # bf16 input block
        out_blk = th * W * c_max * 2           # bf16 output block
        lhs = (th + 2) * W * 3 * c_max * 2     # packed-lhs temporary
        acc = th * W * c_max * 4               # f32 accumulator
        halo = 2 * W * c_max * 2
        return 2 * (in_blk + out_blk) + lhs + acc + halo < vmem_budget // 2

    cands = [d for d in range(1, H + 1) if H % d == 0 and fits(d)] or [1]

    def score(th):
        m = th * W
        return ((H // th) % 2 == 0, 256 <= m <= 1024, m)

    return max(cands, key=score)


# --------------------------------------------------------------------------
# Stage kernel: [optional folded BN-affine + ReLU on the input] ->
#               3x3 conv (+bias) -> per-tile BN partial statistics.
# Statics bound via functools.partial: apply_act, w_taps_packed, W, tile_h,
# num_h, c_in, c_out.
# --------------------------------------------------------------------------
def _conv_stage_kernel(apply_act, w_taps_packed, W, tile_h, num_h, c_in, c_out,
                       x_ref, src_hbm, scale_ref, shift_ref, w_ref, b_ref,
                       y_ref, stats_ref, hbuf, sem):
    n = pl.program_id(0)
    ht = pl.program_id(1)
    h0 = ht * tile_h

    # ---- halo rows: start both DMAs up front, wait just before use. --------
    @pl.when(ht > 0)
    def _():
        pltpu.make_async_copy(src_hbm.at[n, pl.ds(h0 - 1, 1)],
                              hbuf.at[pl.ds(0, 1)], sem.at[0]).start()

    @pl.when(ht == 0)            # out-of-image row; also covers stale scratch
    def _():
        hbuf[pl.ds(0, 1)] = jnp.zeros((1, W, c_in), hbuf.dtype)

    @pl.when(ht < num_h - 1)
    def _():
        pltpu.make_async_copy(src_hbm.at[n, pl.ds(h0 + tile_h, 1)],
                              hbuf.at[pl.ds(1, 1)], sem.at[1]).start()

    @pl.when(ht == num_h - 1)
    def _():
        hbuf[pl.ds(1, 1)] = jnp.zeros((1, W, c_in), hbuf.dtype)

    # ---- centre rows arrive via the double-buffered BlockSpec pipeline. ----
    if apply_act:
        sc = scale_ref[...].reshape(1, 1, c_in)
        sh = shift_ref[...].reshape(1, 1, c_in)
        xc = jnp.maximum(x_ref[0].astype(jnp.float32) * sc + sh,
                         0.0).astype(jnp.bfloat16)
    else:
        xc = x_ref[0]                       # stays bf16, no f32 round trip

    @pl.when(ht > 0)
    def _():
        pltpu.make_async_copy(src_hbm.at[n, pl.ds(h0 - 1, 1)],
                              hbuf.at[pl.ds(0, 1)], sem.at[0]).wait()

    @pl.when(ht < num_h - 1)
    def _():
        pltpu.make_async_copy(src_hbm.at[n, pl.ds(h0 + tile_h, 1)],
                              hbuf.at[pl.ds(1, 1)], sem.at[1]).wait()

    top = hbuf[pl.ds(0, 1)]
    bot = hbuf[pl.ds(1, 1)]
    if apply_act:
        # Out-of-image rows must be zero *after* the folded BN+ReLU.  The
        # boundary rows were explicitly zeroed above, so an arithmetic mask
        # (scalar multiply, no select over stale data) is safe.
        top_keep = (ht > 0).astype(jnp.float32)
        bot_keep = (ht < num_h - 1).astype(jnp.float32)
        top = (jnp.maximum(top.astype(jnp.float32) * sc + sh, 0.0)
               * top_keep).astype(jnp.bfloat16)
        bot = (jnp.maximum(bot.astype(jnp.float32) * sc + sh, 0.0)
               * bot_keep).astype(jnp.bfloat16)
    x = jnp.concatenate([top, xc, bot], axis=0)     # (tile_h+2, W, c_in) bf16

    # ---- im2col lhs: W-tap packing hoisted out of the dh loop. -------------
    if w_taps_packed:
        lhs_full, K = x, c_in               # taps pre-packed in the wrapper
    else:
        zcol = jnp.zeros((tile_h + 2, 1, c_in), jnp.bfloat16)
        left = jnp.concatenate([zcol, x[:, :W - 1, :]], axis=1)    # column w-1
        right = jnp.concatenate([x[:, 1:, :], zcol], axis=1)       # column w+1
        lhs_full = jnp.concatenate([left, x, right], axis=2)
        K = 3 * c_in

    acc = jnp.zeros((tile_h * W, c_out), jnp.float32)
    for dh in range(3):                     # H-taps: free leading-axis offsets
        acc = acc + jnp.dot(lhs_full[dh:dh + tile_h].reshape(tile_h * W, K),
                            w_ref[dh], preferred_element_type=jnp.float32)
    acc = acc + b_ref[...]

    # ---- fused single-pass BN partials (f32 sum / sum-of-squares). ---------
    s = jnp.sum(acc, axis=0, keepdims=True)
    sq = jnp.sum(acc * acc, axis=0, keepdims=True)
    stats_ref[...] = jnp.concatenate([s, sq], axis=0).reshape(1, 1, 2, c_out)

    y_ref[...] = acc.reshape(1, tile_h, W, c_out).astype(y_ref.dtype)


def _conv_stage(src, scale, shift, w_im2col, bias, *, apply_act,
                w_taps_packed, tile_h, vmem_limit):
    N, H, W, c_in = src.shape
    _, K, c_out = w_im2col.shape
    assert K == (c_in if w_taps_packed else 3 * c_in)
    num_h = H // tile_h
    kernel = functools.partial(_conv_stage_kernel, apply_act, w_taps_packed,
                               W, tile_h, num_h, c_in, c_out)
    return pl.pallas_call(
        kernel,
        grid=(N, num_h),
        in_specs=[
            # bulk rows: normal double-buffered pipeline
            pl.BlockSpec((1, tile_h, W, c_in), lambda n, h: (n, h, 0, 0)),
            # same array again, HBM-resident, for the manual 1-row halo DMAs
            pl.BlockSpec(memory_space=pl.ANY),
            pl.BlockSpec((1, c_in), lambda n, h: (0, 0)),       # folded BN scale
            pl.BlockSpec((1, c_in), lambda n, h: (0, 0)),       # folded BN shift
            # NOTE(v7x): with large C, add pipeline_mode=pl.Buffered(1) here —
            # constant index_map, so single-buffering the weights frees VMEM.
            pl.BlockSpec((3, K, c_out), lambda n, h: (0, 0, 0)),  # im2col weights
            pl.BlockSpec((1, c_out), lambda n, h: (0, 0)),        # conv bias
        ],
        out_specs=[
            pl.BlockSpec((1, tile_h, W, c_out), lambda n, h: (n, h, 0, 0)),
            pl.BlockSpec((1, 1, 2, c_out), lambda n, h: (n, h, 0, 0)),
        ],
        out_shape=[
            jax.ShapeDtypeStruct((N, H, W, c_out), jnp.bfloat16),   # bf16 intermediate
            jax.ShapeDtypeStruct((N, num_h, 2, c_out), jnp.float32),
        ],
        scratch_shapes=[
            pltpu.VMEM((2, W, c_in), src.dtype),     # top / bottom halo rows
            pltpu.SemaphoreType.DMA((2,)),
        ],
        compiler_params=pltpu.CompilerParams(
            dimension_semantics=("parallel", "parallel"),
            vmem_limit_bytes=vmem_limit),
    )(src, src, scale, shift, w_im2col, bias)


# --------------------------------------------------------------------------
# Final elementwise BN2 + ReLU (lane-dense tiles, bf16 in / f32 out).
# --------------------------------------------------------------------------
def _bn_relu_kernel(y_ref, scale_ref, shift_ref, o_ref):
    o_ref[...] = jnp.maximum(
        y_ref[...].astype(jnp.float32) * scale_ref[...] + shift_ref[...], 0.0)


def _bn_relu(y, scale, shift, *, tile_h, vmem_limit):
    N, H, W, C = y.shape
    num_h = H // tile_h
    return pl.pallas_call(
        _bn_relu_kernel,
        grid=(N, num_h),
        in_specs=[pl.BlockSpec((1, tile_h, W, C), lambda n, h: (n, h, 0, 0)),
                  pl.BlockSpec((1, C), lambda n, h: (0, 0)),
                  pl.BlockSpec((1, C), lambda n, h: (0, 0))],
        out_specs=pl.BlockSpec((1, tile_h, W, C), lambda n, h: (n, h, 0, 0)),
        out_shape=jax.ShapeDtypeStruct((N, H, W, C), jnp.float32),
        compiler_params=pltpu.CompilerParams(
            dimension_semantics=("parallel", "parallel"),
            vmem_limit_bytes=vmem_limit),
    )(y, scale, shift)


def _finalize_stats(stats, count):
    # stats: (N, num_h, 2, C) per-tile f32 partials (row 0 = sum, row 1 = sumsq).
    tot = jnp.sum(stats, axis=(0, 1))
    mean = tot[0] / count
    var = jnp.maximum(tot[1] / count - mean * mean, 0.0)   # guard tiny negatives
    # TODO(synk): switch to per-tile mean-shifted partials (Welford merge) if
    # activations can have |mean| >> std; fine for conv activations here.
    return mean, var


# --------------------------------------------------------------------------
# PyTorch-equivalent forward: NCHW f32 in / NCHW f32 out (training-mode BN).
# --------------------------------------------------------------------------
def unet_block_forward(x_nchw, params):
    N, Cin, H, W = x_nchw.shape
    Cout = params["w1"].shape[-1]
    cout_p = _round_up(Cout, LANE)
    vmem_limit = _vmem_limit_bytes()

    x = jnp.transpose(x_nchw, (0, 2, 3, 1)).astype(jnp.float32)   # NHWC

    # ---- stage-1 input / weight layout ----
    if 3 * Cin <= LANE:
        # Small Cin: pack the 3 W-taps into the channel axis in the wrapper so
        # the contraction K pads to one lane group instead of 3x128 of zeros.
        zcol = jnp.zeros((N, H, 1, Cin), x.dtype)
        xp = jnp.concatenate(
            [jnp.concatenate([zcol, x[:, :, :W - 1, :]], axis=2),   # col w-1
             x,                                                      # col w
             jnp.concatenate([x[:, :, 1:, :], zcol], axis=2)],       # col w+1
            axis=-1)
        k1 = _round_up(3 * Cin, LANE)
        xp = jnp.pad(xp, ((0, 0), (0, 0), (0, 0),
                          (0, k1 - 3 * Cin))).astype(jnp.bfloat16)
        w1 = params["w1"].reshape(3, 3 * Cin, Cout)
        w1 = jnp.pad(w1, ((0, 0), (0, k1 - 3 * Cin),
                          (0, cout_p - Cout))).astype(jnp.bfloat16)
        w_taps_packed1, c_in1 = True, k1
    else:
        cin_p = _round_up(Cin, LANE)
        xp = jnp.pad(x, ((0, 0), (0, 0), (0, 0),
                         (0, cin_p - Cin))).astype(jnp.bfloat16)
        w1 = jnp.pad(params["w1"],
                     ((0, 0), (0, 0), (0, cin_p - Cin), (0, cout_p - Cout)))
        w1 = w1.reshape(3, 3 * cin_p, cout_p).astype(jnp.bfloat16)
        w_taps_packed1, c_in1 = False, cin_p

    w2 = jnp.pad(params["w2"],
                 ((0, 0), (0, 0), (0, cout_p - Cout), (0, cout_p - Cout)))
    w2 = w2.reshape(3, 3 * cout_p, cout_p).astype(jnp.bfloat16)

    pad_c = lambda v: jnp.pad(v.astype(jnp.float32), (0, cout_p - v.shape[0]))
    b1 = pad_c(params["b1"]).reshape(1, cout_p)
    b2 = pad_c(params["b2"]).reshape(1, cout_p)
    g1, be1 = pad_c(params["g1"]), pad_c(params["be1"])
    g2, be2 = pad_c(params["g2"]), pad_c(params["be2"])

    tile_h = _pick_tile_h(H, W, max(c_in1, cout_p), vmem_limit)
    count = N * H * W

    # Stage 1: conv1 (+bias) and per-tile BN1 partial statistics.
    ones1 = jnp.ones((1, c_in1), jnp.float32)
    zeros1 = jnp.zeros((1, c_in1), jnp.float32)
    y1, st1 = _conv_stage(xp, ones1, zeros1, w1, b1, apply_act=False,
                          w_taps_packed=w_taps_packed1, tile_h=tile_h,
                          vmem_limit=vmem_limit)
    mean1, var1 = _finalize_stats(st1, count)
    scale1 = g1 * lax.rsqrt(var1 + EPS)
    shift1 = be1 - mean1 * scale1

    # Stage 2: BN1+ReLU folded on load -> conv2 (+bias) + BN2 partials.
    y2, st2 = _conv_stage(y1, scale1.reshape(1, cout_p),
                          shift1.reshape(1, cout_p), w2, b2, apply_act=True,
                          w_taps_packed=False, tile_h=tile_h,
                          vmem_limit=vmem_limit)
    mean2, var2 = _finalize_stats(st2, count)
    scale2 = g2 * lax.rsqrt(var2 + EPS)
    shift2 = be2 - mean2 * scale2

    # Stage 3: BN2 + ReLU.
    out = _bn_relu(y2, scale2.reshape(1, cout_p), shift2.reshape(1, cout_p),
                   tile_h=tile_h, vmem_limit=vmem_limit)

    # TODO(synk): when W >= 128 the channel un-pad + NCHW transpose could be
    # fused into the final kernel's output BlockSpec; at toy W that would force
    # narrow masked stores, so it stays in the XLA wrapper.
    return jnp.transpose(out[..., :Cout], (0, 3, 1, 2))


# --------------------------------------------------------------------------
# Pure-JAX reference matching the kernel's declared numerics: bf16 conv
# operands, bf16 inter-stage activation storage, f32 accumulation and f32
# training-mode batch-norm statistics (the module's math otherwise).
# --------------------------------------------------------------------------
def ref_forward(x_nchw, params):
    x = jnp.transpose(x_nchw, (0, 2, 3, 1)).astype(jnp.float32)

    def conv(h, w):
        hb = h.astype(jnp.bfloat16).astype(jnp.float32)
        wb = w.astype(jnp.bfloat16).astype(jnp.float32)
        return lax.conv_general_dilated(
            hb, wb, (1, 1), "SAME",
            dimension_numbers=("NHWC", "HWIO", "NHWC"),
            precision=lax.Precision.HIGHEST)

    def bn_relu(y, g, be):
        # Stats from the f32 accumulator; normalization applied to the
        # bf16-stored activation, mirroring the kernel's two-pass structure.
        m = y.mean((0, 1, 2))
        v = ((y - m) ** 2).mean((0, 1, 2))
        yq = y.astype(jnp.bfloat16).astype(jnp.float32)
        return jnp.maximum((yq - m) * (g * lax.rsqrt(v + EPS)) + be, 0.0)

    y = bn_relu(conv(x, params["w1"]) + params["b1"], params["g1"], params["be1"])
    y = bn_relu(conv(y, params["w2"]) + params["b2"], params["g2"], params["be2"])
    return jnp.transpose(y, (0, 3, 1, 2))


if __name__ == "__main__":
    N, Cin, Cout, H, W = 2, 4, 8, 16, 16
    key = jax.random.PRNGKey(0)
    ks = jax.random.split(key, 9)

    x = jax.random.normal(ks[0], (N, Cin, H, W), jnp.float32)
    params = dict(
        # Conv weights in HWIO layout (torch OIHW maps via transpose(2,3,1,0)).
        w1=jax.random.normal(ks[1], (3, 3, Cin, Cout), jnp.float32) * 0.1,
        b1=jax.random.normal(ks[2], (Cout,), jnp.float32) * 0.1,
        g1=1.0 + 0.1 * jax.random.normal(ks[3], (Cout,), jnp.float32),
        be1=0.1 * jax.random.normal(ks[4], (Cout,), jnp.float32),
        w2=jax.random.normal(ks[5], (3, 3, Cout, Cout), jnp.float32) * 0.1,
        b2=jax.random.normal(ks[6], (Cout,), jnp.float32) * 0.1,
        g2=1.0 + 0.1 * jax.random.normal(ks[7], (Cout,), jnp.float32),
        be2=0.1 * jax.random.normal(ks[8], (Cout,), jnp.float32),
    )

    out = jax.block_until_ready(jax.jit(unet_block_forward)(x, params))
    ref = jax.block_until_ready(ref_forward(x, params))

    assert out.shape == (N, Cout, H, W), out.shape
    assert bool(jnp.all(jnp.isfinite(out)))
    assert jnp.allclose(out, ref, rtol=1e-2, atol=1e-2), (
        "mismatch vs reference, max abs diff = %f"
        % float(jnp.max(jnp.abs(out - ref))))
    print("KERNEL_OK")
</pallas_src>

<mosaic_0001>
module attributes {stable_mosaic.version = 11 : i64} {
  func.func @_conv_stage_kernel(%arg0: i32, %arg1: i32, %arg2: memref<1x8x16x128xbf16, #tpu.memory_space<vmem>>, %arg3: memref<2x16x16x128xbf16, #tpu.memory_space<any>>, %arg4: memref<1x128xf32, #tpu.memory_space<vmem>>, %arg5: memref<1x128xf32, #tpu.memory_space<vmem>>, %arg6: memref<3x128x128xbf16, #tpu.memory_space<vmem>>, %arg7: memref<1x128xf32, #tpu.memory_space<vmem>>, %arg8: memref<1x8x16x128xbf16, #tpu.memory_space<vmem>>, %arg9: memref<1x1x2x128xf32, #tpu.memory_space<vmem>>, %arg10: memref<2x16x128xbf16, #tpu.memory_space<vmem>>, %arg11: memref<2x!tpu.dma_semaphore, #tpu.memory_space<semaphore_mem>>) attributes {dimension_semantics = [#tpu.dimension_semantics<parallel>, #tpu.dimension_semantics<parallel>], iteration_bounds = array<i64: 2, 2>, scalar_prefetch = 0 : i64, scratch_operands = 2 : i64, tpu.core_type = #tpu.core_type<tc>, window_params = [{transform_indices = @transform_0, window_bounds = array<i64: 1, 8, 16, 128>}, {}, {pipeline_mode = #tpu.pipeline_mode<synchronous>, transform_indices = @transform_2, window_bounds = array<i64: 1, 128>}, {pipeline_mode = #tpu.pipeline_mode<synchronous>, transform_indices = @transform_3, window_bounds = array<i64: 1, 128>}, {pipeline_mode = #tpu.pipeline_mode<synchronous>, transform_indices = @transform_4, window_bounds = array<i64: 3, 128, 128>}, {pipeline_mode = #tpu.pipeline_mode<synchronous>, transform_indices = @transform_5, window_bounds = array<i64: 1, 128>}, {transform_indices = @transform_6, window_bounds = array<i64: 1, 8, 16, 128>}, {transform_indices = @transform_7, window_bounds = array<i64: 1, 1, 2, 128>}]} {
    %c8_i32 = arith.constant 8 : i32
    %0 = arith.muli %arg1, %c8_i32 : i32
    %c0_i32 = arith.constant 0 : i32
    %1 = arith.cmpi sgt, %arg1, %c0_i32 : i32
    %2 = arith.extui %1 : i1 to i32
    %c0_i32_0 = arith.constant 0 : i32
    %3 = arith.cmpi ne, %2, %c0_i32_0 : i32
    scf.if %3 {
      %c1_i32_41 = arith.constant 1 : i32
      %57 = arith.subi %0, %c1_i32_41 : i32
      %c0_i32_42 = arith.constant 0 : i32
      %c0_i32_43 = arith.constant 0 : i32
      %c0_i32_44 = arith.constant 0 : i32
      %58 = tpu.memref_slice %arg3[%arg0, %57, %c0_i32_43, %c0_i32_44] : memref<2x16x16x128xbf16, #tpu.memory_space<any>> -> memref<1x1x16x128xbf16, #tpu.memory_space<any>>
      %59 = tpu.memref_squeeze %58 : memref<1x1x16x128xbf16, #tpu.memory_space<any>> -> memref<1x16x128xbf16, #tpu.memory_space<any>>
      %c0_i32_45 = arith.constant 0 : i32
      %c0_i32_46 = arith.constant 0 : i32
      %c0_i32_47 = arith.constant 0 : i32
      %60 = tpu.memref_slice %arg10[%c0_i32_45, %c0_i32_46, %c0_i32_47] : memref<2x16x128xbf16, #tpu.memory_space<vmem>> -> memref<1x16x128xbf16, #tpu.memory_space<vmem>>
      %61 = tpu.memref_slice %arg11[%c0_i32_42] : memref<2x!tpu.dma_semaphore, #tpu.memory_space<semaphore_mem>> -> memref<1x!tpu.dma_semaphore, #tpu.memory_space<semaphore_mem>>
      %62 = tpu.memref_squeeze %61 : memref<1x!tpu.dma_semaphore, #tpu.memory_space<semaphore_mem>> -> memref<!tpu.dma_semaphore, #tpu.memory_space<semaphore_mem>>
      tpu.enqueue_dma source(%59 : memref<1x16x128xbf16, #tpu.memory_space<any>>) target(%60 : memref<1x16x128xbf16, #tpu.memory_space<vmem>>) target_semaphore(%62 : memref<!tpu.dma_semaphore, #tpu.memory_space<semaphore_mem>>)
    } else {
    }
    %c0_i32_1 = arith.constant 0 : i32
    %4 = arith.cmpi eq, %arg1, %c0_i32_1 : i32
    %5 = arith.extui %4 : i1 to i32
    %c0_i32_2 = arith.constant 0 : i32
    %6 = arith.cmpi ne, %5, %c0_i32_2 : i32
    scf.if %6 {
      %cst_41 = arith.constant 0.000000e+00 : bf16
      %57 = vector.broadcast %cst_41 : bf16 to vector<1x16x128xbf16>
      %c0_42 = arith.constant 0 : index
      %c0_43 = arith.constant 0 : index
      %c0_44 = arith.constant 0 : index
      %58 = vector.load %arg10[%c0_42, %c0_43, %c0_44] : memref<2x16x128xbf16, #tpu.memory_space<vmem>>, vector<1x16x128xbf16>
      tpu.vector_store %arg10[%c0_42, %c0_43, %c0_44], %57 {strides = array<i32>} : memref<2x16x128xbf16, #tpu.memory_space<vmem>>, vector<1x16x128xbf16>,
    } else {
    }
    %c1_i32 = arith.constant 1 : i32
    %7 = arith.cmpi slt, %arg1, %c1_i32 : i32
    %8 = arith.extui %7 : i1 to i32
    %c0_i32_3 = arith.constant 0 : i32
    %9 = arith.cmpi ne, %8, %c0_i32_3 : i32
    scf.if %9 {
      %c8_i32_41 = arith.constant 8 : i32
      %57 = arith.addi %0, %c8_i32_41 : i32
      %c1_i32_42 = arith.constant 1 : i32
      %c0_i32_43 = arith.constant 0 : i32
      %c0_i32_44 = arith.constant 0 : i32
      %58 = tpu.memref_slice %arg3[%arg0, %57, %c0_i32_43, %c0_i32_44] : memref<2x16x16x128xbf16, #tpu.memory_space<any>> -> memref<1x1x16x128xbf16, #tpu.memory_space<any>>
      %59 = tpu.memref_squeeze %58 : memref<1x1x16x128xbf16, #tpu.memory_space<any>> -> memref<1x16x128xbf16, #tpu.memory_space<any>>
      %c1_i32_45 = arith.constant 1 : i32
      %c0_i32_46 = arith.constant 0 : i32
      %c0_i32_47 = arith.constant 0 : i32
      %60 = tpu.memref_slice %arg10[%c1_i32_45, %c0_i32_46, %c0_i32_47] : memref<2x16x128xbf16, #tpu.memory_space<vmem>> -> memref<1x16x128xbf16, #tpu.memory_space<vmem>>
      %61 = tpu.memref_slice %arg11[%c1_i32_42] : memref<2x!tpu.dma_semaphore, #tpu.memory_space<semaphore_mem>> -> memref<1x!tpu.dma_semaphore, #tpu.memory_space<semaphore_mem>>
      %62 = tpu.memref_squeeze %61 : memref<1x!tpu.dma_semaphore, #tpu.memory_space<semaphore_mem>> -> memref<!tpu.dma_semaphore, #tpu.memory_space<semaphore_mem>>
      tpu.enqueue_dma source(%59 : memref<1x16x128xbf16, #tpu.memory_space<any>>) target(%60 : memref<1x16x128xbf16, #tpu.memory_space<vmem>>) target_semaphore(%62 : memref<!tpu.dma_semaphore, #tpu.memory_space<semaphore_mem>>)
    } else {
    }
    %c1_i32_4 = arith.constant 1 : i32
    %10 = arith.cmpi eq, %arg1, %c1_i32_4 : i32
    %11 = arith.extui %10 : i1 to i32
    %c0_i32_5 = arith.constant 0 : i32
    %12 = arith.cmpi ne, %11, %c0_i32_5 : i32
    scf.if %12 {
      %cst_41 = arith.constant 0.000000e+00 : bf16
      %57 = vector.broadcast %cst_41 : bf16 to vector<1x16x128xbf16>
      %c1_42 = arith.constant 1 : index
      %c0_43 = arith.constant 0 : index
      %c0_44 = arith.constant 0 : index
      %58 = vector.load %arg10[%c1_42, %c0_43, %c0_44] : memref<2x16x128xbf16, #tpu.memory_space<vmem>>, vector<1x16x128xbf16>
      tpu.vector_store %arg10[%c1_42, %c0_43, %c0_44], %57 {strides = array<i32>} : memref<2x16x128xbf16, #tpu.memory_space<vmem>>, vector<1x16x128xbf16>,
    } else {
    }
    %c0 = arith.constant 0 : index
    %c0_6 = arith.constant 0 : index
    %c0_7 = arith.constant 0 : index
    %c0_8 = arith.constant 0 : index
    %13 = vector.load %arg2[%c0, %c0_6, %c0_7, %c0_8] : memref<1x8x16x128xbf16, #tpu.memory_space<vmem>>, vector<1x8x16x128xbf16>
    %14 = vector.shape_cast %13 : vector<1x8x16x128xbf16> to vector<8x16x128xbf16>
    %c0_i32_9 = arith.constant 0 : i32
    %15 = arith.cmpi sgt, %arg1, %c0_i32_9 : i32
    %16 = arith.extui %15 : i1 to i32
    %c0_i32_10 = arith.constant 0 : i32
    %17 = arith.cmpi ne, %16, %c0_i32_10 : i32
    scf.if %17 {
      %c1_i32_41 = arith.constant 1 : i32
      %57 = arith.subi %0, %c1_i32_41 : i32
      %c0_i32_42 = arith.constant 0 : i32
      %c0_i32_43 = arith.constant 0 : i32
      %c0_i32_44 = arith.constant 0 : i32
      %58 = tpu.memref_slice %arg3[%arg0, %57, %c0_i32_43, %c0_i32_44] : memref<2x16x16x128xbf16, #tpu.memory_space<any>> -> memref<1x1x16x128xbf16, #tpu.memory_space<any>>
      %59 = tpu.memref_squeeze %58 : memref<1x1x16x128xbf16, #tpu.memory_space<any>> -> memref<1x16x128xbf16, #tpu.memory_space<any>>
      %c0_i32_45 = arith.constant 0 : i32
      %c0_i32_46 = arith.constant 0 : i32
      %c0_i32_47 = arith.constant 0 : i32
      %60 = tpu.memref_slice %arg10[%c0_i32_45, %c0_i32_46, %c0_i32_47] : memref<2x16x128xbf16, #tpu.memory_space<vmem>> -> memref<1x16x128xbf16, #tpu.memory_space<vmem>>
      %61 = tpu.memref_slice %arg11[%c0_i32_42] : memref<2x!tpu.dma_semaphore, #tpu.memory_space<semaphore_mem>> -> memref<1x!tpu.dma_semaphore, #tpu.memory_space<semaphore_mem>>
      %62 = tpu.memref_squeeze %61 : memref<1x!tpu.dma_semaphore, #tpu.memory_space<semaphore_mem>> -> memref<!tpu.dma_semaphore, #tpu.memory_space<semaphore_mem>>
      tpu.wait_dma2 semaphore(%62 : memref<!tpu.dma_semaphore, #tpu.memory_space<semaphore_mem>>) src(%59 : memref<1x16x128xbf16, #tpu.memory_space<any>>) dst(%60 : memref<1x16x128xbf16, #tpu.memory_space<vmem>>)
    } else {
    }
    %c1_i32_11 = arith.constant 1 : i32
    %18 = arith.cmpi slt, %arg1, %c1_i32_11 : i32
    %19 = arith.extui %18 : i1 to i32
    %c0_i32_12 = arith.constant 0 : i32
    %20 = arith.cmpi ne, %19, %c0_i32_12 : i32
    scf.if %20 {
      %c8_i32_41 = arith.constant 8 : i32
      %57 = arith.addi %0, %c8_i32_41 : i32
      %c1_i32_42 = arith.constant 1 : i32
      %c0_i32_43 = arith.constant 0 : i32
      %c0_i32_44 = arith.constant 0 : i32
      %58 = tpu.memref_slice %arg3[%arg0, %57, %c0_i32_43, %c0_i32_44] : memref<2x16x16x128xbf16, #tpu.memory_space<any>> -> memref<1x1x16x128xbf16, #tpu.memory_space<any>>
      %59 = tpu.memref_squeeze %58 : memref<1x1x16x128xbf16, #tpu.memory_space<any>> -> memref<1x16x128xbf16, #tpu.memory_space<any>>
      %c1_i32_45 = arith.constant 1 : i32
      %c0_i32_46 = arith.constant 0 : i32
      %c0_i32_47 = arith.constant 0 : i32
      %60 = tpu.memref_slice %arg10[%c1_i32_45, %c0_i32_46, %c0_i32_47] : memref<2x16x128xbf16, #tpu.memory_space<vmem>> -> memref<1x16x128xbf16, #tpu.memory_space<vmem>>
      %61 = tpu.memref_slice %arg11[%c1_i32_42] : memref<2x!tpu.dma_semaphore, #tpu.memory_space<semaphore_mem>> -> memref<1x!tpu.dma_semaphore, #tpu.memory_space<semaphore_mem>>
      %62 = tpu.memref_squeeze %61 : memref<1x!tpu.dma_semaphore, #tpu.memory_space<semaphore_mem>> -> memref<!tpu.dma_semaphore, #tpu.memory_space<semaphore_mem>>
      tpu.wait_dma2 semaphore(%62 : memref<!tpu.dma_semaphore, #tpu.memory_space<semaphore_mem>>) src(%59 : memref<1x16x128xbf16, #tpu.memory_space<any>>) dst(%60 : memref<1x16x128xbf16, #tpu.memory_space<vmem>>)
    } else {
    }
    %c0_13 = arith.constant 0 : index
    %c0_14 = arith.constant 0 : index
    %c0_15 = arith.constant 0 : index
    %21 = vector.load %arg10[%c0_13, %c0_14, %c0_15] : memref<2x16x128xbf16, #tpu.memory_space<vmem>>, vector<1x16x128xbf16>
    %c1 = arith.constant 1 : index
    %c0_16 = arith.constant 0 : index
    %c0_17 = arith.constant 0 : index
    %22 = vector.load %arg10[%c1, %c0_16, %c0_17] : memref<2x16x128xbf16, #tpu.memory_space<vmem>>, vector<1x16x128xbf16>
    %23 = tpu.concatenate %21, %14, %22 in 0 : vector<1x16x128xbf16>, vector<8x16x128xbf16>, vector<1x16x128xbf16> -> vector<10x16x128xbf16>
    %cst = arith.constant 0.000000e+00 : f32
    %24 = vector.broadcast %cst : f32 to vector<128x128xf32>
    %25 = vector.extract_strided_slice %23 {offsets = [0, 0, 0], sizes = [8, 16, 128], strides = [1, 1, 1]} : vector<10x16x128xbf16> to vector<8x16x128xbf16>
    %26 = vector.shape_cast %25 : vector<8x16x128xbf16> to vector<128x128xbf16>
    %c0_18 = arith.constant 0 : index
    %c0_19 = arith.constant 0 : index
    %c0_20 = arith.constant 0 : index
    %27 = vector.load %arg6[%c0_18, %c0_19, %c0_20] : memref<3x128x128xbf16, #tpu.memory_space<vmem>>, vector<1x128x128xbf16>
    %28 = vector.shape_cast %27 : vector<1x128x128xbf16> to vector<128x128xbf16>
    %cst_21 = arith.constant dense<0.000000e+00> : vector<128x128xf32>
    %29 = tpu.matmul %26, %28, %cst_21 {dimension_numbers = #tpu.dot_dimension_numbers<[1], [0], [0], [1], [0, 0, 1, 1], [], []>} : vector<128x128xbf16>, vector<128x128xbf16>, vector<128x128xf32> -> vector<128x128xf32>
    %30 = arith.addf %24, %29 : vector<128x128xf32>
    %31 = vector.extract_strided_slice %23 {offsets = [1, 0, 0], sizes = [8, 16, 128], strides = [1, 1, 1]} : vector<10x16x128xbf16> to vector<8x16x128xbf16>
    %32 = vector.shape_cast %31 : vector<8x16x128xbf16> to vector<128x128xbf16>
    %c1_22 = arith.constant 1 : index
    %c0_23 = arith.constant 0 : index
    %c0_24 = arith.constant 0 : index
    %33 = vector.load %arg6[%c1_22, %c0_23, %c0_24] : memref<3x128x128xbf16, #tpu.memory_space<vmem>>, vector<1x128x128xbf16>
    %34 = vector.shape_cast %33 : vector<1x128x128xbf16> to vector<128x128xbf16>
    %cst_25 = arith.constant dense<0.000000e+00> : vector<128x128xf32>
    %35 = tpu.matmul %32, %34, %cst_25 {dimension_numbers = #tpu.dot_dimension_numbers<[1], [0], [0], [1], [0, 0, 1, 1], [], []>} : vector<128x128xbf16>, vector<128x128xbf16>, vector<128x128xf32> -> vector<128x128xf32>
    %36 = arith.addf %30, %35 : vector<128x128xf32>
    %37 = vector.extract_strided_slice %23 {offsets = [2, 0, 0], sizes = [8, 16, 128], strides = [1, 1, 1]} : vector<10x16x128xbf16> to vector<8x16x128xbf16>
    %38 = vector.shape_cast %37 : vector<8x16x128xbf16> to vector<128x128xbf16>
    %c2 = arith.constant 2 : index
    %c0_26 = arith.constant 0 : index
    %c0_27 = arith.constant 0 : index
    %39 = vector.load %arg6[%c2, %c0_26, %c0_27] : memref<3x128x128xbf16, #tpu.memory_space<vmem>>, vector<1x128x128xbf16>
    %40 = vector.shape_cast %39 : vector<1x128x128xbf16> to vector<128x128xbf16>
    %cst_28 = arith.constant dense<0.000000e+00> : vector<128x128xf32>
    %41 = tpu.matmul %38, %40, %cst_28 {dimension_numbers = #tpu.dot_dimension_numbers<[1], [0], [0], [1], [0, 0, 1, 1], [], []>} : vector<128x128xbf16>, vector<128x128xbf16>, vector<128x128xf32> -> vector<128x128xf32>
    %42 = arith.addf %36, %41 : vector<128x128xf32>
    %c0_29 = arith.constant 0 : index
    %c0_30 = arith.constant 0 : index
    %43 = vector.load %arg7[%c0_29, %c0_30] : memref<1x128xf32, #tpu.memory_space<vmem>>, vector<1x128xf32>
    %44 = vector.broadcast %43 : vector<1x128xf32> to vector<128x128xf32>
    %45 = arith.addf %42, %44 : vector<128x128xf32>
    %cst_31 = arith.constant dense<0.000000e+00> : vector<128xf32>
    %46 = vector.multi_reduction <add>, %45, %cst_31 [0] : vector<128x128xf32> to vector<128xf32>
    %47 = vector.shape_cast %46 : vector<128xf32> to vector<1x128xf32>
    %48 = arith.mulf %45, %45 : vector<128x128xf32>
    %cst_32 = arith.constant dense<0.000000e+00> : vector<128xf32>
    %49 = vector.multi_reduction <add>, %48, %cst_32 [0] : vector<128x128xf32> to vector<128xf32>
    %50 = vector.shape_cast %49 : vector<128xf32> to vector<1x128xf32>
    %51 = tpu.concatenate %47, %50 in 0 : vector<1x128xf32>, vector<1x128xf32> -> vector<2x128xf32>
    %52 = vector.shape_cast %51 : vector<2x128xf32> to vector<1x1x2x128xf32>
    %c0_33 = arith.constant 0 : index
    %c0_34 = arith.constant 0 : index
    %c0_35 = arith.constant 0 : index
    %c0_36 = arith.constant 0 : index
    %53 = vector.load %arg9[%c0_33, %c0_34, %c0_35, %c0_36] : memref<1x1x2x128xf32, #tpu.memory_space<vmem>>, vector<1x1x2x128xf32>
    tpu.vector_store %arg9[%c0_33, %c0_34, %c0_35, %c0_36], %52 {strides = array<i32>} : memref<1x1x2x128xf32, #tpu.memory_space<vmem>>, vector<1x1x2x128xf32>,
    %54 = vector.shape_cast %45 : vector<128x128xf32> to vector<1x8x16x128xf32>
    %55 = arith.truncf %54 : vector<1x8x16x128xf32> to vector<1x8x16x128xbf16>
    %c0_37 = arith.constant 0 : index
    %c0_38 = arith.constant 0 : index
    %c0_39 = arith.constant 0 : index
    %c0_40 = arith.constant 0 : index
    %56 = vector.load %arg8[%c0_37, %c0_38, %c0_39, %c0_40] : memref<1x8x16x128xbf16, #tpu.memory_space<vmem>>, vector<1x8x16x128xbf16>
    tpu.vector_store %arg8[%c0_37, %c0_38, %c0_39, %c0_40], %55 {strides = array<i32>} : memref<1x8x16x128xbf16, #tpu.memory_space<vmem>>, vector<1x8x16x128xbf16>,
    return
  }
  func.func @transform_0(%arg0: i32, %arg1: i32) -> (i32, i32, i32, i32) {
    %c0_i32 = arith.constant 0 : i32
    %c0_i32_0 = arith.constant 0 : i32
    %c0_i32_1 = arith.constant 0 : i32
    return %arg0, %arg1, %c0_i32, %c0_i32_0 : i32, i32, i32, i32
  }
  func.func @transform_2(%arg0: i32, %arg1: i32) -> (i32, i32) {
    %c0_i32 = arith.constant 0 : i32
    %c0_i32_0 = arith.constant 0 : i32
    %c0_i32_1 = arith.constant 0 : i32
    return %c0_i32, %c0_i32_0 : i32, i32
  }
  func.func @transform_3(%arg0: i32, %arg1: i32) -> (i32, i32) {
    %c0_i32 = arith.constant 0 : i32
    %c0_i32_0 = arith.constant 0 : i32
    %c0_i32_1 = arith.constant 0 : i32
    return %c0_i32, %c0_i32_0 : i32, i32
  }
  func.func @transform_4(%arg0: i32, %arg1: i32) -> (i32, i32, i32) {
    %c0_i32 = arith.constant 0 : i32
    %c0_i32_0 = arith.constant 0 : i32
    %c0_i32_1 = arith.constant 0 : i32
    %c0_i32_2 = arith.constant 0 : i32
    return %c0_i32, %c0_i32_0, %c0_i32_1 : i32, i32, i32
  }
  func.func @transform_5(%arg0: i32, %arg1: i32) -> (i32, i32) {
    %c0_i32 = arith.constant 0 : i32
    %c0_i32_0 = arith.constant 0 : i32
    %c0_i32_1 = arith.constant 0 : i32
    return %c0_i32, %c0_i32_0 : i32, i32
  }
  func.func @transform_6(%arg0: i32, %arg1: i32) -> (i32, i32, i32, i32) {
    %c0_i32 = arith.constant 0 : i32
    %c0_i32_0 = arith.constant 0 : i32
    %c0_i32_1 = arith.constant 0 : i32
    return %arg0, %arg1, %c0_i32, %c0_i32_0 : i32, i32, i32, i32
  }
  func.func @transform_7(%arg0: i32, %arg1: i32) -> (i32, i32, i32, i32) {
    %c0_i32 = arith.constant 0 : i32
    %c0_i32_0 = arith.constant 0 : i32
    %c0_i32_1 = arith.constant 0 : i32
    return %arg0, %arg1, %c0_i32, %c0_i32_0 : i32, i32, i32, i32
  }
}

module attributes {stable_mosaic.version = 11 : i64} {
  func.func @_conv_stage_kernel(%arg0: i32, %arg1: i32, %arg2: memref<1x8x16x128xbf16, #tpu.memory_space<vmem>>, %arg3: memref<2x16x16x128xbf16, #tpu.memory_space<any>>, %arg4: memref<1x128xf32, #tpu.memory_space<vmem>>, %arg5: memref<1x128xf32, #tpu.memory_space<vmem>>, %arg6: memref<3x384x128xbf16, #tpu.memory_space<vmem>>, %arg7: memref<1x128xf32, #tpu.memory_space<vmem>>, %arg8: memref<1x8x16x128xbf16, #tpu.memory_space<vmem>>, %arg9: memref<1x1x2x128xf32, #tpu.memory_space<vmem>>, %arg10: memref<2x16x128xbf16, #tpu.memory_space<vmem>>, %arg11: memref<2x!tpu.dma_semaphore, #tpu.memory_space<semaphore_mem>>) attributes {dimension_semantics = [#tpu.dimension_semantics<parallel>, #tpu.dimension_semantics<parallel>], iteration_bounds = array<i64: 2, 2>, scalar_prefetch = 0 : i64, scratch_operands = 2 : i64, tpu.core_type = #tpu.core_type<tc>, window_params = [{transform_indices = @transform_0, window_bounds = array<i64: 1, 8, 16, 128>}, {}, {pipeline_mode = #tpu.pipeline_mode<synchronous>, transform_indices = @transform_2, window_bounds = array<i64: 1, 128>}, {pipeline_mode = #tpu.pipeline_mode<synchronous>, transform_indices = @transform_3, window_bounds = array<i64: 1, 128>}, {pipeline_mode = #tpu.pipeline_mode<synchronous>, transform_indices = @transform_4, window_bounds = array<i64: 3, 384, 128>}, {pipeline_mode = #tpu.pipeline_mode<synchronous>, transform_indices = @transform_5, window_bounds = array<i64: 1, 128>}, {transform_indices = @transform_6, window_bounds = array<i64: 1, 8, 16, 128>}, {transform_indices = @transform_7, window_bounds = array<i64: 1, 1, 2, 128>}]} {
    %c8_i32 = arith.constant 8 : i32
    %0 = arith.muli %arg1, %c8_i32 : i32
    %c0_i32 = arith.constant 0 : i32
    %1 = arith.cmpi sgt, %arg1, %c0_i32 : i32
    %2 = arith.extui %1 : i1 to i32
    %c0_i32_0 = arith.constant 0 : i32
    %3 = arith.cmpi ne, %2, %c0_i32_0 : i32
    scf.if %3 {
      %c1_i32_51 = arith.constant 1 : i32
      %101 = arith.subi %0, %c1_i32_51 : i32
      %c0_i32_52 = arith.constant 0 : i32
      %c0_i32_53 = arith.constant 0 : i32
      %c0_i32_54 = arith.constant 0 : i32
      %102 = tpu.memref_slice %arg3[%arg0, %101, %c0_i32_53, %c0_i32_54] : memref<2x16x16x128xbf16, #tpu.memory_space<any>> -> memref<1x1x16x128xbf16, #tpu.memory_space<any>>
      %103 = tpu.memref_squeeze %102 : memref<1x1x16x128xbf16, #tpu.memory_space<any>> -> memref<1x16x128xbf16, #tpu.memory_space<any>>
      %c0_i32_55 = arith.constant 0 : i32
      %c0_i32_56 = arith.constant 0 : i32
      %c0_i32_57 = arith.constant 0 : i32
      %104 = tpu.memref_slice %arg10[%c0_i32_55, %c0_i32_56, %c0_i32_57] : memref<2x16x128xbf16, #tpu.memory_space<vmem>> -> memref<1x16x128xbf16, #tpu.memory_space<vmem>>
      %105 = tpu.memref_slice %arg11[%c0_i32_52] : memref<2x!tpu.dma_semaphore, #tpu.memory_space<semaphore_mem>> -> memref<1x!tpu.dma_semaphore, #tpu.memory_space<semaphore_mem>>
      %106 = tpu.memref_squeeze %105 : memref<1x!tpu.dma_semaphore, #tpu.memory_space<semaphore_mem>> -> memref<!tpu.dma_semaphore, #tpu.memory_space<semaphore_mem>>
      tpu.enqueue_dma source(%103 : memref<1x16x128xbf16, #tpu.memory_space<any>>) target(%104 : memref<1x16x128xbf16, #tpu.memory_space<vmem>>) target_semaphore(%106 : memref<!tpu.dma_semaphore, #tpu.memory_space<semaphore_mem>>)
    } else {
    }
    %c0_i32_1 = arith.constant 0 : i32
    %4 = arith.cmpi eq, %arg1, %c0_i32_1 : i32
    %5 = arith.extui %4 : i1 to i32
    %c0_i32_2 = arith.constant 0 : i32
    %6 = arith.cmpi ne, %5, %c0_i32_2 : i32
    scf.if %6 {
      %cst_51 = arith.constant 0.000000e+00 : bf16
      %101 = vector.broadcast %cst_51 : bf16 to vector<1x16x128xbf16>
      %c0_52 = arith.constant 0 : index
      %c0_53 = arith.constant 0 : index
      %c0_54 = arith.constant 0 : index
      %102 = vector.load %arg10[%c0_52, %c0_53, %c0_54] : memref<2x16x128xbf16, #tpu.memory_space<vmem>>, vector<1x16x128xbf16>
      tpu.vector_store %arg10[%c0_52, %c0_53, %c0_54], %101 {strides = array<i32>} : memref<2x16x128xbf16, #tpu.memory_space<vmem>>, vector<1x16x128xbf16>,
    } else {
    }
    %c1_i32 = arith.constant 1 : i32
    %7 = arith.cmpi slt, %arg1, %c1_i32 : i32
    %8 = arith.extui %7 : i1 to i32
    %c0_i32_3 = arith.constant 0 : i32
    %9 = arith.cmpi ne, %8, %c0_i32_3 : i32
    scf.if %9 {
      %c8_i32_51 = arith.constant 8 : i32
      %101 = arith.addi %0, %c8_i32_51 : i32
      %c1_i32_52 = arith.constant 1 : i32
      %c0_i32_53 = arith.constant 0 : i32
      %c0_i32_54 = arith.constant 0 : i32
      %102 = tpu.memref_slice %arg3[%arg0, %101, %c0_i32_53, %c0_i32_54] : memref<2x16x16x128xbf16, #tpu.memory_space<any>> -> memref<1x1x16x128xbf16, #tpu.memory_space<any>>
      %103 = tpu.memref_squeeze %102 : memref<1x1x16x128xbf16, #tpu.memory_space<any>> -> memref<1x16x128xbf16, #tpu.memory_space<any>>
      %c1_i32_55 = arith.constant 1 : i32
      %c0_i32_56 = arith.constant 0 : i32
      %c0_i32_57 = arith.constant 0 : i32
      %104 = tpu.memref_slice %arg10[%c1_i32_55, %c0_i32_56, %c0_i32_57] : memref<2x16x128xbf16, #tpu.memory_space<vmem>> -> memref<1x16x128xbf16, #tpu.memory_space<vmem>>
      %105 = tpu.memref_slice %arg11[%c1_i32_52] : memref<2x!tpu.dma_semaphore, #tpu.memory_space<semaphore_mem>> -> memref<1x!tpu.dma_semaphore, #tpu.memory_space<semaphore_mem>>
      %106 = tpu.memref_squeeze %105 : memref<1x!tpu.dma_semaphore, #tpu.memory_space<semaphore_mem>> -> memref<!tpu.dma_semaphore, #tpu.memory_space<semaphore_mem>>
      tpu.enqueue_dma source(%103 : memref<1x16x128xbf16, #tpu.memory_space<any>>) target(%104 : memref<1x16x128xbf16, #tpu.memory_space<vmem>>) target_semaphore(%106 : memref<!tpu.dma_semaphore, #tpu.memory_space<semaphore_mem>>)
    } else {
    }
    %c1_i32_4 = arith.constant 1 : i32
    %10 = arith.cmpi eq, %arg1, %c1_i32_4 : i32
    %11 = arith.extui %10 : i1 to i32
    %c0_i32_5 = arith.constant 0 : i32
    %12 = arith.cmpi ne, %11, %c0_i32_5 : i32
    scf.if %12 {
      %cst_51 = arith.constant 0.000000e+00 : bf16
      %101 = vector.broadcast %cst_51 : bf16 to vector<1x16x128xbf16>
      %c1_52 = arith.constant 1 : index
      %c0_53 = arith.constant 0 : index
      %c0_54 = arith.constant 0 : index
      %102 = vector.load %arg10[%c1_52, %c0_53, %c0_54] : memref<2x16x128xbf16, #tpu.memory_space<vmem>>, vector<1x16x128xbf16>
      tpu.vector_store %arg10[%c1_52, %c0_53, %c0_54], %101 {strides = array<i32>} : memref<2x16x128xbf16, #tpu.memory_space<vmem>>, vector<1x16x128xbf16>,
    } else {
    }
    %c0 = arith.constant 0 : index
    %c0_6 = arith.constant 0 : index
    %13 = vector.load %arg4[%c0, %c0_6] : memref<1x128xf32, #tpu.memory_space<vmem>>, vector<1x128xf32>
    %14 = vector.shape_cast %13 : vector<1x128xf32> to vector<1x1x128xf32>
    %c0_7 = arith.constant 0 : index
    %c0_8 = arith.constant 0 : index
    %15 = vector.load %arg5[%c0_7, %c0_8] : memref<1x128xf32, #tpu.memory_space<vmem>>, vector<1x128xf32>
    %16 = vector.shape_cast %15 : vector<1x128xf32> to vector<1x1x128xf32>
    %c0_9 = arith.constant 0 : index
    %c0_10 = arith.constant 0 : index
    %c0_11 = arith.constant 0 : index
    %c0_12 = arith.constant 0 : index
    %17 = vector.load %arg2[%c0_9, %c0_10, %c0_11, %c0_12] : memref<1x8x16x128xbf16, #tpu.memory_space<vmem>>, vector<1x8x16x128xbf16>
    %18 = vector.shape_cast %17 : vector<1x8x16x128xbf16> to vector<8x16x128xbf16>
    %19 = arith.extf %18 : vector<8x16x128xbf16> to vector<8x16x128xf32>
    %20 = vector.broadcast %14 : vector<1x1x128xf32> to vector<8x16x128xf32>
    %21 = arith.mulf %19, %20 : vector<8x16x128xf32>
    %22 = vector.broadcast %16 : vector<1x1x128xf32> to vector<8x16x128xf32>
    %23 = arith.addf %21, %22 : vector<8x16x128xf32>
    %cst = arith.constant 0.000000e+00 : f32
    %24 = vector.broadcast %cst : f32 to vector<8x16x128xf32>
    %25 = arith.maximumf %23, %24 : vector<8x16x128xf32>
    %26 = arith.truncf %25 : vector<8x16x128xf32> to vector<8x16x128xbf16>
    %c0_i32_13 = arith.constant 0 : i32
    %27 = arith.cmpi sgt, %arg1, %c0_i32_13 : i32
    %28 = arith.extui %27 : i1 to i32
    %c0_i32_14 = arith.constant 0 : i32
    %29 = arith.cmpi ne, %28, %c0_i32_14 : i32
    scf.if %29 {
      %c1_i32_51 = arith.constant 1 : i32
      %101 = arith.subi %0, %c1_i32_51 : i32
      %c0_i32_52 = arith.constant 0 : i32
      %c0_i32_53 = arith.constant 0 : i32
      %c0_i32_54 = arith.constant 0 : i32
      %102 = tpu.memref_slice %arg3[%arg0, %101, %c0_i32_53, %c0_i32_54] : memref<2x16x16x128xbf16, #tpu.memory_space<any>> -> memref<1x1x16x128xbf16, #tpu.memory_space<any>>
      %103 = tpu.memref_squeeze %102 : memref<1x1x16x128xbf16, #tpu.memory_space<any>> -> memref<1x16x128xbf16, #tpu.memory_space<any>>
      %c0_i32_55 = arith.constant 0 : i32
      %c0_i32_56 = arith.constant 0 : i32
      %c0_i32_57 = arith.constant 0 : i32
      %104 = tpu.memref_slice %arg10[%c0_i32_55, %c0_i32_56, %c0_i32_57] : memref<2x16x128xbf16, #tpu.memory_space<vmem>> -> memref<1x16x128xbf16, #tpu.memory_space<vmem>>
      %105 = tpu.memref_slice %arg11[%c0_i32_52] : memref<2x!tpu.dma_semaphore, #tpu.memory_space<semaphore_mem>> -> memref<1x!tpu.dma_semaphore, #tpu.memory_space<semaphore_mem>>
      %106 = tpu.memref_squeeze %105 : memref<1x!tpu.dma_semaphore, #tpu.memory_space<semaphore_mem>> -> memref<!tpu.dma_semaphore, #tpu.memory_space<semaphore_mem>>
      tpu.wait_dma2 semaphore(%106 : memref<!tpu.dma_semaphore, #tpu.memory_space<semaphore_mem>>) src(%103 : memref<1x16x128xbf16, #tpu.memory_space<any>>) dst(%104 : memref<1x16x128xbf16, #tpu.memory_space<vmem>>)
    } else {
    }
    %c1_i32_15 = arith.constant 1 : i32
    %30 = arith.cmpi slt, %arg1, %c1_i32_15 : i32
    %31 = arith.extui %30 : i1 to i32
    %c0_i32_16 = arith.constant 0 : i32
    %32 = arith.cmpi ne, %31, %c0_i32_16 : i32
    scf.if %32 {
      %c8_i32_51 = arith.constant 8 : i32
      %101 = arith.addi %0, %c8_i32_51 : i32
      %c1_i32_52 = arith.constant 1 : i32
      %c0_i32_53 = arith.constant 0 : i32
      %c0_i32_54 = arith.constant 0 : i32
      %102 = tpu.memref_slice %arg3[%arg0, %101, %c0_i32_53, %c0_i32_54] : memref<2x16x16x128xbf16, #tpu.memory_space<any>> -> memref<1x1x16x128xbf16, #tpu.memory_space<any>>
      %103 = tpu.memref_squeeze %102 : memref<1x1x16x128xbf16, #tpu.memory_space<any>> -> memref<1x16x128xbf16, #tpu.memory_space<any>>
      %c1_i32_55 = arith.constant 1 : i32
      %c0_i32_56 = arith.constant 0 : i32
      %c0_i32_57 = arith.constant 0 : i32
      %104 = tpu.memref_slice %arg10[%c1_i32_55, %c0_i32_56, %c0_i32_57] : memref<2x16x128xbf16, #tpu.memory_space<vmem>> -> memref<1x16x128xbf16, #tpu.memory_space<vmem>>
      %105 = tpu.memref_slice %arg11[%c1_i32_52] : memref<2x!tpu.dma_semaphore, #tpu.memory_space<semaphore_mem>> -> memref<1x!tpu.dma_semaphore, #tpu.memory_space<semaphore_mem>>
      %106 = tpu.memref_squeeze %105 : memref<1x!tpu.dma_semaphore, #tpu.memory_space<semaphore_mem>> -> memref<!tpu.dma_semaphore, #tpu.memory_space<semaphore_mem>>
      tpu.wait_dma2 semaphore(%106 : memref<!tpu.dma_semaphore, #tpu.memory_space<semaphore_mem>>) src(%103 : memref<1x16x128xbf16, #tpu.memory_space<any>>) dst(%104 : memref<1x16x128xbf16, #tpu.memory_space<vmem>>)
    } else {
    }
    %c0_17 = arith.constant 0 : index
    %c0_18 = arith.constant 0 : index
    %c0_19 = arith.constant 0 : index
    %33 = vector.load %arg10[%c0_17, %c0_18, %c0_19] : memref<2x16x128xbf16, #tpu.memory_space<vmem>>, vector<1x16x128xbf16>
    %c1 = arith.constant 1 : index
    %c0_20 = arith.constant 0 : index
    %c0_21 = arith.constant 0 : index
    %34 = vector.load %arg10[%c1, %c0_20, %c0_21] : memref<2x16x128xbf16, #tpu.memory_space<vmem>>, vector<1x16x128xbf16>
    %c0_i32_22 = arith.constant 0 : i32
    %35 = arith.cmpi sgt, %arg1, %c0_i32_22 : i32
    %36 = arith.extui %35 : i1 to i32
    %37 = arith.sitofp %36 : i32 to f32
    %c1_i32_23 = arith.constant 1 : i32
    %38 = arith.cmpi slt, %arg1, %c1_i32_23 : i32
    %39 = arith.extui %38 : i1 to i32
    %40 = arith.sitofp %39 : i32 to f32
    %41 = arith.extf %33 : vector<1x16x128xbf16> to vector<1x16x128xf32>
    %42 = vector.broadcast %14 : vector<1x1x128xf32> to vector<1x16x128xf32>
    %43 = arith.mulf %41, %42 : vector<1x16x128xf32>
    %44 = vector.broadcast %16 : vector<1x1x128xf32> to vector<1x16x128xf32>
    %45 = arith.addf %43, %44 : vector<1x16x128xf32>
    %cst_24 = arith.constant 0.000000e+00 : f32
    %46 = vector.broadcast %cst_24 : f32 to vector<1x16x128xf32>
    %47 = arith.maximumf %45, %46 : vector<1x16x128xf32>
    %48 = vector.broadcast %37 : f32 to vector<1x16x128xf32>
    %49 = arith.mulf %47, %48 : vector<1x16x128xf32>
    %50 = arith.truncf %49 : vector<1x16x128xf32> to vector<1x16x128xbf16>
    %51 = arith.extf %34 : vector<1x16x128xbf16> to vector<1x16x128xf32>
    %52 = vector.broadcast %14 : vector<1x1x128xf32> to vector<1x16x128xf32>
    %53 = arith.mulf %51, %52 : vector<1x16x128xf32>
    %54 = vector.broadcast %16 : vector<1x1x128xf32> to vector<1x16x128xf32>
    %55 = arith.addf %53, %54 : vector<1x16x128xf32>
    %cst_25 = arith.constant 0.000000e+00 : f32
    %56 = vector.broadcast %cst_25 : f32 to vector<1x16x128xf32>
    %57 = arith.maximumf %55, %56 : vector<1x16x128xf32>
    %58 = vector.broadcast %40 : f32 to vector<1x16x128xf32>
    %59 = arith.mulf %57, %58 : vector<1x16x128xf32>
    %60 = arith.truncf %59 : vector<1x16x128xf32> to vector<1x16x128xbf16>
    %61 = tpu.concatenate %50, %26, %60 in 0 : vector<1x16x128xbf16>, vector<8x16x128xbf16>, vector<1x16x128xbf16> -> vector<10x16x128xbf16>
    %cst_26 = arith.constant 0.000000e+00 : bf16
    %62 = vector.broadcast %cst_26 : bf16 to vector<10x1x128xbf16>
    %63 = vector.extract_strided_slice %61 {offsets = [0, 0, 0], sizes = [10, 15, 128], strides = [1, 1, 1]} : vector<10x16x128xbf16> to vector<10x15x128xbf16>
    %64 = tpu.concatenate %62, %63 in 1 : vector<10x1x128xbf16>, vector<10x15x128xbf16> -> vector<10x16x128xbf16>
    %65 = vector.extract_strided_slice %61 {offsets = [0, 1, 0], sizes = [10, 15, 128], strides = [1, 1, 1]} : vector<10x16x128xbf16> to vector<10x15x128xbf16>
    %66 = tpu.concatenate %65, %62 in 1 : vector<10x15x128xbf16>, vector<10x1x128xbf16> -> vector<10x16x128xbf16>
    %67 = tpu.concatenate %64, %61, %66 in 2 : vector<10x16x128xbf16>, vector<10x16x128xbf16>, vector<10x16x128xbf16> -> vector<10x16x384xbf16>
    %cst_27 = arith.constant 0.000000e+00 : f32
    %68 = vector.broadcast %cst_27 : f32 to vector<128x128xf32>
    %69 = vector.extract_strided_slice %67 {offsets = [0, 0, 0], sizes = [8, 16, 384], strides = [1, 1, 1]} : vector<10x16x384xbf16> to vector<8x16x384xbf16>
    %70 = vector.shape_cast %69 : vector<8x16x384xbf16> to vector<128x384xbf16>
    %c0_28 = arith.constant 0 : index
    %c0_29 = arith.constant 0 : index
    %c0_30 = arith.constant 0 : index
    %71 = vector.load %arg6[%c0_28, %c0_29, %c0_30] : memref<3x384x128xbf16, #tpu.memory_space<vmem>>, vector<1x384x128xbf16>
    %72 = vector.shape_cast %71 : vector<1x384x128xbf16> to vector<384x128xbf16>
    %cst_31 = arith.constant dense<0.000000e+00> : vector<128x128xf32>
    %73 = tpu.matmul %70, %72, %cst_31 {dimension_numbers = #tpu.dot_dimension_numbers<[1], [0], [0], [1], [0, 0, 1, 1], [], []>} : vector<128x384xbf16>, vector<384x128xbf16>, vector<128x128xf32> -> vector<128x128xf32>
    %74 = arith.addf %68, %73 : vector<128x128xf32>
    %75 = vector.extract_strided_slice %67 {offsets = [1, 0, 0], sizes = [8, 16, 384], strides = [1, 1, 1]} : vector<10x16x384xbf16> to vector<8x16x384xbf16>
    %76 = vector.shape_cast %75 : vector<8x16x384xbf16> to vector<128x384xbf16>
    %c1_32 = arith.constant 1 : index
    %c0_33 = arith.constant 0 : index
    %c0_34 = arith.constant 0 : index
    %77 = vector.load %arg6[%c1_32, %c0_33, %c0_34] : memref<3x384x128xbf16, #tpu.memory_space<vmem>>, vector<1x384x128xbf16>
    %78 = vector.shape_cast %77 : vector<1x384x128xbf16> to vector<384x128xbf16>
    %cst_35 = arith.constant dense<0.000000e+00> : vector<128x128xf32>
    %79 = tpu.matmul %76, %78, %cst_35 {dimension_numbers = #tpu.dot_dimension_numbers<[1], [0], [0], [1], [0, 0, 1, 1], [], []>} : vector<128x384xbf16>, vector<384x128xbf16>, vector<128x128xf32> -> vector<128x128xf32>
    %80 = arith.addf %74, %79 : vector<128x128xf32>
    %81 = vector.extract_strided_slice %67 {offsets = [2, 0, 0], sizes = [8, 16, 384], strides = [1, 1, 1]} : vector<10x16x384xbf16> to vector<8x16x384xbf16>
    %82 = vector.shape_cast %81 : vector<8x16x384xbf16> to vector<128x384xbf16>
    %c2 = arith.constant 2 : index
    %c0_36 = arith.constant 0 : index
    %c0_37 = arith.constant 0 : index
    %83 = vector.load %arg6[%c2, %c0_36, %c0_37] : memref<3x384x128xbf16, #tpu.memory_space<vmem>>, vector<1x384x128xbf16>
    %84 = vector.shape_cast %83 : vector<1x384x128xbf16> to vector<384x128xbf16>
    %cst_38 = arith.constant dense<0.000000e+00> : vector<128x128xf32>
    %85 = tpu.matmul %82, %84, %cst_38 {dimension_numbers = #tpu.dot_dimension_numbers<[1], [0], [0], [1], [0, 0, 1, 1], [], []>} : vector<128x384xbf16>, vector<384x128xbf16>, vector<128x128xf32> -> vector<128x128xf32>
    %86 = arith.addf %80, %85 : vector<128x128xf32>
    %c0_39 = arith.constant 0 : index
    %c0_40 = arith.constant 0 : index
    %87 = vector.load %arg7[%c0_39, %c0_40] : memref<1x128xf32, #tpu.memory_space<vmem>>, vector<1x128xf32>
    %88 = vector.broadcast %87 : vector<1x128xf32> to vector<128x128xf32>
    %89 = arith.addf %86, %88 : vector<128x128xf32>
    %cst_41 = arith.constant dense<0.000000e+00> : vector<128xf32>
    %90 = vector.multi_reduction <add>, %89, %cst_41 [0] : vector<128x128xf32> to vector<128xf32>
    %91 = vector.shape_cast %90 : vector<128xf32> to vector<1x128xf32>
    %92 = arith.mulf %89, %89 : vector<128x128xf32>
    %cst_42 = arith.constant dense<0.000000e+00> : vector<128xf32>
    %93 = vector.multi_reduction <add>, %92, %cst_42 [0] : vector<128x128xf32> to vector<128xf32>
    %94 = vector.shape_cast %93 : vector<128xf32> to vector<1x128xf32>
    %95 = tpu.concatenate %91, %94 in 0 : vector<1x128xf32>, vector<1x128xf32> -> vector<2x128xf32>
    %96 = vector.shape_cast %95 : vector<2x128xf32> to vector<1x1x2x128xf32>
    %c0_43 = arith.constant 0 : index
    %c0_44 = arith.constant 0 : index
    %c0_45 = arith.constant 0 : index
    %c0_46 = arith.constant 0 : index
    %97 = vector.load %arg9[%c0_43, %c0_44, %c0_45, %c0_46] : memref<1x1x2x128xf32, #tpu.memory_space<vmem>>, vector<1x1x2x128xf32>
    tpu.vector_store %arg9[%c0_43, %c0_44, %c0_45, %c0_46], %96 {strides = array<i32>} : memref<1x1x2x128xf32, #tpu.memory_space<vmem>>, vector<1x1x2x128xf32>,
    %98 = vector.shape_cast %89 : vector<128x128xf32> to vector<1x8x16x128xf32>
    %99 = arith.truncf %98 : vector<1x8x16x128xf32> to vector<1x8x16x128xbf16>
    %c0_47 = arith.constant 0 : index
    %c0_48 = arith.constant 0 : index
    %c0_49 = arith.constant 0 : index
    %c0_50 = arith.constant 0 : index
    %100 = vector.load %arg8[%c0_47, %c0_48, %c0_49, %c0_50] : memref<1x8x16x128xbf16, #tpu.memory_space<vmem>>, vector<1x8x16x128xbf16>
    tpu.vector_store %arg8[%c0_47, %c0_48, %c0_49, %c0_50], %99 {strides = array<i32>} : memref<1x8x16x128xbf16, #tpu.memory_space<vmem>>, vector<1x8x16x128xbf16>,
    return
  }
  func.func @transform_0(%arg0: i32, %arg1: i32) -> (i32, i32, i32, i32) {
    %c0_i32 = arith.constant 0 : i32
    %c0_i32_0 = arith.constant 0 : i32
    %c0_i32_1 = arith.constant 0 : i32
    return %arg0, %arg1, %c0_i32, %c0_i32_0 : i32, i32, i32, i32
  }
  func.func @transform_2(%arg0: i32, %arg1: i32) -> (i32, i32) {
    %c0_i32 = arith.constant 0 : i32
    %c0_i32_0 = arith.constant 0 : i32
    %c0_i32_1 = arith.constant 0 : i32
    return %c0_i32, %c0_i32_0 : i32, i32
  }
  func.func @transform_3(%arg0: i32, %arg1: i32) -> (i32, i32) {
    %c0_i32 = arith.constant 0 : i32
    %c0_i32_0 = arith.constant 0 : i32
    %c0_i32_1 = arith.constant 0 : i32
    return %c0_i32, %c0_i32_0 : i32, i32
  }
  func.func @transform_4(%arg0: i32, %arg1: i32) -> (i32, i32, i32) {
    %c0_i32 = arith.constant 0 : i32
    %c0_i32_0 = arith.constant 0 : i32
    %c0_i32_1 = arith.constant 0 : i32
    %c0_i32_2 = arith.constant 0 : i32
    return %c0_i32, %c0_i32_0, %c0_i32_1 : i32, i32, i32
  }
  func.func @transform_5(%arg0: i32, %arg1: i32) -> (i32, i32) {
    %c0_i32 = arith.constant 0 : i32
    %c0_i32_0 = arith.constant 0 : i32
    %c0_i32_1 = arith.constant 0 : i32
    return %c0_i32, %c0_i32_0 : i32, i32
  }
  func.func @transform_6(%arg0: i32, %arg1: i32) -> (i32, i32, i32, i32) {
    %c0_i32 = arith.constant 0 : i32
    %c0_i32_0 = arith.constant 0 : i32
    %c0_i32_1 = arith.constant 0 : i32
    return %arg0, %arg1, %c0_i32, %c0_i32_0 : i32, i32, i32, i32
  }
  func.func @transform_7(%arg0: i32, %arg1: i32) -> (i32, i32, i32, i32) {
    %c0_i32 = arith.constant 0 : i32
    %c0_i32_0 = arith.constant 0 : i32
    %c0_i32_1 = arith.constant 0 : i32
    return %arg0, %arg1, %c0_i32, %c0_i32_0 : i32, i32, i32, i32
  }
}

module attributes {stable_mosaic.version = 11 : i64} {
  func.func @_bn_relu_kernel(%arg0: i32, %arg1: i32, %arg2: memref<1x8x16x128xbf16, #tpu.memory_space<vmem>>, %arg3: memref<1x128xf32, #tpu.memory_space<vmem>>, %arg4: memref<1x128xf32, #tpu.memory_space<vmem>>, %arg5: memref<1x8x16x128xf32, #tpu.memory_space<vmem>>) attributes {dimension_semantics = [#tpu.dimension_semantics<parallel>, #tpu.dimension_semantics<parallel>], iteration_bounds = array<i64: 2, 2>, scalar_prefetch = 0 : i64, scratch_operands = 0 : i64, tpu.core_type = #tpu.core_type<tc>, window_params = [{transform_indices = @transform_0, window_bounds = array<i64: 1, 8, 16, 128>}, {pipeline_mode = #tpu.pipeline_mode<synchronous>, transform_indices = @transform_1, window_bounds = array<i64: 1, 128>}, {pipeline_mode = #tpu.pipeline_mode<synchronous>, transform_indices = @transform_2, window_bounds = array<i64: 1, 128>}, {transform_indices = @transform_3, window_bounds = array<i64: 1, 8, 16, 128>}]} {
    %c0 = arith.constant 0 : index
    %c0_0 = arith.constant 0 : index
    %c0_1 = arith.constant 0 : index
    %c0_2 = arith.constant 0 : index
    %0 = vector.load %arg2[%c0, %c0_0, %c0_1, %c0_2] : memref<1x8x16x128xbf16, #tpu.memory_space<vmem>>, vector<1x8x16x128xbf16>
    %1 = arith.extf %0 : vector<1x8x16x128xbf16> to vector<1x8x16x128xf32>
    %c0_3 = arith.constant 0 : index
    %c0_4 = arith.constant 0 : index
    %2 = vector.load %arg3[%c0_3, %c0_4] : memref<1x128xf32, #tpu.memory_space<vmem>>, vector<1x128xf32>
    %3 = vector.shape_cast %2 : vector<1x128xf32> to vector<1x1x1x128xf32>
    %4 = vector.broadcast %3 : vector<1x1x1x128xf32> to vector<1x8x16x128xf32>
    %5 = arith.mulf %1, %4 : vector<1x8x16x128xf32>
    %c0_5 = arith.constant 0 : index
    %c0_6 = arith.constant 0 : index
    %6 = vector.load %arg4[%c0_5, %c0_6] : memref<1x128xf32, #tpu.memory_space<vmem>>, vector<1x128xf32>
    %7 = vector.shape_cast %6 : vector<1x128xf32> to vector<1x1x1x128xf32>
    %8 = vector.broadcast %7 : vector<1x1x1x128xf32> to vector<1x8x16x128xf32>
    %9 = arith.addf %5, %8 : vector<1x8x16x128xf32>
    %cst = arith.constant 0.000000e+00 : f32
    %10 = vector.broadcast %cst : f32 to vector<1x8x16x128xf32>
    %11 = arith.maximumf %9, %10 : vector<1x8x16x128xf32>
    %c0_7 = arith.constant 0 : index
    %c0_8 = arith.constant 0 : index
    %c0_9 = arith.constant 0 : index
    %c0_10 = arith.constant 0 : index
    %12 = vector.load %arg5[%c0_7, %c0_8, %c0_9, %c0_10] : memref<1x8x16x128xf32, #tpu.memory_space<vmem>>, vector<1x8x16x128xf32>
    tpu.vector_store %arg5[%c0_7, %c0_8, %c0_9, %c0_10], %11 {strides = array<i32>} : memref<1x8x16x128xf32, #tpu.memory_space<vmem>>, vector<1x8x16x128xf32>,
    return
  }
  func.func @transform_0(%arg0: i32, %arg1: i32) -> (i32, i32, i32, i32) {
    %c0_i32 = arith.constant 0 : i32
    %c0_i32_0 = arith.constant 0 : i32
    %c0_i32_1 = arith.constant 0 : i32
    return %arg0, %arg1, %c0_i32, %c0_i32_0 : i32, i32, i32, i32
  }
  func.func @transform_1(%arg0: i32, %arg1: i32) -> (i32, i32) {
    %c0_i32 = arith.constant 0 : i32
    %c0_i32_0 = arith.constant 0 : i32
    %c0_i32_1 = arith.constant 0 : i32
    return %c0_i32, %c0_i32_0 : i32, i32
  }
  func.func @transform_2(%arg0: i32, %arg1: i32) -> (i32, i32) {
    %c0_i32 = arith.constant 0 : i32
    %c0_i32_0 = arith.constant 0 : i32
    %c0_i32_1 = arith.constant 0 : i32
    return %c0_i32, %c0_i32_0 : i32, i32
  }
  func.func @transform_3(%arg0: i32, %arg1: i32) -> (i32, i32, i32, i32) {
    %c0_i32 = arith.constant 0 : i32
    %c0_i32_0 = arith.constant 0 : i32
    %c0_i32_1 = arith.constant 0 : i32
    return %arg0, %arg1, %c0_i32, %c0_i32_0 : i32, i32, i32, i32
  }
}

</mosaic_0001>

<llo_original>
// kernel: unet_block_forward.5
$region0: #{unet_block_forward.5}
  #allocation0 [shape = 'u32[]', space=smem, size = 0x4, offset = 0x4, fixed_abs, tag = 'smem constant byte address 0x4 - core index']
  #allocation1 [shape = 'u32[144,128]{1,0:T(1,128)}', space=vmem, size = 0x12000, scoped, tag = 'internal scratch']
  %s0 = inlined_call_operand.vmem [shape: bf16[2,16,16,128], index: 0, kind: input, shape index: {}]
  %s1 = inlined_call_operand.vmem [shape: f32[1,128], index: 1, kind: input, shape index: {}]
  %s2 = inlined_call_operand.vmem [shape: f32[1,128], index: 2, kind: input, shape index: {}]
  %s3 = inlined_call_operand.vmem [shape: f32[2,16,16,128], index: 3, kind: output, shape index: {}]
  %s4 = sld [smem:[#allocation0]]
  $region45: #{unet_block_forward.5} parent=0
    _
  %s6 = ssub.s32 1, %s4
  %s7 = scalar_select 0, %s6, %s4
  loop: start=0, step=1, limit=6
  $region2: #{unet_block_forward.5} parent=0 // loop_pre_header
    _
  $region3: #{unet_block_forward.5} parent=0 // loop_header
    %s9 = sphi 0, %s13
    %p10 = scmp.ge.s32.totalorder %s9, 6
    %s16 = sphi 0, %s28
    %s17 = sphi 0, %s24
    %s18 = sphi 0, %s16
    %s19 = sphi 0, %s17
    %s20 = sphi 0, %s18
    %s21 = sphi 0, %s19
    %s33 = sphi 0, %s35
    %s36 = sphi 0, %s33
    %s37 = sphi 0, %s36
    %s53 = sphi 0, %s37
    %s57 = sphi 0, %s57
    %s59 = sphi 0, %s57
    %s60 = sphi 0, %s59
    %s74 = sphi 0, %s60
    %s78 = sphi 0, %s78
    %s80 = sphi 0, %s78
    %s81 = sphi 0, %s80
    %s95 = sphi 0, %s81
    %s103 = sphi 0, %s105
    %s106 = sphi 0, %s103
    %s107 = sphi 0, %s106
    %s123 = sphi 0, %s107
  $region4: #{unet_block_forward.5} parent=0 // loop_header_branch
    %12 = sbr.rel (%p10) target = $region8
  $region5: #{unet_block_forward.5} parent=0 // loop_body
    %s14 = ssub.s32 %s9, 1
    %s15 = ssub.s32 %s9, 2
    %s22 = sadd.s32 1, %s17
    %p23 = scmp.ge.s32.totalorder %s22, 2
    %s24 = scalar_select %p23, 0, %s22
    %s25 = sadd.s32 1, %s16
    %s26 = scalar_select %p23, %s25, %s16
    %p27 = scmp.ge.s32.totalorder %s26, 2
    %s28 = scalar_select %p27, 0, %s26
    %s29 = ssub.s32 %s16, %s28
    %s30 = ssub.s32 %s17, %s24
    %s31 = sor.u32 %s29, %s30
    %p32 = scmp.eq.s32.totalorder %s31, 0
    %s34 = sadd.s32 %s33, 1
    %s35 = scalar_select %p32, %s33, %s34
    %p38 = pneg %p32
    %p39 = scmp.eq.s32.totalorder %s9, 3
    %p40 = por %p38, %p39
    %p41 = scmp.ne.s32.totalorder %s33, %s36
    %p42 = scmp.eq.s32.totalorder %s9, 0
    %p43 = por %p41, %p42
    %p44 = scmp.ne.s32.totalorder %s33, %s36
    %p45 = scmp.eq.s32.totalorder %s14, 3
    %p46 = por %p44, %p45
    %p47 = scmp.ne.s32.totalorder %s36, %s37
    %p48 = scmp.eq.s32.totalorder %s14, 0
    %p49 = por %p47, %p48
    %p50 = scmp.ne.s32.totalorder %s36, %s37
    %p51 = scmp.eq.s32.totalorder %s15, 3
    %p52 = por %p50, %p51
    %p54 = scmp.ne.s32.totalorder %s37, %s53
    %p55 = scmp.eq.s32.totalorder %s15, 0
    %p56 = por %p54, %p55
    %s58 = sadd.s32 %s57, 1
    %p61 = scmp.eq.s32.totalorder %s9, 3
    %p62 = scmp.ne.s32.totalorder %s57, %s59
    %p63 = scmp.eq.s32.totalorder %s9, 0
    %p64 = por %p62, %p63
    %p65 = scmp.ne.s32.totalorder %s57, %s59
    %p66 = scmp.eq.s32.totalorder %s14, 3
    %p67 = por %p65, %p66
    %p68 = scmp.ne.s32.totalorder %s59, %s60
    %p69 = scmp.eq.s32.totalorder %s14, 0
    %p70 = por %p68, %p69
    %p71 = scmp.ne.s32.totalorder %s59, %s60
    %p72 = scmp.eq.s32.totalorder %s15, 3
    %p73 = por %p71, %p72
    %p75 = scmp.ne.s32.totalorder %s60, %s74
    %p76 = scmp.eq.s32.totalorder %s15, 0
    %p77 = por %p75, %p76
    %s79 = sadd.s32 %s78, 1
    %p82 = scmp.eq.s32.totalorder %s9, 3
    %p83 = scmp.ne.s32.totalorder %s78, %s80
    %p84 = scmp.eq.s32.totalorder %s9, 0
    %p85 = por %p83, %p84
    %p86 = scmp.ne.s32.totalorder %s78, %s80
    %p87 = scmp.eq.s32.totalorder %s14, 3
    %p88 = por %p86, %p87
    %p89 = scmp.ne.s32.totalorder %s80, %s81
    %p90 = scmp.eq.s32.totalorder %s14, 0
    %p91 = por %p89, %p90
    %p92 = scmp.ne.s32.totalorder %s80, %s81
    %p93 = scmp.eq.s32.totalorder %s15, 3
    %p94 = por %p92, %p93
    %p96 = scmp.ne.s32.totalorder %s81, %s95
    %p97 = scmp.eq.s32.totalorder %s15, 0
    %p98 = por %p96, %p97
    %s99 = ssub.s32 %s16, %s28
    %s100 = ssub.s32 %s17, %s24
    %s101 = sor.u32 %s99, %s100
    %p102 = scmp.eq.s32.totalorder %s101, 0
    %s104 = sadd.s32 %s103, 1
    %s105 = scalar_select %p102, %s103, %s104
    %p108 = pneg %p102
    %p109 = scmp.eq.s32.totalorder %s9, 3
    %p110 = por %p108, %p109
    %p111 = scmp.ne.s32.totalorder %s103, %s106
    %p112 = scmp.eq.s32.totalorder %s9, 0
    %p113 = por %p111, %p112
    %p114 = scmp.ne.s32.totalorder %s103, %s106
    %p115 = scmp.eq.s32.totalorder %s14, 3
    %p116 = por %p114, %p115
    %p117 = scmp.ne.s32.totalorder %s106, %s107
    %p118 = scmp.eq.s32.totalorder %s14, 0
    %p119 = por %p117, %p118
    %p120 = scmp.ne.s32.totalorder %s106, %s107
    %p121 = scmp.eq.s32.totalorder %s15, 3
    %p122 = por %p120, %p121
    %p124 = scmp.ne.s32.totalorder %s107, %s123
    %p125 = scmp.eq.s32.totalorder %s15, 0
    %p126 = por %p124, %p125
    %p127 = scmp.le.s32.totalorder 1, %s9
    %p128 = scmp.lt.s32.totalorder %s9, 5
    %p129 = pnand %p127, %p128
    %p130 = pneg %p129
    // Predicated region
    $region9: #{unet_block_forward.5} parent=5 // pred_check
      _
    $region10: #{unet_block_forward.5} parent=5 // pred_check_branch
      %132 = sbr.rel (%p129) target = $region12
    $region11: #{unet_block_forward.5} parent=5 // pred_region
      %s133 = ssub.s32 %s9, 1
      // Predicated region
      $region13: #{unet_block_forward.5} parent=11 // pred_check
        %p134 = pneg %p70
      $region14: #{unet_block_forward.5} parent=11 // pred_check_branch
        %136 = sbr.rel (%p134) target = $region16
      $region15: #{unet_block_forward.5} parent=11 // pred_region
        _
      $region16: #{unet_block_forward.5} parent=11 // pred_fallthru
        _
      // Predicated region
      $region17: #{unet_block_forward.5} parent=11 // pred_check
        %p137 = pneg %p91
      $region18: #{unet_block_forward.5} parent=11 // pred_check_branch
        %139 = sbr.rel (%p137) target = $region20
      $region19: #{unet_block_forward.5} parent=11 // pred_region
        _
      $region20: #{unet_block_forward.5} parent=11 // pred_fallthru
        _
    $region12: #{unet_block_forward.5} parent=5 // pred_fallthru
      _
    %p140 = scmp.lt.s32.totalorder %s9, 4
    // Predicated region
    $region21: #{unet_block_forward.5} parent=5 // pred_check
      %p141 = pneg %p140
    $region22: #{unet_block_forward.5} parent=5 // pred_check_branch
      %143 = sbr.rel (%p141) target = $region24
    $region23: #{unet_block_forward.5} parent=5 // pred_region
      // Predicated region
      $region25: #{unet_block_forward.5} parent=23 // pred_check
        %p144 = pneg %p43
      $region26: #{unet_block_forward.5} parent=23 // pred_check_branch
        %146 = sbr.rel (%p144) target = $region28
      $region27: #{unet_block_forward.5} parent=23 // pred_region
        %s147 = smul.u32 8, %s17
        %p148 = scmp.lt.s32.totalorder %s16, 1
        %s149 = scalar_select %p148, %s16, 1
        %p150 = scmp.lt.s32.totalorder %s147, 15
        %s151 = scalar_select %p150, %s147, 15
        %s152 = smul.addr %s151, 2
        %s153 = smul.addr %s149, 32
        %s154 = sadd.s32 %s152, %s153
        %s155 = smul.addr %s154, 4
        %s156 = scalar_lea.vmem %s0, %s155
        %s157 = smul.u32 8, %s17
      $region28: #{unet_block_forward.5} parent=23 // pred_fallthru
        _
    $region24: #{unet_block_forward.5} parent=5 // pred_fallthru
      _
    %p158 = scmp.le.s32.totalorder 1, %s9
    %p159 = scmp.lt.s32.totalorder %s9, 5
    %p160 = pnand %p158, %p159
    %p161 = pneg %p160
    // Predicated region
    $region29: #{unet_block_forward.5} parent=5 // pred_check
      _
    $region30: #{unet_block_forward.5} parent=5 // pred_check_branch
      %163 = sbr.rel (%p160) target = $region32
    $region31: #{unet_block_forward.5} parent=5 // pred_region
      %s164 = ssub.s32 %s9, 1
      %s165 = smul.u32 8, %s19
      %p166 = scmp.lt.s32.totalorder %s18, 1
      %s167 = scalar_select %p166, %s18, 1
      %p168 = scmp.lt.s32.totalorder %s165, 15
      %s169 = scalar_select %p168, %s165, 15
      %s170 = smul.addr %s169, 2
      %s171 = smul.addr %s167, 32
      %s172 = sadd.s32 %s170, %s171
      %s173 = smul.addr %s172, 4
      %s174 = scalar_lea.vmem %s0, %s173
      %p175 = pneg %p49
      %p176 = pneg %p46
      %p177 = pneg %p70
      %p178 = pneg %p67
      %p179 = pneg %p91
      %p180 = pneg %p88
      %p181 = pneg %p119
      %p182 = pneg %p116
      %s183 = smul.u32 8, %s19
      %p184 = scmp.lt.s32.totalorder %s18, 1
      %s185 = scalar_select %p184, %s18, 1
      %p186 = scmp.lt.s32.totalorder %s183, 15
      %s187 = scalar_select %p186, %s183, 15
      %s188 = smul.addr %s187, 2
      %s189 = smul.addr %s185, 32
      %s190 = sadd.s32 %s188, %s189
      %s191 = smul.addr %s190, 8
      %s192 = scalar_lea.vmem %s3, %s191
      %s193 = smul.u32 8, %s19
      %p194 = scmp.lt.s32.totalorder %s18, 1
      %s195 = scalar_select %p194, %s18, 1
      %p196 = scmp.lt.s32.totalorder %s193, 15
      %s197 = scalar_select %p196, %s193, 15
      %s198 = smul.addr %s197, 2
      %s199 = smul.addr %s195, 32
      %s200 = sadd.s32 %s198, %s199
      %s201 = smul.addr %s200, 4
      %s202 = scalar_lea.vmem %s0, %s201
      %s203 = smul.u32 8, %s19
      %s204 = smul.u32 8, %s19
      %p205 = scmp.lt.s32.totalorder %s18, 1
      %s206 = scalar_select %p205, %s18, 1
      %p207 = scmp.lt.s32.totalorder %s204, 15
      %s208 = scalar_select %p207, %s204, 15
      %s209 = smul.addr %s208, 2
      %s210 = smul.addr %s206, 32
      %s211 = sadd.s32 %s209, %s210
      %s212 = smul.addr %s211, 8
      %s213 = scalar_lea.vmem %s3, %s212
      %s214 = smul.u32 8, %s19
      %v215 = vld [vmem:[%s202] sm:$0xf]
      %v216 = vld [vmem:[%s202 + $0x4] sm:$0xf]
      %v217 = vld [vmem:[%s202 + $0x8] sm:$0xf]
      %v218 = vld [vmem:[%s202 + $0xc] sm:$0xf]
      %v219 = vld [vmem:[%s202 + $0x10] sm:$0xf]
      %v220 = vld [vmem:[%s202 + $0x14] sm:$0xf]
      %v221 = vld [vmem:[%s202 + $0x18] sm:$0xf]
      %v222 = vld [vmem:[%s202 + $0x1c] sm:$0xf]
      %v223 = vld [vmem:[%s202 + $0x20] sm:$0xf]
      %v224 = vld [vmem:[%s202 + $0x24] sm:$0xf]
      %v225 = vld [vmem:[%s202 + $0x28] sm:$0xf]
      %v226 = vld [vmem:[%s202 + $0x2c] sm:$0xf]
      %v227 = vld [vmem:[%s202 + $0x30] sm:$0xf]
      %v228 = vld [vmem:[%s202 + $0x34] sm:$0xf]
      %v229 = vld [vmem:[%s202 + $0x38] sm:$0xf]
      %v230 = vld [vmem:[%s202 + $0x3c] sm:$0xf]
      %v231 = vunpack.c.l.bf16 %v215
      %v232 = vunpack.c.l.bf16 %v216
      %v233 = vunpack.c.l.bf16 %v217
      %v234 = vunpack.c.l.bf16 %v218
      %v235 = vunpack.c.l.bf16 %v219
      %v236 = vunpack.c.l.bf16 %v220
      %v237 = vunpack.c.l.bf16 %v221
      %v238 = vunpack.c.l.bf16 %v222
      %v239 = vunpack.c.l.bf16 %v223
      %v240 = vunpack.c.l.bf16 %v224
      %v241 = vunpack.c.l.bf16 %v225
      %v242 = vunpack.c.l.bf16 %v226
      %v243 = vunpack.c.l.bf16 %v227
      %v244 = vunpack.c.l.bf16 %v228
      %v245 = vunpack.c.l.bf16 %v229
      %v246 = vunpack.c.l.bf16 %v230
      %v247 = vld [vmem:[%s1] sm:$0x1]
      %v249 = vlaneseq
      %v250 = vshrl.u32 %v249, 7
      %v251 = vsub.s32 0, %v250
      %v252 = vrot.slane %v247, %v251
      %v254 = vmul.f32 %v231, %v252
      %v255 = vmul.f32 %v232, %v252
      %v256 = vmul.f32 %v233, %v252
      %v257 = vmul.f32 %v234, %v252
      %v258 = vmul.f32 %v235, %v252
      %v259 = vmul.f32 %v236, %v252
      %v260 = vmul.f32 %v237, %v252
      %v261 = vmul.f32 %v238, %v252
      %v262 = vmul.f32 %v239, %v252
      %v263 = vmul.f32 %v240, %v252
      %v264 = vmul.f32 %v241, %v252
      %v265 = vmul.f32 %v242, %v252
      %v266 = vmul.f32 %v243, %v252
      %v267 = vmul.f32 %v244, %v252
      %v268 = vmul.f32 %v245, %v252
      %v269 = vmul.f32 %v246, %v252
      %v270 = vld [vmem:[%s2] sm:$0x1]
      %v272 = vlaneseq
      %v273 = vshrl.u32 %v272, 7
      %v274 = vsub.s32 0, %v273
      %v275 = vrot.slane %v270, %v274
      %v277 = vadd.f32 %v254, %v275
      %v278 = vadd.f32 %v255, %v275
      %v279 = vadd.f32 %v256, %v275
      %v280 = vadd.f32 %v257, %v275
      %v281 = vadd.f32 %v258, %v275
      %v282 = vadd.f32 %v259, %v275
      %v283 = vadd.f32 %v260, %v275
      %v284 = vadd.f32 %v261, %v275
      %v285 = vadd.f32 %v262, %v275
      %v286 = vadd.f32 %v263, %v275
      %v287 = vadd.f32 %v264, %v275
      %v288 = vadd.f32 %v265, %v275
      %v289 = vadd.f32 %v266, %v275
      %v290 = vadd.f32 %v267, %v275
      %v291 = vadd.f32 %v268, %v275
      %v292 = vadd.f32 %v269, %v275
      %v293 = vmax.f32 %v277, 0.0
      %v294 = vmax.f32 %v278, 0.0
      %v295 = vmax.f32 %v279, 0.0
      %v296 = vmax.f32 %v280, 0.0
      %v297 = vmax.f32 %v281, 0.0
      %v298 = vmax.f32 %v282, 0.0
      %v299 = vmax.f32 %v283, 0.0
      %v300 = vmax.f32 %v284, 0.0
      %v301 = vmax.f32 %v285, 0.0
      %v302 = vmax.f32 %v286, 0.0
      %v303 = vmax.f32 %v287, 0.0
      %v304 = vmax.f32 %v288, 0.0
      %v305 = vmax.f32 %v289, 0.0
      %v306 = vmax.f32 %v290, 0.0
      %v307 = vmax.f32 %v291, 0.0
      %v308 = vmax.f32 %v292, 0.0
      %309 = vst [vmem:[%s213] sm:$0xff] %v293
      %310 = vst [vmem:[%s213 + $0x8] sm:$0xff] %v294
      %311 = vst [vmem:[%s213 + $0x10] sm:$0xff] %v295
      %312 = vst [vmem:[%s213 + $0x18] sm:$0xff] %v296
      %313 = vst [vmem:[%s213 + $0x20] sm:$0xff] %v297
      %314 = vst [vmem:[%s213 + $0x28] sm:$0xff] %v298
      %315 = vst [vmem:[%s213 + $0x30] sm:$0xff] %v299
      %316 = vst [vmem:[%s213 + $0x38] sm:$0xff] %v300
      %317 = vst [vmem:[%s213 + $0x40] sm:$0xff] %v301
      %318 = vst [vmem:[%s213 + $0x48] sm:$0xff] %v302
      %319 = vst [vmem:[%s213 + $0x50] sm:$0xff] %v303
      %320 = vst [vmem:[%s213 + $0x58] sm:$0xff] %v304
      %321 = vst [vmem:[%s213 + $0x60] sm:$0xff] %v305
      %322 = vst [vmem:[%s213 + $0x68] sm:$0xff] %v306
      %323 = vst [vmem:[%s213 + $0x70] sm:$0xff] %v307
      %324 = vst [vmem:[%s213 + $0x78] sm:$0xff] %v308
      %s325 = smul.u32 8, %s19
      %p326 = scmp.lt.s32.totalorder %s18, 1
      %s327 = scalar_select %p326, %s18, 1
      %p328 = scmp.lt.s32.totalorder %s325, 15
      %s329 = scalar_select %p328, %s325, 15
      %s330 = smul.addr %s329, 2
      %s331 = smul.addr %s327, 32
      %s332 = sadd.s32 %s330, %s331
      %s333 = smul.addr %s332, 8
      %s334 = scalar_lea.vmem %s3, %s333
      // Predicated region
      $region33: #{unet_block_forward.5} parent=31 // pred_check
        %p335 = pneg %p116
      $region34: #{unet_block_forward.5} parent=31 // pred_check_branch
        %337 = sbr.rel (%p335) target = $region36
      $region35: #{unet_block_forward.5} parent=31 // pred_region
        %s338 = smul.u32 8, %s19
      $region36: #{unet_block_forward.5} parent=31 // pred_fallthru
        _
    $region32: #{unet_block_forward.5} parent=5 // pred_fallthru
      _
    %p339 = scmp.le.s32.totalorder 2, %s9
    // Predicated region
    $region37: #{unet_block_forward.5} parent=5 // pred_check
      %p340 = pneg %p339
    $region38: #{unet_block_forward.5} parent=5 // pred_check_branch
      %342 = sbr.rel (%p340) target = $region40
    $region39: #{unet_block_forward.5} parent=5 // pred_region
      %s343 = ssub.s32 %s9, 2
      // Predicated region
      $region41: #{unet_block_forward.5} parent=39 // pred_check
        %p344 = pneg %p122
      $region42: #{unet_block_forward.5} parent=39 // pred_check_branch
        %346 = sbr.rel (%p344) target = $region44
      $region43: #{unet_block_forward.5} parent=39 // pred_region
        %s347 = smul.u32 8, %s21
        %p348 = scmp.lt.s32.totalorder %s20, 1
        %s349 = scalar_select %p348, %s20, 1
        %p350 = scmp.lt.s32.totalorder %s347, 15
        %s351 = scalar_select %p350, %s347, 15
        %s352 = smul.addr %s351, 2
        %s353 = smul.addr %s349, 32
        %s354 = sadd.s32 %s352, %s353
        %s355 = smul.addr %s354, 8
        %s356 = scalar_lea.vmem %s3, %s355
      $region44: #{unet_block_forward.5} parent=39 // pred_fallthru
        _
    $region40: #{unet_block_forward.5} parent=5 // pred_fallthru
      _
  $region6: #{unet_block_forward.5} parent=0 // loop_footer
    %s13 = sadd.s32 1, %s9
  $region7: #{unet_block_forward.5} parent=0 // loop_footer_branch
    %8 = sbr.rel target = $region3
  $region8: #{unet_block_forward.5} parent=0 // loop_exit
    _

// kernel: unet_block_forward.3
$region0: #{unet_block_forward.3}
  #allocation0 [shape = 'u32[]', space=smem, size = 0x4, offset = 0x4, fixed_abs, tag = 'smem constant byte address 0x4 - core index']
  #allocation1 [shape = 'u32[144,128]{1,0:T(1,128)}', space=vmem, size = 0x12000, scoped, tag = 'internal scratch']
  #allocation2 [shape = 'bf16[2,16,128]{2,1,0:T(16,128)(2,1)}', space=vmem, size = 0x2000, scoped, tag = 'scratch operand']
  #allocation3 [shape = 's32[2]{0}', space=sflag, size = 0x8, scoped, tag = 'scratch operand']
  #allocation4 [shape = 's32[]', space=sflag, size = 0x4, offset = 0, fixed_abs, tag = 'sflag constant byte address 0x0 - dummy sync flag']
  #allocation5 [shape = 's32[]', space=sflag, size = 0x4, offset = 0, fixed_abs, tag = 'sflag constant byte address 0x0 - dummy sync flag']
  %s0 = inlined_call_operand.vmem [shape: bf16[2,16,16,128], index: 0, kind: input, shape index: {}, may-alias: {0,1}]
  %s1 = inlined_call_operand.vmem [shape: bf16[2,16,16,128], index: 1, kind: input, shape index: {}, may-alias: {0,1}]
  %s2 = inlined_call_operand.vmem [shape: f32[1,128], index: 2, kind: input, shape index: {}]
  %s3 = inlined_call_operand.vmem [shape: f32[1,128], index: 3, kind: input, shape index: {}]
  %s4 = inlined_call_operand.vmem [shape: bf16[3,128,128], index: 4, kind: input, shape index: {}]
  %s5 = inlined_call_operand.vmem [shape: f32[1,128], index: 5, kind: input, shape index: {}]
  %s6 = inlined_call_operand.vmem [shape: bf16[2,16,16,128], index: 6, kind: output, shape index: {0}]
  %s7 = inlined_call_operand.vmem [shape: f32[2,2,2,128], index: 7, kind: output, shape index: {1}]
  %8 = xla_tuple %s6, %s7
  %s9 = sld [smem:[#allocation0]]
  $region153: #{unet_block_forward.3} parent=0
    _
  %s11 = ssub.s32 1, %s9
  %s12 = scalar_select 0, %s11, %s9
  loop: start=0, step=1, limit=6
  $region2: #{unet_block_forward.3} parent=0 // loop_pre_header
    _
  $region3: #{unet_block_forward.3} parent=0 // loop_header
    %s14 = sphi 0, %s18
    %p15 = scmp.ge.s32.totalorder %s14, 6
    %s21 = sphi 0, %s33
    %s22 = sphi 0, %s29
    %s23 = sphi 0, %s21
    %s24 = sphi 0, %s22
    %s25 = sphi 0, %s23
    %s26 = sphi 0, %s24
    %s38 = sphi 0, %s40
    %s41 = sphi 0, %s38
    %s42 = sphi 0, %s41
    %s58 = sphi 0, %s42
    %s62 = sphi 0, %s62
    %s64 = sphi 0, %s62
    %s65 = sphi 0, %s64
    %s79 = sphi 0, %s65
    %s83 = sphi 0, %s83
    %s85 = sphi 0, %s83
    %s86 = sphi 0, %s85
    %s100 = sphi 0, %s86
    %s104 = sphi 0, %s104
    %s106 = sphi 0, %s104
    %s107 = sphi 0, %s106
    %s121 = sphi 0, %s107
    %s125 = sphi 0, %s125
    %s127 = sphi 0, %s125
    %s128 = sphi 0, %s127
    %s142 = sphi 0, %s128
    %s150 = sphi 0, %s152
    %s153 = sphi 0, %s150
    %s154 = sphi 0, %s153
    %s170 = sphi 0, %s154
    %s178 = sphi 0, %s180
    %s181 = sphi 0, %s178
    %s182 = sphi 0, %s181
    %s198 = sphi 0, %s182
  $region4: #{unet_block_forward.3} parent=0 // loop_header_branch
    %17 = sbr.rel (%p15) target = $region8
  $region5: #{unet_block_forward.3} parent=0 // loop_body
    %s19 = ssub.s32 %s14, 1
    %s20 = ssub.s32 %s14, 2
    %s27 = sadd.s32 1, %s22
    %p28 = scmp.ge.s32.totalorder %s27, 2
    %s29 = scalar_select %p28, 0, %s27
    %s30 = sadd.s32 1, %s21
    %s31 = scalar_select %p28, %s30, %s21
    %p32 = scmp.ge.s32.totalorder %s31, 2
    %s33 = scalar_select %p32, 0, %s31
    %s34 = ssub.s32 %s21, %s33
    %s35 = ssub.s32 %s22, %s29
    %s36 = sor.u32 %s34, %s35
    %p37 = scmp.eq.s32.totalorder %s36, 0
    %s39 = sadd.s32 %s38, 1
    %s40 = scalar_select %p37, %s38, %s39
    %p43 = pneg %p37
    %p44 = scmp.eq.s32.totalorder %s14, 3
    %p45 = por %p43, %p44
    %p46 = scmp.ne.s32.totalorder %s38, %s41
    %p47 = scmp.eq.s32.totalorder %s14, 0
    %p48 = por %p46, %p47
    %p49 = scmp.ne.s32.totalorder %s38, %s41
    %p50 = scmp.eq.s32.totalorder %s19, 3
    %p51 = por %p49, %p50
    %p52 = scmp.ne.s32.totalorder %s41, %s42
    %p53 = scmp.eq.s32.totalorder %s19, 0
    %p54 = por %p52, %p53
    %p55 = scmp.ne.s32.totalorder %s41, %s42
    %p56 = scmp.eq.s32.totalorder %s20, 3
    %p57 = por %p55, %p56
    %p59 = scmp.ne.s32.totalorder %s42, %s58
    %p60 = scmp.eq.s32.totalorder %s20, 0
    %p61 = por %p59, %p60
    %s63 = sadd.s32 %s62, 1
    %p66 = scmp.eq.s32.totalorder %s14, 3
    %p67 = scmp.ne.s32.totalorder %s62, %s64
    %p68 = scmp.eq.s32.totalorder %s14, 0
    %p69 = por %p67, %p68
    %p70 = scmp.ne.s32.totalorder %s62, %s64
    %p71 = scmp.eq.s32.totalorder %s19, 3
    %p72 = por %p70, %p71
    %p73 = scmp.ne.s32.totalorder %s64, %s65
    %p74 = scmp.eq.s32.totalorder %s19, 0
    %p75 = por %p73, %p74
    %p76 = scmp.ne.s32.totalorder %s64, %s65
    %p77 = scmp.eq.s32.totalorder %s20, 3
    %p78 = por %p76, %p77
    %p80 = scmp.ne.s32.totalorder %s65, %s79
    %p81 = scmp.eq.s32.totalorder %s20, 0
    %p82 = por %p80, %p81
    %s84 = sadd.s32 %s83, 1
    %p87 = scmp.eq.s32.totalorder %s14, 3
    %p88 = scmp.ne.s32.totalorder %s83, %s85
    %p89 = scmp.eq.s32.totalorder %s14, 0
    %p90 = por %p88, %p89
    %p91 = scmp.ne.s32.totalorder %s83, %s85
    %p92 = scmp.eq.s32.totalorder %s19, 3
    %p93 = por %p91, %p92
    %p94 = scmp.ne.s32.totalorder %s85, %s86
    %p95 = scmp.eq.s32.totalorder %s19, 0
    %p96 = por %p94, %p95
    %p97 = scmp.ne.s32.totalorder %s85, %s86
    %p98 = scmp.eq.s32.totalorder %s20, 3
    %p99 = por %p97, %p98
    %p101 = scmp.ne.s32.totalorder %s86, %s100
    %p102 = scmp.eq.s32.totalorder %s20, 0
    %p103 = por %p101, %p102
    %s105 = sadd.s32 %s104, 1
    %p108 = scmp.eq.s32.totalorder %s14, 3
    %p109 = scmp.ne.s32.totalorder %s104, %s106
    %p110 = scmp.eq.s32.totalorder %s14, 0
    %p111 = por %p109, %p110
    %p112 = scmp.ne.s32.totalorder %s104, %s106
    %p113 = scmp.eq.s32.totalorder %s19, 3
    %p114 = por %p112, %p113
    %p115 = scmp.ne.s32.totalorder %s106, %s107
    %p116 = scmp.eq.s32.totalorder %s19, 0
    %p117 = por %p115, %p116
    %p118 = scmp.ne.s32.totalorder %s106, %s107
    %p119 = scmp.eq.s32.totalorder %s20, 3
    %p120 = por %p118, %p119
    %p122 = scmp.ne.s32.totalorder %s107, %s121
    %p123 = scmp.eq.s32.totalorder %s20, 0
    %p124 = por %p122, %p123
    %s126 = sadd.s32 %s125, 1
    %p129 = scmp.eq.s32.totalorder %s14, 3
    %p130 = scmp.ne.s32.totalorder %s125, %s127
    %p131 = scmp.eq.s32.totalorder %s14, 0
    %p132 = por %p130, %p131
    %p133 = scmp.ne.s32.totalorder %s125, %s127
    %p134 = scmp.eq.s32.totalorder %s19, 3
    %p135 = por %p133, %p134
    %p136 = scmp.ne.s32.totalorder %s127, %s128
    %p137 = scmp.eq.s32.totalorder %s19, 0
    %p138 = por %p136, %p137
    %p139 = scmp.ne.s32.totalorder %s127, %s128
    %p140 = scmp.eq.s32.totalorder %s20, 3
    %p141 = por %p139, %p140
    %p143 = scmp.ne.s32.totalorder %s128, %s142
    %p144 = scmp.eq.s32.totalorder %s20, 0
    %p145 = por %p143, %p144
    %s146 = ssub.s32 %s21, %s33
    %s147 = ssub.s32 %s22, %s29
    %s148 = sor.u32 %s146, %s147
    %p149 = scmp.eq.s32.totalorder %s148, 0
    %s151 = sadd.s32 %s150, 1
    %s152 = scalar_select %p149, %s150, %s151
    %p155 = pneg %p149
    %p156 = scmp.eq.s32.totalorder %s14, 3
    %p157 = por %p155, %p156
    %p158 = scmp.ne.s32.totalorder %s150, %s153
    %p159 = scmp.eq.s32.totalorder %s14, 0
    %p160 = por %p158, %p159
    %p161 = scmp.ne.s32.totalorder %s150, %s153
    %p162 = scmp.eq.s32.totalorder %s19, 3
    %p163 = por %p161, %p162
    %p164 = scmp.ne.s32.totalorder %s153, %s154
    %p165 = scmp.eq.s32.totalorder %s19, 0
    %p166 = por %p164, %p165
    %p167 = scmp.ne.s32.totalorder %s153, %s154
    %p168 = scmp.eq.s32.totalorder %s20, 3
    %p169 = por %p167, %p168
    %p171 = scmp.ne.s32.totalorder %s154, %s170
    %p172 = scmp.eq.s32.totalorder %s20, 0
    %p173 = por %p171, %p172
    %s174 = ssub.s32 %s21, %s33
    %s175 = ssub.s32 %s22, %s29
    %s176 = sor.u32 %s174, %s175
    %p177 = scmp.eq.s32.totalorder %s176, 0
    %s179 = sadd.s32 %s178, 1
    %s180 = scalar_select %p177, %s178, %s179
    %p183 = pneg %p177
    %p184 = scmp.eq.s32.totalorder %s14, 3
    %p185 = por %p183, %p184
    %p186 = scmp.ne.s32.totalorder %s178, %s181
    %p187 = scmp.eq.s32.totalorder %s14, 0
    %p188 = por %p186, %p187
    %p189 = scmp.ne.s32.totalorder %s178, %s181
    %p190 = scmp.eq.s32.totalorder %s19, 3
    %p191 = por %p189, %p190
    %p192 = scmp.ne.s32.totalorder %s181, %s182
    %p193 = scmp.eq.s32.totalorder %s19, 0
    %p194 = por %p192, %p193
    %p195 = scmp.ne.s32.totalorder %s181, %s182
    %p196 = scmp.eq.s32.totalorder %s20, 3
    %p197 = por %p195, %p196
    %p199 = scmp.ne.s32.totalorder %s182, %s198
    %p200 = scmp.eq.s32.totalorder %s20, 0
    %p201 = por %p199, %p200
    %p202 = scmp.le.s32.totalorder 1, %s14
    %p203 = scmp.lt.s32.totalorder %s14, 5
    %p204 = pnand %p202, %p203
    %p205 = pneg %p204
    // Predicated region
    $region9: #{unet_block_forward.3} parent=5 // pred_check
      _
    $region10: #{unet_block_forward.3} parent=5 // pred_check_branch
      %207 = sbr.rel (%p204) target = $region12
    $region11: #{unet_block_forward.3} parent=5 // pred_region
      %s208 = ssub.s32 %s14, 1
      // Predicated region
      $region13: #{unet_block_forward.3} parent=11 // pred_check
        %p209 = pneg %p75
      $region14: #{unet_block_forward.3} parent=11 // pred_check_branch
        %211 = sbr.rel (%p209) target = $region16
      $region15: #{unet_block_forward.3} parent=11 // pred_region
        _
      $region16: #{unet_block_forward.3} parent=11 // pred_fallthru
        _
      // Predicated region
      $region17: #{unet_block_forward.3} parent=11 // pred_check
        %p212 = pneg %p96
      $region18: #{unet_block_forward.3} parent=11 // pred_check_branch
        %214 = sbr.rel (%p212) target = $region20
      $region19: #{unet_block_forward.3} parent=11 // pred_region
        _
      $region20: #{unet_block_forward.3} parent=11 // pred_fallthru
        _
      // Predicated region
      $region21: #{unet_block_forward.3} parent=11 // pred_check
        %p215 = pneg %p117
      $region22: #{unet_block_forward.3} parent=11 // pred_check_branch
        %217 = sbr.rel (%p215) target = $region24
      $region23: #{unet_block_forward.3} parent=11 // pred_region
        _
      $region24: #{unet_block_forward.3} parent=11 // pred_fallthru
        _
      // Predicated region
      $region25: #{unet_block_forward.3} parent=11 // pred_check
        %p218 = pneg %p138
      $region26: #{unet_block_forward.3} parent=11 // pred_check_branch
        %220 = sbr.rel (%p218) target = $region28
      $region27: #{unet_block_forward.3} parent=11 // pred_region
        _
      $region28: #{unet_block_forward.3} parent=11 // pred_fallthru
        _
    $region12: #{unet_block_forward.3} parent=5 // pred_fallthru
      _
    %p221 = scmp.lt.s32.totalorder %s14, 4
    // Predicated region
    $region29: #{unet_block_forward.3} parent=5 // pred_check
      %p222 = pneg %p221
    $region30: #{unet_block_forward.3} parent=5 // pred_check_branch
      %224 = sbr.rel (%p222) target = $region32
    $region31: #{unet_block_forward.3} parent=5 // pred_region
      // Predicated region
      $region33: #{unet_block_forward.3} parent=31 // pred_check
        %p225 = pneg %p48
      $region34: #{unet_block_forward.3} parent=31 // pred_check_branch
        %227 = sbr.rel (%p225) target = $region36
      $region35: #{unet_block_forward.3} parent=31 // pred_region
        %s228 = smul.u32 8, %s22
        %p229 = scmp.lt.s32.totalorder %s21, 1
        %s230 = scalar_select %p229, %s21, 1
        %p231 = scmp.lt.s32.totalorder %s228, 15
        %s232 = scalar_select %p231, %s228, 15
        %s233 = smul.addr %s232, 2
        %s234 = smul.addr %s230, 32
        %s235 = sadd.s32 %s233, %s234
        %s236 = smul.addr %s235, 4
        %s237 = scalar_lea.vmem %s0, %s236
        %s238 = smul.u32 8, %s22
      $region36: #{unet_block_forward.3} parent=31 // pred_fallthru
        _
    $region32: #{unet_block_forward.3} parent=5 // pred_fallthru
      _
    %p239 = scmp.le.s32.totalorder 1, %s14
    %p240 = scmp.lt.s32.totalorder %s14, 5
    %p241 = pnand %p239, %p240
    %p242 = pneg %p241
    // Predicated region
    $region37: #{unet_block_forward.3} parent=5 // pred_check
      _
    $region38: #{unet_block_forward.3} parent=5 // pred_check_branch
      %244 = sbr.rel (%p241) target = $region40
    $region39: #{unet_block_forward.3} parent=5 // pred_region
      %s245 = ssub.s32 %s14, 1
      %s246 = smul.u32 8, %s24
      %p247 = scmp.lt.s32.totalorder %s23, 1
      %s248 = scalar_select %p247, %s23, 1
      %p249 = scmp.lt.s32.totalorder %s246, 15
      %s250 = scalar_select %p249, %s246, 15
      %s251 = smul.addr %s250, 2
      %s252 = smul.addr %s248, 32
      %s253 = sadd.s32 %s251, %s252
      %s254 = smul.addr %s253, 4
      %s255 = scalar_lea.vmem %s0, %s254
      %p256 = pneg %p54
      %p257 = pneg %p51
      %p258 = pneg %p75
      %p259 = pneg %p72
      %p260 = pneg %p96
      %p261 = pneg %p93
      %p262 = pneg %p117
      %p263 = pneg %p114
      %p264 = pneg %p138
      %p265 = pneg %p135
      %p266 = pneg %p166
      %p267 = pneg %p163
      %s268 = smul.u32 8, %s24
      %p269 = scmp.lt.s32.totalorder %s23, 1
      %s270 = scalar_select %p269, %s23, 1
      %p271 = scmp.lt.s32.totalorder %s268, 15
      %s272 = scalar_select %p271, %s268, 15
      %s273 = smul.addr %s272, 2
      %s274 = smul.addr %s270, 32
      %s275 = sadd.s32 %s273, %s274
      %s276 = smul.addr %s275, 4
      %s277 = scalar_lea.vmem %s6, %s276
      %p278 = pneg %p194
      %p279 = pneg %p191
      %p280 = scmp.lt.s32.totalorder %s23, 1
      %s281 = scalar_select %p280, %s23, 1
      %p282 = scmp.lt.s32.totalorder %s24, 1
      %s283 = scalar_select %p282, %s24, 1
      %s284 = smul.addr %s281, 2
      %s285 = sadd.s32 %s283, %s284
      %s286 = smul.addr %s285, 2
      %s287 = scalar_lea.vmem %s7, %s286
      %s288 = smul.u32 8, %s24
      %p289 = scmp.lt.s32.totalorder %s23, 1
      %s290 = scalar_select %p289, %s23, 1
      %p291 = scmp.lt.s32.totalorder %s288, 15
      %s292 = scalar_select %p291, %s288, 15
      %s293 = smul.addr %s292, 2
      %s294 = smul.addr %s290, 32
      %s295 = sadd.s32 %s293, %s294
      %s296 = smul.addr %s295, 4
      %s297 = scalar_lea.vmem %s0, %s296
      %s298 = smul.u32 8, %s24
      %s299 = smul.u32 8, %s24
      %p300 = scmp.lt.s32.totalorder %s23, 1
      %s301 = scalar_select %p300, %s23, 1
      %p302 = scmp.lt.s32.totalorder %s299, 15
      %s303 = scalar_select %p302, %s299, 15
      %s304 = smul.addr %s303, 2
      %s305 = smul.addr %s301, 32
      %s306 = sadd.s32 %s304, %s305
      %s307 = smul.addr %s306, 4
      %s308 = scalar_lea.vmem %s6, %s307
      %s309 = smul.u32 8, %s24
      %p310 = scmp.lt.s32.totalorder %s23, 1
      %s311 = scalar_select %p310, %s23, 1
      %p312 = scmp.lt.s32.totalorder %s24, 1
      %s313 = scalar_select %p312, %s24, 1
      %s314 = smul.addr %s311, 2
      %s315 = sadd.s32 %s313, %s314
      %s316 = smul.addr %s315, 2
      %s317 = scalar_lea.vmem %s7, %s316
      %s319 = smul.u32 %s24, 8
      %p320 = scmp.gt.s32.totalorder %s24, 0
      // Predicated region
      $region41: #{unet_block_forward.3} parent=39 // pred_check
        %p321 = pneg %p320
      $region42: #{unet_block_forward.3} parent=39 // pred_check_branch
        %323 = sbr.rel (%p321) target = $region44
      $region43: #{unet_block_forward.3} parent=39 // pred_region
        %s324 = ssub.s32 %s319, 1
        %s325 = smul.u32 %s324, 2
        %s326 = smul.u32 %s23, 32
        %s327 = sadd.s32 %s325, %s326
        %s328 = smul.addr %s327, 4
        %s329 = scalar_lea.vmem %s1, %s328
        %p331 = scmp.lt.u32.totalorder 8, 8
        %p332 = pneg %p331
        // Predicated region
        $region45: #{unet_block_forward.3} parent=43 // pred_check
          _
        $region46: #{unet_block_forward.3} parent=43 // pred_check_branch
          %334 = sbr.rel (%p331) target = $region48
        $region47: #{unet_block_forward.3} parent=43 // pred_region
          %s349 = sand.u32 8, 7
          %p350 = scmp.eq.s32.totalorder %s349, 0
          // Predicated region
          $region60: #{unet_block_forward.3} parent=47 // pred_check
            %p351 = pneg %p350
          $region61: #{unet_block_forward.3} parent=47 // pred_check_branch
            %353 = sbr.rel (%p351) target = $region63
          $region62: #{unet_block_forward.3} parent=47 // pred_region
            loop: start=0, step=1, limit=1
            $region64: #{unet_block_forward.3} parent=62 // loop_pre_header
              _
            $region65: #{unet_block_forward.3} parent=62 // loop_header
              %s355 = sphi 0, %s359
              %p356 = scmp.ge.s32.totalorder %s355, 1
              %s360 = sphi %s329, %s329
              %s361 = sphi [#allocation2], [#allocation2]
            $region66: #{unet_block_forward.3} parent=62 // loop_header_branch
              %358 = sbr.rel (%p356) target = $region70
            $region67: #{unet_block_forward.3} parent=62 // loop_body
              %v362 = vld [vmem:[%s360] sm:$0xff]
              %363 = vst [vmem:[%s361] sm:$0xff] %v362
            $region68: #{unet_block_forward.3} parent=62 // loop_footer
              %s359 = sadd.s32 1, %s355
            $region69: #{unet_block_forward.3} parent=62 // loop_footer_branch
              %354 = sbr.rel target = $region65
            $region70: #{unet_block_forward.3} parent=62 // loop_exit
              _
          $region63: #{unet_block_forward.3} parent=47 // pred_fallthru
            _
          %p364 = pneg %p350
          // Predicated region
          $region71: #{unet_block_forward.3} parent=47 // pred_check
            _
          $region72: #{unet_block_forward.3} parent=47 // pred_check_branch
            %366 = sbr.rel (%p350) target = $region74
          $region73: #{unet_block_forward.3} parent=47 // pred_region
            %s367 = sand.u32 8, 7
          $region74: #{unet_block_forward.3} parent=47 // pred_fallthru
            _
        $region48: #{unet_block_forward.3} parent=43 // pred_fallthru
          _
        // Predicated region
        $region49: #{unet_block_forward.3} parent=43 // pred_check
          %p335 = pneg %p331
        $region50: #{unet_block_forward.3} parent=43 // pred_check_branch
          %337 = sbr.rel (%p335) target = $region52
        $region51: #{unet_block_forward.3} parent=43 // pred_region
          %s338 = sshllo.u32 0, 8
          loop: start=0, step=1, limit=1
          $region53: #{unet_block_forward.3} parent=51 // loop_pre_header
            _
          $region54: #{unet_block_forward.3} parent=51 // loop_header
            %s340 = sphi 0, %s344
            %p341 = scmp.ge.s32.totalorder %s340, 1
            %s345 = sphi %s329, %s329
            %s346 = sphi [#allocation2], [#allocation2]
          $region55: #{unet_block_forward.3} parent=51 // loop_header_branch
            %343 = sbr.rel (%p341) target = $region59
          $region56: #{unet_block_forward.3} parent=51 // loop_body
            %v347 = vld [vmem:[%s345] sm:%s338]
            %348 = vst [vmem:[%s346] sm:%s338] %v347
          $region57: #{unet_block_forward.3} parent=51 // loop_footer
            %s344 = sadd.s32 1, %s340
          $region58: #{unet_block_forward.3} parent=51 // loop_footer_branch
            %339 = sbr.rel target = $region54
          $region59: #{unet_block_forward.3} parent=51 // loop_exit
            _
        $region52: #{unet_block_forward.3} parent=43 // pred_fallthru
          _
        // Predicated region
        $region75: #{unet_block_forward.3} parent=43 // pred_check
          _
        $region76: #{unet_block_forward.3} parent=43 // pred_check_branch
          %370 = sbr.rel (0) target = $region78
        $region77: #{unet_block_forward.3} parent=43 // pred_region
          %371 = vsyncadd [#allocation3], 128
        $region78: #{unet_block_forward.3} parent=43 // pred_fallthru
          _
      $region44: #{unet_block_forward.3} parent=39 // pred_fallthru
        _
      %p372 = scmp.eq.s32.totalorder %s24, 0
      // Predicated region
      $region79: #{unet_block_forward.3} parent=39 // pred_check
        %p373 = pneg %p372
      $region80: #{unet_block_forward.3} parent=39 // pred_check_branch
        %375 = sbr.rel (%p373) target = $region82
      $region81: #{unet_block_forward.3} parent=39 // pred_region
        %376 = vst [vmem:[#allocation2] sm:$0xff] 0
      $region82: #{unet_block_forward.3} parent=39 // pred_fallthru
        _
      %p377 = scmp.lt.s32.totalorder %s24, 1
      // Predicated region
      $region83: #{unet_block_forward.3} parent=39 // pred_check
        %p378 = pneg %p377
      $region84: #{unet_block_forward.3} parent=39 // pred_check_branch
        %380 = sbr.rel (%p378) target = $region86
      $region85: #{unet_block_forward.3} parent=39 // pred_region
        %s381 = sadd.s32 %s319, 8
        %s382 = smul.u32 %s381, 2
        %s383 = smul.u32 %s23, 32
        %s384 = sadd.s32 %s382, %s383
        %s385 = smul.addr %s384, 4
        %s386 = scalar_lea.vmem %s1, %s385
        %s387 = scalar_lea.vmem [#allocation2], 8
        %s388 = scalar_lea.sflag [#allocation3], 1
        %p390 = scmp.lt.u32.totalorder 8, 8
        %p391 = pneg %p390
        // Predicated region
        $region87: #{unet_block_forward.3} parent=85 // pred_check
          _
        $region88: #{unet_block_forward.3} parent=85 // pred_check_branch
          %393 = sbr.rel (%p390) target = $region90
        $region89: #{unet_block_forward.3} parent=85 // pred_region
          %s408 = sand.u32 8, 7
          %p409 = scmp.eq.s32.totalorder %s408, 0
          // Predicated region
          $region102: #{unet_block_forward.3} parent=89 // pred_check
            %p410 = pneg %p409
          $region103: #{unet_block_forward.3} parent=89 // pred_check_branch
            %412 = sbr.rel (%p410) target = $region105
          $region104: #{unet_block_forward.3} parent=89 // pred_region
            loop: start=0, step=1, limit=1
            $region106: #{unet_block_forward.3} parent=104 // loop_pre_header
              _
            $region107: #{unet_block_forward.3} parent=104 // loop_header
              %s414 = sphi 0, %s418
              %p415 = scmp.ge.s32.totalorder %s414, 1
              %s419 = sphi %s386, %s386
              %s420 = sphi %s387, %s387
            $region108: #{unet_block_forward.3} parent=104 // loop_header_branch
              %417 = sbr.rel (%p415) target = $region112
            $region109: #{unet_block_forward.3} parent=104 // loop_body
              %v421 = vld [vmem:[%s419] sm:$0xff]
              %422 = vst [vmem:[%s420] sm:$0xff] %v421
            $region110: #{unet_block_forward.3} parent=104 // loop_footer
              %s418 = sadd.s32 1, %s414
            $region111: #{unet_block_forward.3} parent=104 // loop_footer_branch
              %413 = sbr.rel target = $region107
            $region112: #{unet_block_forward.3} parent=104 // loop_exit
              _
          $region105: #{unet_block_forward.3} parent=89 // pred_fallthru
            _
          %p423 = pneg %p409
          // Predicated region
          $region113: #{unet_block_forward.3} parent=89 // pred_check
            _
          $region114: #{unet_block_forward.3} parent=89 // pred_check_branch
            %425 = sbr.rel (%p409) target = $region116
          $region115: #{unet_block_forward.3} parent=89 // pred_region
            %s426 = sand.u32 8, 7
          $region116: #{unet_block_forward.3} parent=89 // pred_fallthru
            _
        $region90: #{unet_block_forward.3} parent=85 // pred_fallthru
          _
        // Predicated region
        $region91: #{unet_block_forward.3} parent=85 // pred_check
          %p394 = pneg %p390
        $region92: #{unet_block_forward.3} parent=85 // pred_check_branch
          %396 = sbr.rel (%p394) target = $region94
        $region93: #{unet_block_forward.3} parent=85 // pred_region
          %s397 = sshllo.u32 0, 8
          loop: start=0, step=1, limit=1
          $region95: #{unet_block_forward.3} parent=93 // loop_pre_header
            _
          $region96: #{unet_block_forward.3} parent=93 // loop_header
            %s399 = sphi 0, %s403
            %p400 = scmp.ge.s32.totalorder %s399, 1
            %s404 = sphi %s386, %s386
            %s405 = sphi %s387, %s387
          $region97: #{unet_block_forward.3} parent=93 // loop_header_branch
            %402 = sbr.rel (%p400) target = $region101
          $region98: #{unet_block_forward.3} parent=93 // loop_body
            %v406 = vld [vmem:[%s404] sm:%s397]
            %407 = vst [vmem:[%s405] sm:%s397] %v406
          $region99: #{unet_block_forward.3} parent=93 // loop_footer
            %s403 = sadd.s32 1, %s399
          $region100: #{unet_block_forward.3} parent=93 // loop_footer_branch
            %398 = sbr.rel target = $region96
          $region101: #{unet_block_forward.3} parent=93 // loop_exit
            _
        $region94: #{unet_block_forward.3} parent=85 // pred_fallthru
          _
        // Predicated region
        $region117: #{unet_block_forward.3} parent=85 // pred_check
          _
        $region118: #{unet_block_forward.3} parent=85 // pred_check_branch
          %429 = sbr.rel (0) target = $region120
        $region119: #{unet_block_forward.3} parent=85 // pred_region
          %430 = vsyncadd %s388, 128
        $region120: #{unet_block_forward.3} parent=85 // pred_fallthru
          _
      $region86: #{unet_block_forward.3} parent=39 // pred_fallthru
        _
      %p431 = scmp.eq.s32.totalorder %s24, 1
      // Predicated region
      $region121: #{unet_block_forward.3} parent=39 // pred_check
        %p432 = pneg %p431
      $region122: #{unet_block_forward.3} parent=39 // pred_check_branch
        %434 = sbr.rel (%p432) target = $region124
      $region123: #{unet_block_forward.3} parent=39 // pred_region
        %s435 = scalar_lea.vmem [#allocation2], 8
        %436 = vst [vmem:[%s435] sm:$0xff] 0
      $region124: #{unet_block_forward.3} parent=39 // pred_fallthru
        _
      %v437 = vld [vmem:[%s297] sm:$0xf]
      %v438 = vld [vmem:[%s297 + $0x4] sm:$0xf]
      %v439 = vld [vmem:[%s297 + $0x8] sm:$0xf]
      %v440 = vld [vmem:[%s297 + $0xc] sm:$0xf]
      %v441 = vld [vmem:[%s297 + $0x10] sm:$0xf]
      %v442 = vld [vmem:[%s297 + $0x14] sm:$0xf]
      %v443 = vld [vmem:[%s297 + $0x18] sm:$0xf]
      %v444 = vld [vmem:[%s297 + $0x1c] sm:$0xf]
      %v445 = vld [vmem:[%s297 + $0x20] sm:$0xf]
      %v446 = vld [vmem:[%s297 + $0x24] sm:$0xf]
      %v447 = vld [vmem:[%s297 + $0x28] sm:$0xf]
      %v448 = vld [vmem:[%s297 + $0x2c] sm:$0xf]
      %v449 = vld [vmem:[%s297 + $0x30] sm:$0xf]
      %v450 = vld [vmem:[%s297 + $0x34] sm:$0xf]
      %v451 = vld [vmem:[%s297 + $0x38] sm:$0xf]
      %v452 = vld [vmem:[%s297 + $0x3c] sm:$0xf]
      // Predicated region
      $region125: #{unet_block_forward.3} parent=39 // pred_check
        %p453 = pneg %p320
      $region126: #{unet_block_forward.3} parent=39 // pred_check_branch
        %455 = sbr.rel (%p453) target = $region128
      $region127: #{unet_block_forward.3} parent=39 // pred_region
        %s456 = smul.u32 4, 1
        %s457 = smul.u32 %s456, 2
        %s458 = smul.u32 %s457, 1
        %s459 = sshll.u32 %s458, 4
        %460 = dma.done [#allocation3], %s459
      $region128: #{unet_block_forward.3} parent=39 // pred_fallthru
        _
      // Predicated region
      $region129: #{unet_block_forward.3} parent=39 // pred_check
        %p461 = pneg %p377
      $region130: #{unet_block_forward.3} parent=39 // pred_check_branch
        %463 = sbr.rel (%p461) target = $region132
      $region131: #{unet_block_forward.3} parent=39 // pred_region
        %s464 = scalar_lea.sflag [#allocation3], 1
        %s465 = smul.u32 4, 1
        %s466 = smul.u32 %s465, 2
        %s467 = smul.u32 %s466, 1
        %s468 = sshll.u32 %s467, 4
        %469 = dma.done %s464, %s468
      $region132: #{unet_block_forward.3} parent=39 // pred_fallthru
        _
      %v470 = vld [vmem:[#allocation2] sm:$0xff]
      %s471 = scalar_lea.vmem [#allocation2], 8
      %v472 = vld [vmem:[%s471] sm:$0xff]
      %v489 = vunpack.c.l.b16 %v437
      %v490 = vunpack.c.l.b16 %v438
      %v491 = vunpack.c.l.b16 %v439
      %v492 = vunpack.c.l.b16 %v440
      %v493 = vunpack.c.l.b16 %v441
      %v494 = vunpack.c.l.b16 %v442
      %v495 = vunpack.c.l.b16 %v443
      %v496 = vunpack.c.l.b16 %v444
      %v497 = vunpack.c.l.b16 %v445
      %v498 = vunpack.c.l.b16 %v446
      %v499 = vunpack.c.l.b16 %v447
      %v500 = vunpack.c.l.b16 %v448
      %v501 = vunpack.c.l.b16 %v449
      %v502 = vunpack.c.l.b16 %v450
      %v503 = vunpack.c.l.b16 %v451
      %v504 = vunpack.c.l.b16 %v452
      %v505 = vpack.c.b16 %v490, %v489
      %v506 = vpack.c.b16 %v492, %v491
      %v507 = vpack.c.b16 %v494, %v493
      %v508 = vpack.c.b16 %v496, %v495
      %v509 = vpack.c.b16 %v498, %v497
      %v510 = vpack.c.b16 %v500, %v499
      %v511 = vpack.c.b16 %v502, %v501
      %v512 = vpack.c.b16 %v504, %v503
      %v521 = vld [vmem:[%s4] sm:$0xf]
      %v522 = vld [vmem:[%s4 + $0x4] sm:$0xf]
      %v523 = vld [vmem:[%s4 + $0x8] sm:$0xf]
      %v524 = vld [vmem:[%s4 + $0xc] sm:$0xf]
      %v525 = vld [vmem:[%s4 + $0x10] sm:$0xf]
      %v526 = vld [vmem:[%s4 + $0x14] sm:$0xf]
      %v527 = vld [vmem:[%s4 + $0x18] sm:$0xf]
      %v528 = vld [vmem:[%s4 + $0x1c] sm:$0xf]
      %v529 = vld [vmem:[%s4 + $0x20] sm:$0xf]
      %v530 = vld [vmem:[%s4 + $0x24] sm:$0xf]
      %v531 = vld [vmem:[%s4 + $0x28] sm:$0xf]
      %v532 = vld [vmem:[%s4 + $0x2c] sm:$0xf]
      %v533 = vld [vmem:[%s4 + $0x30] sm:$0xf]
      %v534 = vld [vmem:[%s4 + $0x34] sm:$0xf]
      %v535 = vld [vmem:[%s4 + $0x38] sm:$0xf]
      %v536 = vld [vmem:[%s4 + $0x3c] sm:$0xf]
      %s537 = scalar_lea.vmem %s4, 64
      %v538 = vld [vmem:[%s537] sm:$0xf]
      %v539 = vld [vmem:[%s537 + $0x4] sm:$0xf]
      %v540 = vld [vmem:[%s537 + $0x8] sm:$0xf]
      %v541 = vld [vmem:[%s537 + $0xc] sm:$0xf]
      %v542 = vld [vmem:[%s537 + $0x10] sm:$0xf]
      %v543 = vld [vmem:[%s537 + $0x14] sm:$0xf]
      %v544 = vld [vmem:[%s537 + $0x18] sm:$0xf]
      %v545 = vld [vmem:[%s537 + $0x1c] sm:$0xf]
      %v546 = vld [vmem:[%s537 + $0x20] sm:$0xf]
      %v547 = vld [vmem:[%s537 + $0x24] sm:$0xf]
      %v548 = vld [vmem:[%s537 + $0x28] sm:$0xf]
      %v549 = vld [vmem:[%s537 + $0x2c] sm:$0xf]
      %v550 = vld [vmem:[%s537 + $0x30] sm:$0xf]
      %v551 = vld [vmem:[%s537 + $0x34] sm:$0xf]
      %v552 = vld [vmem:[%s537 + $0x38] sm:$0xf]
      %v553 = vld [vmem:[%s537 + $0x3c] sm:$0xf]
      %v570 = vunpack.c.l.b16 %v538
      %v571 = vunpack.c.l.b16 %v539
      %v572 = vunpack.c.l.b16 %v540
      %v573 = vunpack.c.l.b16 %v541
      %v574 = vunpack.c.l.b16 %v542
      %v575 = vunpack.c.l.b16 %v543
      %v576 = vunpack.c.l.b16 %v544
      %v577 = vunpack.c.l.b16 %v545
      %v578 = vunpack.c.l.b16 %v546
      %v579 = vunpack.c.l.b16 %v547
      %v580 = vunpack.c.l.b16 %v548
      %v581 = vunpack.c.l.b16 %v549
      %v582 = vunpack.c.l.b16 %v550
      %v583 = vunpack.c.l.b16 %v551
      %v584 = vunpack.c.l.b16 %v552
      %v585 = vunpack.c.l.b16 %v553
      %v586 = vpack.c.b16 %v571, %v570
      %v587 = vpack.c.b16 %v573, %v572
      %v588 = vpack.c.b16 %v575, %v574
      %v589 = vpack.c.b16 %v577, %v576
      %v590 = vpack.c.b16 %v579, %v578
      %v591 = vpack.c.b16 %v581, %v580
      %v592 = vpack.c.b16 %v583, %v582
      %v593 = vpack.c.b16 %v585, %v584
      %602 = vmatprep.subr.bf16.mxu0 0
      %603 = vmatpush1.bf16.msra.mxu0 %v586
      %604 = vmatprep.subr.bf16.mxu0 0
      %605 = vmatpush1.bf16.msra.mxu0 %v587
      %606 = vmatprep.subr.bf16.mxu0 0
      %607 = vmatpush1.bf16.msra.mxu0 %v588
      %608 = vmatprep.subr.bf16.mxu0 0
      %609 = vmatpush1.bf16.msra.mxu0 %v589
      %610 = vmatprep.subr.bf16.mxu0 0
      %611 = vmatpush1.bf16.msra.mxu0 %v590
      %612 = vmatprep.subr.bf16.mxu0 0
      %613 = vmatpush1.bf16.msra.mxu0 %v591
      %614 = vmatprep.subr.bf16.mxu0 0
      %615 = vmatpush1.bf16.msra.mxu0 %v592
      %616 = vmatprep.subr.bf16.mxu0 0
      %617 = vmatpush1.bf16.msra.mxu0 %v593
      %618 = vmatprep.subr.bf16.mxu0 0
      %619 = vmatpush1.bf16.msra.mxu0 0
      %620 = vmatprep.subr.bf16.mxu0 0
      %621 = vmatpush1.bf16.msra.mxu0 0
      %622 = vmatprep.subr.bf16.mxu0 0
      %623 = vmatpush1.bf16.msra.mxu0 0
      %624 = vmatprep.subr.bf16.mxu0 0
      %625 = vmatpush1.bf16.msra.mxu0 0
      %626 = vmatprep.subr.bf16.mxu0 0
      %627 = vmatpush1.bf16.msra.mxu0 0
      %628 = vmatprep.subr.bf16.mxu0 0
      %629 = vmatpush1.bf16.msra.mxu0 0
      %630 = vmatprep.subr.bf16.mxu0 0
      %631 = vmatpush1.bf16.msra.mxu0 0
      %632 = vmatprep.subr.bf16.mxu0 0
      %633 = vmatpush1.bf16.msra.mxu0 0
      %634 = vmatprep.mubr.bf16.mxu0 0
      %635 = vmatmul.mubr.bf16.gmra.mrb[0].mxu0 %v505
      %v636 = vpop.f32.mrb[0].mxu0
      %v637 = vadd.f32 0.0, %v636
      %v638 = vpop.f32.mrb[0].mxu0
      %v639 = vpop.f32.mrb[0].mxu0
      %v640 = vadd.f32 0.0, %v639
      %v641 = vpop.f32.mrb[0].mxu0
      %642 = vmatprep.mubr.bf16.mxu0 0
      %643 = vmatmul.mubr.bf16.gmra.mrb[0].mxu0 %v506
      %v644 = vpop.f32.mrb[0].mxu0
      %v645 = vadd.f32 0.0, %v644
      %v646 = vpop.f32.mrb[0].mxu0
      %v647 = vpop.f32.mrb[0].mxu0
      %v648 = vadd.f32 0.0, %v647
      %v649 = vpop.f32.mrb[0].mxu0
      %650 = vmatprep.mubr.bf16.mxu0 0
      %651 = vmatmul.mubr.bf16.gmra.mrb[0].mxu0 %v507
      %v652 = vpop.f32.mrb[0].mxu0
      %v653 = vadd.f32 0.0, %v652
      %v654 = vpop.f32.mrb[0].mxu0
      %v655 = vpop.f32.mrb[0].mxu0
      %v656 = vadd.f32 0.0, %v655
      %v657 = vpop.f32.mrb[0].mxu0
      %658 = vmatprep.mubr.bf16.mxu0 0
      %659 = vmatmul.mubr.bf16.gmra.mrb[0].mxu0 %v508
      %v660 = vpop.f32.mrb[0].mxu0
      %v661 = vadd.f32 0.0, %v660
      %v662 = vpop.f32.mrb[0].mxu0
      %v663 = vpop.f32.mrb[0].mxu0
      %v664 = vadd.f32 0.0, %v663
      %v665 = vpop.f32.mrb[0].mxu0
      %666 = vmatprep.mubr.bf16.mxu0 0
      %667 = vmatmul.mubr.bf16.gmra.mrb[0].mxu0 %v509
      %v668 = vpop.f32.mrb[0].mxu0
      %v669 = vadd.f32 0.0, %v668
      %v670 = vpop.f32.mrb[0].mxu0
      %v671 = vpop.f32.mrb[0].mxu0
      %v672 = vadd.f32 0.0, %v671
      %v673 = vpop.f32.mrb[0].mxu0
      %674 = vmatprep.mubr.bf16.mxu0 0
      %675 = vmatmul.mubr.bf16.gmra.mrb[0].mxu0 %v510
      %v676 = vpop.f32.mrb[0].mxu0
      %v677 = vadd.f32 0.0, %v676
      %v678 = vpop.f32.mrb[0].mxu0
      %v679 = vpop.f32.mrb[0].mxu0
      %v680 = vadd.f32 0.0, %v679
      %v681 = vpop.f32.mrb[0].mxu0
      %682 = vmatprep.mubr.bf16.mxu0 0
      %683 = vmatmul.mubr.bf16.gmra.mrb[0].mxu0 %v511
      %v684 = vpop.f32.mrb[0].mxu0
      %v685 = vadd.f32 0.0, %v684
      %v686 = vpop.f32.mrb[0].mxu0
      %v687 = vpop.f32.mrb[0].mxu0
      %v688 = vadd.f32 0.0, %v687
      %v689 = vpop.f32.mrb[0].mxu0
      %690 = vmatprep.mubr.bf16.mxu0 0
      %691 = vmatmul.mubr.bf16.gmra.mrb[0].mxu0 %v512
      %v692 = vpop.f32.mrb[0].mxu0
      %v693 = vadd.f32 0.0, %v692
      %v694 = vpop.f32.mrb[0].mxu0
      %v695 = vpop.f32.mrb[0].mxu0
      %v696 = vadd.f32 0.0, %v695
      %v697 = vpop.f32.mrb[0].mxu0
      %698 = vdwg.mxu0
      %v715 = vunpack.c.l.b16 %v521
      %v716 = vunpack.c.l.b16 %v522
      %v717 = vunpack.c.l.b16 %v523
      %v718 = vunpack.c.l.b16 %v524
      %v719 = vunpack.c.l.b16 %v525
      %v720 = vunpack.c.l.b16 %v526
      %v721 = vunpack.c.l.b16 %v527
      %v722 = vunpack.c.l.b16 %v528
      %v723 = vunpack.c.l.b16 %v529
      %v724 = vunpack.c.l.b16 %v530
      %v725 = vunpack.c.l.b16 %v531
      %v726 = vunpack.c.l.b16 %v532
      %v727 = vunpack.c.l.b16 %v533
      %v728 = vunpack.c.l.b16 %v534
      %v729 = vunpack.c.l.b16 %v535
      %v730 = vunpack.c.l.b16 %v536
      %v731 = vpack.c.b16 %v716, %v715
      %v732 = vpack.c.b16 %v718, %v717
      %v733 = vpack.c.b16 %v720, %v719
      %v734 = vpack.c.b16 %v722, %v721
      %v735 = vpack.c.b16 %v724, %v723
      %v736 = vpack.c.b16 %v726, %v725
      %v737 = vpack.c.b16 %v728, %v727
      %v738 = vpack.c.b16 %v730, %v729
      %747 = vmatprep.subr.bf16.mxu0 0
      %748 = vmatpush1.bf16.msra.mxu0 %v731
      %749 = vmatprep.subr.bf16.mxu0 0
      %750 = vmatpush1.bf16.msra.mxu0 %v732
      %751 = vmatprep.subr.bf16.mxu0 0
      %752 = vmatpush1.bf16.msra.mxu0 %v733
      %753 = vmatprep.subr.bf16.mxu0 0
      %754 = vmatpush1.bf16.msra.mxu0 %v734
      %755 = vmatprep.subr.bf16.mxu0 0
      %756 = vmatpush1.bf16.msra.mxu0 %v735
      %757 = vmatprep.subr.bf16.mxu0 0
      %758 = vmatpush1.bf16.msra.mxu0 %v736
      %759 = vmatprep.subr.bf16.mxu0 0
      %760 = vmatpush1.bf16.msra.mxu0 %v737
      %761 = vmatprep.subr.bf16.mxu0 0
      %762 = vmatpush1.bf16.msra.mxu0 %v738
      %763 = vmatprep.subr.bf16.mxu0 0
      %764 = vmatpush1.bf16.msra.mxu0 0
      %765 = vmatprep.subr.bf16.mxu0 0
      %766 = vmatpush1.bf16.msra.mxu0 0
      %767 = vmatprep.subr.bf16.mxu0 0
      %768 = vmatpush1.bf16.msra.mxu0 0
      %769 = vmatprep.subr.bf16.mxu0 0
      %770 = vmatpush1.bf16.msra.mxu0 0
      %771 = vmatprep.subr.bf16.mxu0 0
      %772 = vmatpush1.bf16.msra.mxu0 0
      %773 = vmatprep.subr.bf16.mxu0 0
      %774 = vmatpush1.bf16.msra.mxu0 0
      %775 = vmatprep.subr.bf16.mxu0 0
      %776 = vmatpush1.bf16.msra.mxu0 0
      %777 = vmatprep.subr.bf16.mxu0 0
      %778 = vmatpush1.bf16.msra.mxu0 0
      %779 = vmatprep.mubr.bf16.mxu0 0
      %780 = vmatmul.mubr.bf16.gmra.mrb[0].mxu0 %v470
      %v781 = vpop.f32.mrb[0].mxu0
      %v782 = vadd.f32 %v637, %v781
      %v783 = vpop.f32.mrb[0].mxu0
      %v784 = vpop.f32.mrb[0].mxu0
      %v785 = vadd.f32 %v640, %v784
      %v786 = vpop.f32.mrb[0].mxu0
      %787 = vmatprep.mubr.bf16.mxu0 0
      %788 = vmatmul.mubr.bf16.gmra.mrb[0].mxu0 %v505
      %v789 = vpop.f32.mrb[0].mxu0
      %v790 = vadd.f32 %v645, %v789
      %v791 = vpop.f32.mrb[0].mxu0
      %v792 = vpop.f32.mrb[0].mxu0
      %v793 = vadd.f32 %v648, %v792
      %v794 = vpop.f32.mrb[0].mxu0
      %795 = vmatprep.mubr.bf16.mxu0 0
      %796 = vmatmul.mubr.bf16.gmra.mrb[0].mxu0 %v506
      %v797 = vpop.f32.mrb[0].mxu0
      %v798 = vadd.f32 %v653, %v797
      %v799 = vpop.f32.mrb[0].mxu0
      %v800 = vpop.f32.mrb[0].mxu0
      %v801 = vadd.f32 %v656, %v800
      %v802 = vpop.f32.mrb[0].mxu0
      %803 = vmatprep.mubr.bf16.mxu0 0
      %804 = vmatmul.mubr.bf16.gmra.mrb[0].mxu0 %v507
      %v805 = vpop.f32.mrb[0].mxu0
      %v806 = vadd.f32 %v661, %v805
      %v807 = vpop.f32.mrb[0].mxu0
      %v808 = vpop.f32.mrb[0].mxu0
      %v809 = vadd.f32 %v664, %v808
      %v810 = vpop.f32.mrb[0].mxu0
      %811 = vmatprep.mubr.bf16.mxu0 0
      %812 = vmatmul.mubr.bf16.gmra.mrb[0].mxu0 %v508
      %v813 = vpop.f32.mrb[0].mxu0
      %v814 = vadd.f32 %v669, %v813
      %v815 = vpop.f32.mrb[0].mxu0
      %v816 = vpop.f32.mrb[0].mxu0
      %v817 = vadd.f32 %v672, %v816
      %v818 = vpop.f32.mrb[0].mxu0
      %819 = vmatprep.mubr.bf16.mxu0 0
      %820 = vmatmul.mubr.bf16.gmra.mrb[0].mxu0 %v509
      %v821 = vpop.f32.mrb[0].mxu0
      %v822 = vadd.f32 %v677, %v821
      %v823 = vpop.f32.mrb[0].mxu0
      %v824 = vpop.f32.mrb[0].mxu0
      %v825 = vadd.f32 %v680, %v824
      %v826 = vpop.f32.mrb[0].mxu0
      %827 = vmatprep.mubr.bf16.mxu0 0
      %828 = vmatmul.mubr.bf16.gmra.mrb[0].mxu0 %v510
      %v829 = vpop.f32.mrb[0].mxu0
      %v830 = vadd.f32 %v685, %v829
      %v831 = vpop.f32.mrb[0].mxu0
      %v832 = vpop.f32.mrb[0].mxu0
      %v833 = vadd.f32 %v688, %v832
      %v834 = vpop.f32.mrb[0].mxu0
      %835 = vmatprep.mubr.bf16.mxu0 0
      %836 = vmatmul.mubr.bf16.gmra.mrb[0].mxu0 %v511
      %v837 = vpop.f32.mrb[0].mxu0
      %v838 = vadd.f32 %v693, %v837
      %v839 = vpop.f32.mrb[0].mxu0
      %v840 = vpop.f32.mrb[0].mxu0
      %v841 = vadd.f32 %v696, %v840
      %v842 = vpop.f32.mrb[0].mxu0
      %843 = vdwg.mxu0
      %s844 = scalar_lea.vmem %s4, 128
      %v845 = vld [vmem:[%s844] sm:$0xf]
      %v846 = vld [vmem:[%s844 + $0x4] sm:$0xf]
      %v847 = vld [vmem:[%s844 + $0x8] sm:$0xf]
      %v848 = vld [vmem:[%s844 + $0xc] sm:$0xf]
      %v849 = vld [vmem:[%s844 + $0x10] sm:$0xf]
      %v850 = vld [vmem:[%s844 + $0x14] sm:$0xf]
      %v851 = vld [vmem:[%s844 + $0x18] sm:$0xf]
      %v852 = vld [vmem:[%s844 + $0x1c] sm:$0xf]
      %v853 = vld [vmem:[%s844 + $0x20] sm:$0xf]
      %v854 = vld [vmem:[%s844 + $0x24] sm:$0xf]
      %v855 = vld [vmem:[%s844 + $0x28] sm:$0xf]
      %v856 = vld [vmem:[%s844 + $0x2c] sm:$0xf]
      %v857 = vld [vmem:[%s844 + $0x30] sm:$0xf]
      %v858 = vld [vmem:[%s844 + $0x34] sm:$0xf]
      %v859 = vld [vmem:[%s844 + $0x38] sm:$0xf]
      %v860 = vld [vmem:[%s844 + $0x3c] sm:$0xf]
      %v877 = vunpack.c.l.b16 %v845
      %v878 = vunpack.c.l.b16 %v846
      %v879 = vunpack.c.l.b16 %v847
      %v880 = vunpack.c.l.b16 %v848
      %v881 = vunpack.c.l.b16 %v849
      %v882 = vunpack.c.l.b16 %v850
      %v883 = vunpack.c.l.b16 %v851
      %v884 = vunpack.c.l.b16 %v852
      %v885 = vunpack.c.l.b16 %v853
      %v886 = vunpack.c.l.b16 %v854
      %v887 = vunpack.c.l.b16 %v855
      %v888 = vunpack.c.l.b16 %v856
      %v889 = vunpack.c.l.b16 %v857
      %v890 = vunpack.c.l.b16 %v858
      %v891 = vunpack.c.l.b16 %v859
      %v892 = vunpack.c.l.b16 %v860
      %v893 = vpack.c.b16 %v878, %v877
      %v894 = vpack.c.b16 %v880, %v879
      %v895 = vpack.c.b16 %v882, %v881
      %v896 = vpack.c.b16 %v884, %v883
      %v897 = vpack.c.b16 %v886, %v885
      %v898 = vpack.c.b16 %v888, %v887
      %v899 = vpack.c.b16 %v890, %v889
      %v900 = vpack.c.b16 %v892, %v891
      %909 = vmatprep.subr.bf16.mxu0 0
      %910 = vmatpush1.bf16.msra.mxu0 %v893
      %911 = vmatprep.subr.bf16.mxu0 0
      %912 = vmatpush1.bf16.msra.mxu0 %v894
      %913 = vmatprep.subr.bf16.mxu0 0
      %914 = vmatpush1.bf16.msra.mxu0 %v895
      %915 = vmatprep.subr.bf16.mxu0 0
      %916 = vmatpush1.bf16.msra.mxu0 %v896
      %917 = vmatprep.subr.bf16.mxu0 0
      %918 = vmatpush1.bf16.msra.mxu0 %v897
      %919 = vmatprep.subr.bf16.mxu0 0
      %920 = vmatpush1.bf16.msra.mxu0 %v898
      %921 = vmatprep.subr.bf16.mxu0 0
      %922 = vmatpush1.bf16.msra.mxu0 %v899
      %923 = vmatprep.subr.bf16.mxu0 0
      %924 = vmatpush1.bf16.msra.mxu0 %v900
      %925 = vmatprep.subr.bf16.mxu0 0
      %926 = vmatpush1.bf16.msra.mxu0 0
      %927 = vmatprep.subr.bf16.mxu0 0
      %928 = vmatpush1.bf16.msra.mxu0 0
      %929 = vmatprep.subr.bf16.mxu0 0
      %930 = vmatpush1.bf16.msra.mxu0 0
      %931 = vmatprep.subr.bf16.mxu0 0
      %932 = vmatpush1.bf16.msra.mxu0 0
      %933 = vmatprep.subr.bf16.mxu0 0
      %934 = vmatpush1.bf16.msra.mxu0 0
      %935 = vmatprep.subr.bf16.mxu0 0
      %936 = vmatpush1.bf16.msra.mxu0 0
      %937 = vmatprep.subr.bf16.mxu0 0
      %938 = vmatpush1.bf16.msra.mxu0 0
      %939 = vmatprep.subr.bf16.mxu0 0
      %940 = vmatpush1.bf16.msra.mxu0 0
      %941 = vmatprep.mubr.bf16.mxu0 0
      %942 = vmatmul.mubr.bf16.gmra.mrb[0].mxu0 %v506
      %v943 = vpop.f32.mrb[0].mxu0
      %v944 = vadd.f32 0.0, %v943
      %v945 = vpop.f32.mrb[0].mxu0
      %v946 = vpop.f32.mrb[0].mxu0
      %v947 = vadd.f32 0.0, %v946
      %v948 = vpop.f32.mrb[0].mxu0
      %949 = vmatprep.mubr.bf16.mxu0 0
      %950 = vmatmul.mubr.bf16.gmra.mrb[0].mxu0 %v507
      %v951 = vpop.f32.mrb[0].mxu0
      %v952 = vadd.f32 0.0, %v951
      %v953 = vpop.f32.mrb[0].mxu0
      %v954 = vpop.f32.mrb[0].mxu0
      %v955 = vadd.f32 0.0, %v954
      %v956 = vpop.f32.mrb[0].mxu0
      %957 = vmatprep.mubr.bf16.mxu0 0
      %958 = vmatmul.mubr.bf16.gmra.mrb[0].mxu0 %v508
      %v959 = vpop.f32.mrb[0].mxu0
      %v960 = vadd.f32 0.0, %v959
      %v961 = vpop.f32.mrb[0].mxu0
      %v962 = vpop.f32.mrb[0].mxu0
      %v963 = vadd.f32 0.0, %v962
      %v964 = vpop.f32.mrb[0].mxu0
      %965 = vmatprep.mubr.bf16.mxu0 0
      %966 = vmatmul.mubr.bf16.gmra.mrb[0].mxu0 %v509
      %v967 = vpop.f32.mrb[0].mxu0
      %v968 = vadd.f32 0.0, %v967
      %v969 = vpop.f32.mrb[0].mxu0
      %v970 = vpop.f32.mrb[0].mxu0
      %v971 = vadd.f32 0.0, %v970
      %v972 = vpop.f32.mrb[0].mxu0
      %973 = vmatprep.mubr.bf16.mxu0 0
      %974 = vmatmul.mubr.bf16.gmra.mrb[0].mxu0 %v510
      %v975 = vpop.f32.mrb[0].mxu0
      %v976 = vadd.f32 0.0, %v975
      %v977 = vpop.f32.mrb[0].mxu0
      %v978 = vpop.f32.mrb[0].mxu0
      %v979 = vadd.f32 0.0, %v978
      %v980 = vpop.f32.mrb[0].mxu0
      %981 = vmatprep.mubr.bf16.mxu0 0
      %982 = vmatmul.mubr.bf16.gmra.mrb[0].mxu0 %v511
      %v983 = vpop.f32.mrb[0].mxu0
      %v984 = vadd.f32 0.0, %v983
      %v985 = vpop.f32.mrb[0].mxu0
      %v986 = vpop.f32.mrb[0].mxu0
      %v987 = vadd.f32 0.0, %v986
      %v988 = vpop.f32.mrb[0].mxu0
      %989 = vmatprep.mubr.bf16.mxu0 0
      %990 = vmatmul.mubr.bf16.gmra.mrb[0].mxu0 %v512
      %v991 = vpop.f32.mrb[0].mxu0
      %v992 = vadd.f32 0.0, %v991
      %v993 = vpop.f32.mrb[0].mxu0
      %v994 = vpop.f32.mrb[0].mxu0
      %v995 = vadd.f32 0.0, %v994
      %v996 = vpop.f32.mrb[0].mxu0
      %997 = vmatprep.mubr.bf16.mxu0 0
      %998 = vmatmul.mubr.bf16.gmra.mrb[0].mxu0 %v472
      %v999 = vpop.f32.mrb[0].mxu0
      %v1000 = vadd.f32 0.0, %v999
      %v1001 = vpop.f32.mrb[0].mxu0
      %v1002 = vpop.f32.mrb[0].mxu0
      %v1003 = vadd.f32 0.0, %v1002
      %v1004 = vpop.f32.mrb[0].mxu0
      %1005 = vdwg.mxu0
      %v1006 = vadd.f32 %v782, %v944
      %v1007 = vadd.f32 %v785, %v947
      %v1008 = vadd.f32 %v790, %v952
      %v1009 = vadd.f32 %v793, %v955
      %v1010 = vadd.f32 %v798, %v960
      %v1011 = vadd.f32 %v801, %v963
      %v1012 = vadd.f32 %v806, %v968
      %v1013 = vadd.f32 %v809, %v971
      %v1014 = vadd.f32 %v814, %v976
      %v1015 = vadd.f32 %v817, %v979
      %v1016 = vadd.f32 %v822, %v984
      %v1017 = vadd.f32 %v825, %v987
      %v1018 = vadd.f32 %v830, %v992
      %v1019 = vadd.f32 %v833, %v995
      %v1020 = vadd.f32 %v838, %v1000
      %v1021 = vadd.f32 %v841, %v1003
      %v1022 = vld [vmem:[%s5] sm:$0x1]
      %v1024 = vlaneseq
      %v1025 = vshrl.u32 %v1024, 7
      %v1026 = vsub.s32 0, %v1025
      %v1027 = vrot.slane %v1022, %v1026
      %v1029 = vadd.f32 %v1006, %v1027
      %v1030 = vadd.f32 %v1007, %v1027
      %v1031 = vadd.f32 %v1008, %v1027
      %v1032 = vadd.f32 %v1009, %v1027
      %v1033 = vadd.f32 %v1010, %v1027
      %v1034 = vadd.f32 %v1011, %v1027
      %v1035 = vadd.f32 %v1012, %v1027
      %v1036 = vadd.f32 %v1013, %v1027
      %v1037 = vadd.f32 %v1014, %v1027
      %v1038 = vadd.f32 %v1015, %v1027
      %v1039 = vadd.f32 %v1016, %v1027
      %v1040 = vadd.f32 %v1017, %v1027
      %v1041 = vadd.f32 %v1018, %v1027
      %v1042 = vadd.f32 %v1019, %v1027
      %v1043 = vadd.f32 %v1020, %v1027
      %v1044 = vadd.f32 %v1021, %v1027
      %v1045 = vadd.f32 %v1029, %v1030
      %v1046 = vadd.f32 %v1045, %v1031
      %v1047 = vadd.f32 %v1046, %v1032
      %v1048 = vadd.f32 %v1047, %v1033
      %v1049 = vadd.f32 %v1048, %v1034
      %v1050 = vadd.f32 %v1049, %v1035
      %v1051 = vadd.f32 %v1050, %v1036
      %v1052 = vadd.f32 %v1051, %v1037
      %v1053 = vadd.f32 %v1052, %v1038
      %v1054 = vadd.f32 %v1053, %v1039
      %v1055 = vadd.f32 %v1054, %v1040
      %v1056 = vadd.f32 %v1055, %v1041
      %v1057 = vadd.f32 %v1056, %v1042
      %v1058 = vadd.f32 %v1057, %v1043
      %v1059 = vadd.f32 %v1058, %v1044
      %v1060 = vrot.slane %v1059, 4
      %v1061 = vadd.f32 %v1059, %v1060
      %v1062 = vrot.slane %v1061, 2
      %v1063 = vadd.f32 %v1061, %v1062
      %v1064 = vrot.slane %v1063, 1
      %v1065 = vadd.f32 %v1063, %v1064
      %v1066 = vmul.f32 %v1029, %v1029
      %v1067 = vmul.f32 %v1030, %v1030
      %v1068 = vmul.f32 %v1031, %v1031
      %v1069 = vmul.f32 %v1032, %v1032
      %v1070 = vmul.f32 %v1033, %v1033
      %v1071 = vmul.f32 %v1034, %v1034
      %v1072 = vmul.f32 %v1035, %v1035
      %v1073 = vmul.f32 %v1036, %v1036
      %v1074 = vmul.f32 %v1037, %v1037
      %v1075 = vmul.f32 %v1038, %v1038
      %v1076 = vmul.f32 %v1039, %v1039
      %v1077 = vmul.f32 %v1040, %v1040
      %v1078 = vmul.f32 %v1041, %v1041
      %v1079 = vmul.f32 %v1042, %v1042
      %v1080 = vmul.f32 %v1043, %v1043
      %v1081 = vmul.f32 %v1044, %v1044
      %v1082 = vadd.f32 %v1066, %v1067
      %v1083 = vadd.f32 %v1082, %v1068
      %v1084 = vadd.f32 %v1083, %v1069
      %v1085 = vadd.f32 %v1084, %v1070
      %v1086 = vadd.f32 %v1085, %v1071
      %v1087 = vadd.f32 %v1086, %v1072
      %v1088 = vadd.f32 %v1087, %v1073
      %v1089 = vadd.f32 %v1088, %v1074
      %v1090 = vadd.f32 %v1089, %v1075
      %v1091 = vadd.f32 %v1090, %v1076
      %v1092 = vadd.f32 %v1091, %v1077
      %v1093 = vadd.f32 %v1092, %v1078
      %v1094 = vadd.f32 %v1093, %v1079
      %v1095 = vadd.f32 %v1094, %v1080
      %v1096 = vadd.f32 %v1095, %v1081
      %v1097 = vrot.slane %v1096, 4
      %v1098 = vadd.f32 %v1096, %v1097
      %v1099 = vrot.slane %v1098, 2
      %v1100 = vadd.f32 %v1098, %v1099
      %v1101 = vrot.slane %v1100, 1
      %v1102 = vadd.f32 %v1100, %v1101
      %vm1103 = vcmask 1040384
      %v1104 = vsel %vm1103, %v1065, %v1102
      %1105 = vst [vmem:[%s317] sm:$0x3] %v1104
      %v1106 = vpack.c.bf16 %v1030, %v1029
      %v1107 = vpack.c.bf16 %v1032, %v1031
      %v1108 = vpack.c.bf16 %v1034, %v1033
      %v1109 = vpack.c.bf16 %v1036, %v1035
      %v1110 = vpack.c.bf16 %v1038, %v1037
      %v1111 = vpack.c.bf16 %v1040, %v1039
      %v1112 = vpack.c.bf16 %v1042, %v1041
      %v1113 = vpack.c.bf16 %v1044, %v1043
      %v1122 = vunpack.c.l.b16 %v1106
      %v1123 = vunpack.c.h.b16 %v1106
      %v1124 = vunpack.c.l.b16 %v1107
      %v1125 = vunpack.c.h.b16 %v1107
      %v1126 = vunpack.c.l.b16 %v1108
      %v1127 = vunpack.c.h.b16 %v1108
      %v1128 = vunpack.c.l.b16 %v1109
      %v1129 = vunpack.c.h.b16 %v1109
      %v1130 = vunpack.c.l.b16 %v1110
      %v1131 = vunpack.c.h.b16 %v1110
      %v1132 = vunpack.c.l.b16 %v1111
      %v1133 = vunpack.c.h.b16 %v1111
      %v1134 = vunpack.c.l.b16 %v1112
      %v1135 = vunpack.c.h.b16 %v1112
      %v1136 = vunpack.c.l.b16 %v1113
      %v1137 = vunpack.c.h.b16 %v1113
      %v1138 = vpack.c.b16 %v1122, %v1122
      %v1139 = vpack.c.b16 %v1123, %v1123
      %v1140 = vpack.c.b16 %v1124, %v1124
      %v1141 = vpack.c.b16 %v1125, %v1125
      %v1142 = vpack.c.b16 %v1126, %v1126
      %v1143 = vpack.c.b16 %v1127, %v1127
      %v1144 = vpack.c.b16 %v1128, %v1128
      %v1145 = vpack.c.b16 %v1129, %v1129
      %v1146 = vpack.c.b16 %v1130, %v1130
      %v1147 = vpack.c.b16 %v1131, %v1131
      %v1148 = vpack.c.b16 %v1132, %v1132
      %v1149 = vpack.c.b16 %v1133, %v1133
      %v1150 = vpack.c.b16 %v1134, %v1134
      %v1151 = vpack.c.b16 %v1135, %v1135
      %v1152 = vpack.c.b16 %v1136, %v1136
      %v1153 = vpack.c.b16 %v1137, %v1137
      %1170 = vst [vmem:[%s308] sm:$0xf] %v1138
      %1171 = vst [vmem:[%s308 + $0x4] sm:$0xf] %v1139
      %1172 = vst [vmem:[%s308 + $0x8] sm:$0xf] %v1140
      %1173 = vst [vmem:[%s308 + $0xc] sm:$0xf] %v1141
      %1174 = vst [vmem:[%s308 + $0x10] sm:$0xf] %v1142
      %1175 = vst [vmem:[%s308 + $0x14] sm:$0xf] %v1143
      %1176 = vst [vmem:[%s308 + $0x18] sm:$0xf] %v1144
      %1177 = vst [vmem:[%s308 + $0x1c] sm:$0xf] %v1145
      %1178 = vst [vmem:[%s308 + $0x20] sm:$0xf] %v1146
      %1179 = vst [vmem:[%s308 + $0x24] sm:$0xf] %v1147
      %1180 = vst [vmem:[%s308 + $0x28] sm:$0xf] %v1148
      %1181 = vst [vmem:[%s308 + $0x2c] sm:$0xf] %v1149
      %1182 = vst [vmem:[%s308 + $0x30] sm:$0xf] %v1150
      %1183 = vst [vmem:[%s308 + $0x34] sm:$0xf] %v1151
      %1184 = vst [vmem:[%s308 + $0x38] sm:$0xf] %v1152
      %1185 = vst [vmem:[%s308 + $0x3c] sm:$0xf] %v1153
      %s1186 = smul.u32 8, %s24
      %p1187 = scmp.lt.s32.totalorder %s23, 1
      %s1188 = scalar_select %p1187, %s23, 1
      %p1189 = scmp.lt.s32.totalorder %s1186, 15
      %s1190 = scalar_select %p1189, %s1186, 15
      %s1191 = smul.addr %s1190, 2
      %s1192 = smul.addr %s1188, 32
      %s1193 = sadd.s32 %s1191, %s1192
      %s1194 = smul.addr %s1193, 4
      %s1195 = scalar_lea.vmem %s6, %s1194
      %p1196 = scmp.lt.s32.totalorder %s23, 1
      %s1197 = scalar_select %p1196, %s23, 1
      %p1198 = scmp.lt.s32.totalorder %s24, 1
      %s1199 = scalar_select %p1198, %s24, 1
      %s1200 = smul.addr %s1197, 2
      %s1201 = sadd.s32 %s1199, %s1200
      %s1202 = smul.addr %s1201, 2
      %s1203 = scalar_lea.vmem %s7, %s1202
      // Predicated region
      $region133: #{unet_block_forward.3} parent=39 // pred_check
        %p1204 = pneg %p163
      $region134: #{unet_block_forward.3} parent=39 // pred_check_branch
        %1206 = sbr.rel (%p1204) target = $region136
      $region135: #{unet_block_forward.3} parent=39 // pred_region
        %s1207 = smul.u32 8, %s24
      $region136: #{unet_block_forward.3} parent=39 // pred_fallthru
        _
      // Predicated region
      $region137: #{unet_block_forward.3} parent=39 // pred_check
        %p1208 = pneg %p191
      $region138: #{unet_block_forward.3} parent=39 // pred_check_branch
        %1210 = sbr.rel (%p1208) target = $region140
      $region139: #{unet_block_forward.3} parent=39 // pred_region
        _
      $region140: #{unet_block_forward.3} parent=39 // pred_fallthru
        _
    $region40: #{unet_block_forward.3} parent=5 // pred_fallthru
      _
    %p1211 = scmp.le.s32.totalorder 2, %s14
    // Predicated region
    $region141: #{unet_block_forward.3} parent=5 // pred_check
      %p1212 = pneg %p1211
    $region142: #{unet_block_forward.3} parent=5 // pred_check_branch
      %1214 = sbr.rel (%p1212) target = $region144
    $region143: #{unet_block_forward.3} parent=5 // pred_region
      %s1215 = ssub.s32 %s14, 2
      // Predicated region
      $region145: #{unet_block_forward.3} parent=143 // pred_check
        %p1216 = pneg %p169
      $region146: #{unet_block_forward.3} parent=143 // pred_check_branch
        %1218 = sbr.rel (%p1216) target = $region148
      $region147: #{unet_block_forward.3} parent=143 // pred_region
        %s1219 = smul.u32 8, %s26
        %p1220 = scmp.lt.s32.totalorder %s25, 1
        %s1221 = scalar_select %p1220, %s25, 1
        %p1222 = scmp.lt.s32.totalorder %s1219, 15
        %s1223 = scalar_select %p1222, %s1219, 15
        %s1224 = smul.addr %s1223, 2
        %s1225 = smul.addr %s1221, 32
        %s1226 = sadd.s32 %s1224, %s1225
        %s1227 = smul.addr %s1226, 4
        %s1228 = scalar_lea.vmem %s6, %s1227
      $region148: #{unet_block_forward.3} parent=143 // pred_fallthru
        _
      // Predicated region
      $region149: #{unet_block_forward.3} parent=143 // pred_check
        %p1229 = pneg %p197
      $region150: #{unet_block_forward.3} parent=143 // pred_check_branch
        %1231 = sbr.rel (%p1229) target = $region152
      $region151: #{unet_block_forward.3} parent=143 // pred_region
        %p1232 = scmp.lt.s32.totalorder %s25, 1
        %s1233 = scalar_select %p1232, %s25, 1
        %p1234 = scmp.lt.s32.totalorder %s26, 1
        %s1235 = scalar_select %p1234, %s26, 1
        %s1236 = smul.addr %s1233, 2
        %s1237 = sadd.s32 %s1235, %s1236
        %s1238 = smul.addr %s1237, 2
        %s1239 = scalar_lea.vmem %s7, %s1238
      $region152: #{unet_block_forward.3} parent=143 // pred_fallthru
        _
    $region144: #{unet_block_forward.3} parent=5 // pred_fallthru
      _
  $region6: #{unet_block_forward.3} parent=0 // loop_footer
    %s18 = sadd.s32 1, %s14
  $region7: #{unet_block_forward.3} parent=0 // loop_footer_branch
    %13 = sbr.rel target = $region3
  $region8: #{unet_block_forward.3} parent=0 // loop_exit
    _
  %1240 = vsyncmov [#allocation3]
  %s1241 = vpop.sfrf %1240
  %p1242 = scmp.eq.s32.totalorder %s1241, 0
  %p1243 = pneg %p1242
  %1245 = shalt.err (%p1243)
  %s1246 = scalar_lea.sflag [#allocation3], 1
  %1247 = vsyncmov %s1246
  %s1248 = vpop.sfrf %1247
  %p1249 = scmp.eq.s32.totalorder %s1248, 0
  %p1250 = pneg %p1249
  %1252 = shalt.err (%p1250)

// kernel: unet_block_forward.4
$region0: #{unet_block_forward.4}
  #allocation0 [shape = 'u32[]', space=smem, size = 0x4, offset = 0x4, fixed_abs, tag = 'smem constant byte address 0x4 - core index']
  #allocation1 [shape = 'u32[144,128]{1,0:T(1,128)}', space=vmem, size = 0x12000, scoped, tag = 'internal scratch']
  #allocation2 [shape = 'bf16[2,16,128]{2,1,0:T(16,128)(2,1)}', space=vmem, size = 0x2000, scoped, tag = 'scratch operand']
  #allocation3 [shape = 's32[2]{0}', space=sflag, size = 0x8, scoped, tag = 'scratch operand']
  #allocation4 [shape = 's32[]', space=sflag, size = 0x4, offset = 0, fixed_abs, tag = 'sflag constant byte address 0x0 - dummy sync flag']
  #allocation5 [shape = 's32[]', space=sflag, size = 0x4, offset = 0, fixed_abs, tag = 'sflag constant byte address 0x0 - dummy sync flag']
  %s0 = inlined_call_operand.vmem [shape: bf16[2,16,16,128], index: 0, kind: input, shape index: {}, may-alias: {0,1}]
  %s1 = inlined_call_operand.vmem [shape: bf16[2,16,16,128], index: 1, kind: input, shape index: {}, may-alias: {0,1}]
  %s2 = inlined_call_operand.vmem [shape: f32[1,128], index: 2, kind: input, shape index: {}]
  %s3 = inlined_call_operand.vmem [shape: f32[1,128], index: 3, kind: input, shape index: {}]
  %s4 = inlined_call_operand.vmem [shape: bf16[3,384,128], index: 4, kind: input, shape index: {}]
  %s5 = inlined_call_operand.vmem [shape: f32[1,128], index: 5, kind: input, shape index: {}]
  %s6 = inlined_call_operand.vmem [shape: bf16[2,16,16,128], index: 6, kind: output, shape index: {0}]
  %s7 = inlined_call_operand.vmem [shape: f32[2,2,2,128], index: 7, kind: output, shape index: {1}]
  %8 = xla_tuple %s6, %s7
  %s9 = sld [smem:[#allocation0]]
  $region153: #{unet_block_forward.4} parent=0
    _
  %s11 = ssub.s32 1, %s9
  %s12 = scalar_select 0, %s11, %s9
  loop: start=0, step=1, limit=6
  $region2: #{unet_block_forward.4} parent=0 // loop_pre_header
    _
  $region3: #{unet_block_forward.4} parent=0 // loop_header
    %s14 = sphi 0, %s18
    %p15 = scmp.ge.s32.totalorder %s14, 6
    %s21 = sphi 0, %s33
    %s22 = sphi 0, %s29
    %s23 = sphi 0, %s21
    %s24 = sphi 0, %s22
    %s25 = sphi 0, %s23
    %s26 = sphi 0, %s24
    %s38 = sphi 0, %s40
    %s41 = sphi 0, %s38
    %s42 = sphi 0, %s41
    %s58 = sphi 0, %s42
    %s62 = sphi 0, %s62
    %s64 = sphi 0, %s62
    %s65 = sphi 0, %s64
    %s79 = sphi 0, %s65
    %s83 = sphi 0, %s83
    %s85 = sphi 0, %s83
    %s86 = sphi 0, %s85
    %s100 = sphi 0, %s86
    %s104 = sphi 0, %s104
    %s106 = sphi 0, %s104
    %s107 = sphi 0, %s106
    %s121 = sphi 0, %s107
    %s125 = sphi 0, %s125
    %s127 = sphi 0, %s125
    %s128 = sphi 0, %s127
    %s142 = sphi 0, %s128
    %s150 = sphi 0, %s152
    %s153 = sphi 0, %s150
    %s154 = sphi 0, %s153
    %s170 = sphi 0, %s154
    %s178 = sphi 0, %s180
    %s181 = sphi 0, %s178
    %s182 = sphi 0, %s181
    %s198 = sphi 0, %s182
  $region4: #{unet_block_forward.4} parent=0 // loop_header_branch
    %17 = sbr.rel (%p15) target = $region8
  $region5: #{unet_block_forward.4} parent=0 // loop_body
    %s19 = ssub.s32 %s14, 1
    %s20 = ssub.s32 %s14, 2
    %s27 = sadd.s32 1, %s22
    %p28 = scmp.ge.s32.totalorder %s27, 2
    %s29 = scalar_select %p28, 0, %s27
    %s30 = sadd.s32 1, %s21
    %s31 = scalar_select %p28, %s30, %s21
    %p32 = scmp.ge.s32.totalorder %s31, 2
    %s33 = scalar_select %p32, 0, %s31
    %s34 = ssub.s32 %s21, %s33
    %s35 = ssub.s32 %s22, %s29
    %s36 = sor.u32 %s34, %s35
    %p37 = scmp.eq.s32.totalorder %s36, 0
    %s39 = sadd.s32 %s38, 1
    %s40 = scalar_select %p37, %s38, %s39
    %p43 = pneg %p37
    %p44 = scmp.eq.s32.totalorder %s14, 3
    %p45 = por %p43, %p44
    %p46 = scmp.ne.s32.totalorder %s38, %s41
    %p47 = scmp.eq.s32.totalorder %s14, 0
    %p48 = por %p46, %p47
    %p49 = scmp.ne.s32.totalorder %s38, %s41
    %p50 = scmp.eq.s32.totalorder %s19, 3
    %p51 = por %p49, %p50
    %p52 = scmp.ne.s32.totalorder %s41, %s42
    %p53 = scmp.eq.s32.totalorder %s19, 0
    %p54 = por %p52, %p53
    %p55 = scmp.ne.s32.totalorder %s41, %s42
    %p56 = scmp.eq.s32.totalorder %s20, 3
    %p57 = por %p55, %p56
    %p59 = scmp.ne.s32.totalorder %s42, %s58
    %p60 = scmp.eq.s32.totalorder %s20, 0
    %p61 = por %p59, %p60
    %s63 = sadd.s32 %s62, 1
    %p66 = scmp.eq.s32.totalorder %s14, 3
    %p67 = scmp.ne.s32.totalorder %s62, %s64
    %p68 = scmp.eq.s32.totalorder %s14, 0
    %p69 = por %p67, %p68
    %p70 = scmp.ne.s32.totalorder %s62, %s64
    %p71 = scmp.eq.s32.totalorder %s19, 3
    %p72 = por %p70, %p71
    %p73 = scmp.ne.s32.totalorder %s64, %s65
    %p74 = scmp.eq.s32.totalorder %s19, 0
    %p75 = por %p73, %p74
    %p76 = scmp.ne.s32.totalorder %s64, %s65
    %p77 = scmp.eq.s32.totalorder %s20, 3
    %p78 = por %p76, %p77
    %p80 = scmp.ne.s32.totalorder %s65, %s79
    %p81 = scmp.eq.s32.totalorder %s20, 0
    %p82 = por %p80, %p81
    %s84 = sadd.s32 %s83, 1
    %p87 = scmp.eq.s32.totalorder %s14, 3
    %p88 = scmp.ne.s32.totalorder %s83, %s85
    %p89 = scmp.eq.s32.totalorder %s14, 0
    %p90 = por %p88, %p89
    %p91 = scmp.ne.s32.totalorder %s83, %s85
    %p92 = scmp.eq.s32.totalorder %s19, 3
    %p93 = por %p91, %p92
    %p94 = scmp.ne.s32.totalorder %s85, %s86
    %p95 = scmp.eq.s32.totalorder %s19, 0
    %p96 = por %p94, %p95
    %p97 = scmp.ne.s32.totalorder %s85, %s86
    %p98 = scmp.eq.s32.totalorder %s20, 3
    %p99 = por %p97, %p98
    %p101 = scmp.ne.s32.totalorder %s86, %s100
    %p102 = scmp.eq.s32.totalorder %s20, 0
    %p103 = por %p101, %p102
    %s105 = sadd.s32 %s104, 1
    %p108 = scmp.eq.s32.totalorder %s14, 3
    %p109 = scmp.ne.s32.totalorder %s104, %s106
    %p110 = scmp.eq.s32.totalorder %s14, 0
    %p111 = por %p109, %p110
    %p112 = scmp.ne.s32.totalorder %s104, %s106
    %p113 = scmp.eq.s32.totalorder %s19, 3
    %p114 = por %p112, %p113
    %p115 = scmp.ne.s32.totalorder %s106, %s107
    %p116 = scmp.eq.s32.totalorder %s19, 0
    %p117 = por %p115, %p116
    %p118 = scmp.ne.s32.totalorder %s106, %s107
    %p119 = scmp.eq.s32.totalorder %s20, 3
    %p120 = por %p118, %p119
    %p122 = scmp.ne.s32.totalorder %s107, %s121
    %p123 = scmp.eq.s32.totalorder %s20, 0
    %p124 = por %p122, %p123
    %s126 = sadd.s32 %s125, 1
    %p129 = scmp.eq.s32.totalorder %s14, 3
    %p130 = scmp.ne.s32.totalorder %s125, %s127
    %p131 = scmp.eq.s32.totalorder %s14, 0
    %p132 = por %p130, %p131
    %p133 = scmp.ne.s32.totalorder %s125, %s127
    %p134 = scmp.eq.s32.totalorder %s19, 3
    %p135 = por %p133, %p134
    %p136 = scmp.ne.s32.totalorder %s127, %s128
    %p137 = scmp.eq.s32.totalorder %s19, 0
    %p138 = por %p136, %p137
    %p139 = scmp.ne.s32.totalorder %s127, %s128
    %p140 = scmp.eq.s32.totalorder %s20, 3
    %p141 = por %p139, %p140
    %p143 = scmp.ne.s32.totalorder %s128, %s142
    %p144 = scmp.eq.s32.totalorder %s20, 0
    %p145 = por %p143, %p144
    %s146 = ssub.s32 %s21, %s33
    %s147 = ssub.s32 %s22, %s29
    %s148 = sor.u32 %s146, %s147
    %p149 = scmp.eq.s32.totalorder %s148, 0
    %s151 = sadd.s32 %s150, 1
    %s152 = scalar_select %p149, %s150, %s151
    %p155 = pneg %p149
    %p156 = scmp.eq.s32.totalorder %s14, 3
    %p157 = por %p155, %p156
    %p158 = scmp.ne.s32.totalorder %s150, %s153
    %p159 = scmp.eq.s32.totalorder %s14, 0
    %p160 = por %p158, %p159
    %p161 = scmp.ne.s32.totalorder %s150, %s153
    %p162 = scmp.eq.s32.totalorder %s19, 3
    %p163 = por %p161, %p162
    %p164 = scmp.ne.s32.totalorder %s153, %s154
    %p165 = scmp.eq.s32.totalorder %s19, 0
    %p166 = por %p164, %p165
    %p167 = scmp.ne.s32.totalorder %s153, %s154
    %p168 = scmp.eq.s32.totalorder %s20, 3
    %p169 = por %p167, %p168
    %p171 = scmp.ne.s32.totalorder %s154, %s170
    %p172 = scmp.eq.s32.totalorder %s20, 0
    %p173 = por %p171, %p172
    %s174 = ssub.s32 %s21, %s33
    %s175 = ssub.s32 %s22, %s29
    %s176 = sor.u32 %s174, %s175
    %p177 = scmp.eq.s32.totalorder %s176, 0
    %s179 = sadd.s32 %s178, 1
    %s180 = scalar_select %p177, %s178, %s179
    %p183 = pneg %p177
    %p184 = scmp.eq.s32.totalorder %s14, 3
    %p185 = por %p183, %p184
    %p186 = scmp.ne.s32.totalorder %s178, %s181
    %p187 = scmp.eq.s32.totalorder %s14, 0
    %p188 = por %p186, %p187
    %p189 = scmp.ne.s32.totalorder %s178, %s181
    %p190 = scmp.eq.s32.totalorder %s19, 3
    %p191 = por %p189, %p190
    %p192 = scmp.ne.s32.totalorder %s181, %s182
    %p193 = scmp.eq.s32.totalorder %s19, 0
    %p194 = por %p192, %p193
    %p195 = scmp.ne.s32.totalorder %s181, %s182
    %p196 = scmp.eq.s32.totalorder %s20, 3
    %p197 = por %p195, %p196
    %p199 = scmp.ne.s32.totalorder %s182, %s198
    %p200 = scmp.eq.s32.totalorder %s20, 0
    %p201 = por %p199, %p200
    %p202 = scmp.le.s32.totalorder 1, %s14
    %p203 = scmp.lt.s32.totalorder %s14, 5
    %p204 = pnand %p202, %p203
    %p205 = pneg %p204
    // Predicated region
    $region9: #{unet_block_forward.4} parent=5 // pred_check
      _
    $region10: #{unet_block_forward.4} parent=5 // pred_check_branch
      %207 = sbr.rel (%p204) target = $region12
    $region11: #{unet_block_forward.4} parent=5 // pred_region
      %s208 = ssub.s32 %s14, 1
      // Predicated region
      $region13: #{unet_block_forward.4} parent=11 // pred_check
        %p209 = pneg %p75
      $region14: #{unet_block_forward.4} parent=11 // pred_check_branch
        %211 = sbr.rel (%p209) target = $region16
      $region15: #{unet_block_forward.4} parent=11 // pred_region
        _
      $region16: #{unet_block_forward.4} parent=11 // pred_fallthru
        _
      // Predicated region
      $region17: #{unet_block_forward.4} parent=11 // pred_check
        %p212 = pneg %p96
      $region18: #{unet_block_forward.4} parent=11 // pred_check_branch
        %214 = sbr.rel (%p212) target = $region20
      $region19: #{unet_block_forward.4} parent=11 // pred_region
        _
      $region20: #{unet_block_forward.4} parent=11 // pred_fallthru
        _
      // Predicated region
      $region21: #{unet_block_forward.4} parent=11 // pred_check
        %p215 = pneg %p117
      $region22: #{unet_block_forward.4} parent=11 // pred_check_branch
        %217 = sbr.rel (%p215) target = $region24
      $region23: #{unet_block_forward.4} parent=11 // pred_region
        _
      $region24: #{unet_block_forward.4} parent=11 // pred_fallthru
        _
      // Predicated region
      $region25: #{unet_block_forward.4} parent=11 // pred_check
        %p218 = pneg %p138
      $region26: #{unet_block_forward.4} parent=11 // pred_check_branch
        %220 = sbr.rel (%p218) target = $region28
      $region27: #{unet_block_forward.4} parent=11 // pred_region
        _
      $region28: #{unet_block_forward.4} parent=11 // pred_fallthru
        _
    $region12: #{unet_block_forward.4} parent=5 // pred_fallthru
      _
    %p221 = scmp.lt.s32.totalorder %s14, 4
    // Predicated region
    $region29: #{unet_block_forward.4} parent=5 // pred_check
      %p222 = pneg %p221
    $region30: #{unet_block_forward.4} parent=5 // pred_check_branch
      %224 = sbr.rel (%p222) target = $region32
    $region31: #{unet_block_forward.4} parent=5 // pred_region
      // Predicated region
      $region33: #{unet_block_forward.4} parent=31 // pred_check
        %p225 = pneg %p48
      $region34: #{unet_block_forward.4} parent=31 // pred_check_branch
        %227 = sbr.rel (%p225) target = $region36
      $region35: #{unet_block_forward.4} parent=31 // pred_region
        %s228 = smul.u32 8, %s22
        %p229 = scmp.lt.s32.totalorder %s21, 1
        %s230 = scalar_select %p229, %s21, 1
        %p231 = scmp.lt.s32.totalorder %s228, 15
        %s232 = scalar_select %p231, %s228, 15
        %s233 = smul.addr %s232, 2
        %s234 = smul.addr %s230, 32
        %s235 = sadd.s32 %s233, %s234
        %s236 = smul.addr %s235, 4
        %s237 = scalar_lea.vmem %s0, %s236
        %s238 = smul.u32 8, %s22
      $region36: #{unet_block_forward.4} parent=31 // pred_fallthru
        _
    $region32: #{unet_block_forward.4} parent=5 // pred_fallthru
      _
    %p239 = scmp.le.s32.totalorder 1, %s14
    %p240 = scmp.lt.s32.totalorder %s14, 5
    %p241 = pnand %p239, %p240
    %p242 = pneg %p241
    // Predicated region
    $region37: #{unet_block_forward.4} parent=5 // pred_check
      _
    $region38: #{unet_block_forward.4} parent=5 // pred_check_branch
      %244 = sbr.rel (%p241) target = $region40
    $region39: #{unet_block_forward.4} parent=5 // pred_region
      %s245 = ssub.s32 %s14, 1
      %s246 = smul.u32 8, %s24
      %p247 = scmp.lt.s32.totalorder %s23, 1
      %s248 = scalar_select %p247, %s23, 1
      %p249 = scmp.lt.s32.totalorder %s246, 15
      %s250 = scalar_select %p249, %s246, 15
      %s251 = smul.addr %s250, 2
      %s252 = smul.addr %s248, 32
      %s253 = sadd.s32 %s251, %s252
      %s254 = smul.addr %s253, 4
      %s255 = scalar_lea.vmem %s0, %s254
      %p256 = pneg %p54
      %p257 = pneg %p51
      %p258 = pneg %p75
      %p259 = pneg %p72
      %p260 = pneg %p96
      %p261 = pneg %p93
      %p262 = pneg %p117
      %p263 = pneg %p114
      %p264 = pneg %p138
      %p265 = pneg %p135
      %p266 = pneg %p166
      %p267 = pneg %p163
      %s268 = smul.u32 8, %s24
      %p269 = scmp.lt.s32.totalorder %s23, 1
      %s270 = scalar_select %p269, %s23, 1
      %p271 = scmp.lt.s32.totalorder %s268, 15
      %s272 = scalar_select %p271, %s268, 15
      %s273 = smul.addr %s272, 2
      %s274 = smul.addr %s270, 32
      %s275 = sadd.s32 %s273, %s274
      %s276 = smul.addr %s275, 4
      %s277 = scalar_lea.vmem %s6, %s276
      %p278 = pneg %p194
      %p279 = pneg %p191
      %p280 = scmp.lt.s32.totalorder %s23, 1
      %s281 = scalar_select %p280, %s23, 1
      %p282 = scmp.lt.s32.totalorder %s24, 1
      %s283 = scalar_select %p282, %s24, 1
      %s284 = smul.addr %s281, 2
      %s285 = sadd.s32 %s283, %s284
      %s286 = smul.addr %s285, 2
      %s287 = scalar_lea.vmem %s7, %s286
      %s288 = smul.u32 8, %s24
      %p289 = scmp.lt.s32.totalorder %s23, 1
      %s290 = scalar_select %p289, %s23, 1
      %p291 = scmp.lt.s32.totalorder %s288, 15
      %s292 = scalar_select %p291, %s288, 15
      %s293 = smul.addr %s292, 2
      %s294 = smul.addr %s290, 32
      %s295 = sadd.s32 %s293, %s294
      %s296 = smul.addr %s295, 4
      %s297 = scalar_lea.vmem %s0, %s296
      %s298 = smul.u32 8, %s24
      %s299 = smul.u32 8, %s24
      %p300 = scmp.lt.s32.totalorder %s23, 1
      %s301 = scalar_select %p300, %s23, 1
      %p302 = scmp.lt.s32.totalorder %s299, 15
      %s303 = scalar_select %p302, %s299, 15
      %s304 = smul.addr %s303, 2
      %s305 = smul.addr %s301, 32
      %s306 = sadd.s32 %s304, %s305
      %s307 = smul.addr %s306, 4
      %s308 = scalar_lea.vmem %s6, %s307
      %s309 = smul.u32 8, %s24
      %p310 = scmp.lt.s32.totalorder %s23, 1
      %s311 = scalar_select %p310, %s23, 1
      %p312 = scmp.lt.s32.totalorder %s24, 1
      %s313 = scalar_select %p312, %s24, 1
      %s314 = smul.addr %s311, 2
      %s315 = sadd.s32 %s313, %s314
      %s316 = smul.addr %s315, 2
      %s317 = scalar_lea.vmem %s7, %s316
      %s319 = smul.u32 %s24, 8
      %p320 = scmp.gt.s32.totalorder %s24, 0
      // Predicated region
      $region41: #{unet_block_forward.4} parent=39 // pred_check
        %p321 = pneg %p320
      $region42: #{unet_block_forward.4} parent=39 // pred_check_branch
        %323 = sbr.rel (%p321) target = $region44
      $region43: #{unet_block_forward.4} parent=39 // pred_region
        %s324 = ssub.s32 %s319, 1
        %s325 = smul.u32 %s324, 2
        %s326 = smul.u32 %s23, 32
        %s327 = sadd.s32 %s325, %s326
        %s328 = smul.addr %s327, 4
        %s329 = scalar_lea.vmem %s1, %s328
        %p331 = scmp.lt.u32.totalorder 8, 8
        %p332 = pneg %p331
        // Predicated region
        $region45: #{unet_block_forward.4} parent=43 // pred_check
          _
        $region46: #{unet_block_forward.4} parent=43 // pred_check_branch
          %334 = sbr.rel (%p331) target = $region48
        $region47: #{unet_block_forward.4} parent=43 // pred_region
          %s349 = sand.u32 8, 7
          %p350 = scmp.eq.s32.totalorder %s349, 0
          // Predicated region
          $region60: #{unet_block_forward.4} parent=47 // pred_check
            %p351 = pneg %p350
          $region61: #{unet_block_forward.4} parent=47 // pred_check_branch
            %353 = sbr.rel (%p351) target = $region63
          $region62: #{unet_block_forward.4} parent=47 // pred_region
            loop: start=0, step=1, limit=1
            $region64: #{unet_block_forward.4} parent=62 // loop_pre_header
              _
            $region65: #{unet_block_forward.4} parent=62 // loop_header
              %s355 = sphi 0, %s359
              %p356 = scmp.ge.s32.totalorder %s355, 1
              %s360 = sphi %s329, %s329
              %s361 = sphi [#allocation2], [#allocation2]
            $region66: #{unet_block_forward.4} parent=62 // loop_header_branch
              %358 = sbr.rel (%p356) target = $region70
            $region67: #{unet_block_forward.4} parent=62 // loop_body
              %v362 = vld [vmem:[%s360] sm:$0xff]
              %363 = vst [vmem:[%s361] sm:$0xff] %v362
            $region68: #{unet_block_forward.4} parent=62 // loop_footer
              %s359 = sadd.s32 1, %s355
            $region69: #{unet_block_forward.4} parent=62 // loop_footer_branch
              %354 = sbr.rel target = $region65
            $region70: #{unet_block_forward.4} parent=62 // loop_exit
              _
          $region63: #{unet_block_forward.4} parent=47 // pred_fallthru
            _
          %p364 = pneg %p350
          // Predicated region
          $region71: #{unet_block_forward.4} parent=47 // pred_check
            _
          $region72: #{unet_block_forward.4} parent=47 // pred_check_branch
            %366 = sbr.rel (%p350) target = $region74
          $region73: #{unet_block_forward.4} parent=47 // pred_region
            %s367 = sand.u32 8, 7
          $region74: #{unet_block_forward.4} parent=47 // pred_fallthru
            _
        $region48: #{unet_block_forward.4} parent=43 // pred_fallthru
          _
        // Predicated region
        $region49: #{unet_block_forward.4} parent=43 // pred_check
          %p335 = pneg %p331
        $region50: #{unet_block_forward.4} parent=43 // pred_check_branch
          %337 = sbr.rel (%p335) target = $region52
        $region51: #{unet_block_forward.4} parent=43 // pred_region
          %s338 = sshllo.u32 0, 8
          loop: start=0, step=1, limit=1
          $region53: #{unet_block_forward.4} parent=51 // loop_pre_header
            _
          $region54: #{unet_block_forward.4} parent=51 // loop_header
            %s340 = sphi 0, %s344
            %p341 = scmp.ge.s32.totalorder %s340, 1
            %s345 = sphi %s329, %s329
            %s346 = sphi [#allocation2], [#allocation2]
          $region55: #{unet_block_forward.4} parent=51 // loop_header_branch
            %343 = sbr.rel (%p341) target = $region59
          $region56: #{unet_block_forward.4} parent=51 // loop_body
            %v347 = vld [vmem:[%s345] sm:%s338]
            %348 = vst [vmem:[%s346] sm:%s338] %v347
          $region57: #{unet_block_forward.4} parent=51 // loop_footer
            %s344 = sadd.s32 1, %s340
          $region58: #{unet_block_forward.4} parent=51 // loop_footer_branch
            %339 = sbr.rel target = $region54
          $region59: #{unet_block_forward.4} parent=51 // loop_exit
            _
        $region52: #{unet_block_forward.4} parent=43 // pred_fallthru
          _
        // Predicated region
        $region75: #{unet_block_forward.4} parent=43 // pred_check
          _
        $region76: #{unet_block_forward.4} parent=43 // pred_check_branch
          %370 = sbr.rel (0) target = $region78
        $region77: #{unet_block_forward.4} parent=43 // pred_region
          %371 = vsyncadd [#allocation3], 128
        $region78: #{unet_block_forward.4} parent=43 // pred_fallthru
          _
      $region44: #{unet_block_forward.4} parent=39 // pred_fallthru
        _
      %p372 = scmp.eq.s32.totalorder %s24, 0
      // Predicated region
      $region79: #{unet_block_forward.4} parent=39 // pred_check
        %p373 = pneg %p372
      $region80: #{unet_block_forward.4} parent=39 // pred_check_branch
        %375 = sbr.rel (%p373) target = $region82
      $region81: #{unet_block_forward.4} parent=39 // pred_region
        %376 = vst [vmem:[#allocation2] sm:$0xff] 0
      $region82: #{unet_block_forward.4} parent=39 // pred_fallthru
        _
      %p377 = scmp.lt.s32.totalorder %s24, 1
      // Predicated region
      $region83: #{unet_block_forward.4} parent=39 // pred_check
        %p378 = pneg %p377
      $region84: #{unet_block_forward.4} parent=39 // pred_check_branch
        %380 = sbr.rel (%p378) target = $region86
      $region85: #{unet_block_forward.4} parent=39 // pred_region
        %s381 = sadd.s32 %s319, 8
        %s382 = smul.u32 %s381, 2
        %s383 = smul.u32 %s23, 32
        %s384 = sadd.s32 %s382, %s383
        %s385 = smul.addr %s384, 4
        %s386 = scalar_lea.vmem %s1, %s385
        %s387 = scalar_lea.vmem [#allocation2], 8
        %s388 = scalar_lea.sflag [#allocation3], 1
        %p390 = scmp.lt.u32.totalorder 8, 8
        %p391 = pneg %p390
        // Predicated region
        $region87: #{unet_block_forward.4} parent=85 // pred_check
          _
        $region88: #{unet_block_forward.4} parent=85 // pred_check_branch
          %393 = sbr.rel (%p390) target = $region90
        $region89: #{unet_block_forward.4} parent=85 // pred_region
          %s408 = sand.u32 8, 7
          %p409 = scmp.eq.s32.totalorder %s408, 0
          // Predicated region
          $region102: #{unet_block_forward.4} parent=89 // pred_check
            %p410 = pneg %p409
          $region103: #{unet_block_forward.4} parent=89 // pred_check_branch
            %412 = sbr.rel (%p410) target = $region105
          $region104: #{unet_block_forward.4} parent=89 // pred_region
            loop: start=0, step=1, limit=1
            $region106: #{unet_block_forward.4} parent=104 // loop_pre_header
              _
            $region107: #{unet_block_forward.4} parent=104 // loop_header
              %s414 = sphi 0, %s418
              %p415 = scmp.ge.s32.totalorder %s414, 1
              %s419 = sphi %s386, %s386
              %s420 = sphi %s387, %s387
            $region108: #{unet_block_forward.4} parent=104 // loop_header_branch
              %417 = sbr.rel (%p415) target = $region112
            $region109: #{unet_block_forward.4} parent=104 // loop_body
              %v421 = vld [vmem:[%s419] sm:$0xff]
              %422 = vst [vmem:[%s420] sm:$0xff] %v421
            $region110: #{unet_block_forward.4} parent=104 // loop_footer
              %s418 = sadd.s32 1, %s414
            $region111: #{unet_block_forward.4} parent=104 // loop_footer_branch
              %413 = sbr.rel target = $region107
            $region112: #{unet_block_forward.4} parent=104 // loop_exit
              _
          $region105: #{unet_block_forward.4} parent=89 // pred_fallthru
            _
          %p423 = pneg %p409
          // Predicated region
          $region113: #{unet_block_forward.4} parent=89 // pred_check
            _
          $region114: #{unet_block_forward.4} parent=89 // pred_check_branch
            %425 = sbr.rel (%p409) target = $region116
          $region115: #{unet_block_forward.4} parent=89 // pred_region
            %s426 = sand.u32 8, 7
          $region116: #{unet_block_forward.4} parent=89 // pred_fallthru
            _
        $region90: #{unet_block_forward.4} parent=85 // pred_fallthru
          _
        // Predicated region
        $region91: #{unet_block_forward.4} parent=85 // pred_check
          %p394 = pneg %p390
        $region92: #{unet_block_forward.4} parent=85 // pred_check_branch
          %396 = sbr.rel (%p394) target = $region94
        $region93: #{unet_block_forward.4} parent=85 // pred_region
          %s397 = sshllo.u32 0, 8
          loop: start=0, step=1, limit=1
          $region95: #{unet_block_forward.4} parent=93 // loop_pre_header
            _
          $region96: #{unet_block_forward.4} parent=93 // loop_header
            %s399 = sphi 0, %s403
            %p400 = scmp.ge.s32.totalorder %s399, 1
            %s404 = sphi %s386, %s386
            %s405 = sphi %s387, %s387
          $region97: #{unet_block_forward.4} parent=93 // loop_header_branch
            %402 = sbr.rel (%p400) target = $region101
          $region98: #{unet_block_forward.4} parent=93 // loop_body
            %v406 = vld [vmem:[%s404] sm:%s397]
            %407 = vst [vmem:[%s405] sm:%s397] %v406
          $region99: #{unet_block_forward.4} parent=93 // loop_footer
            %s403 = sadd.s32 1, %s399
          $region100: #{unet_block_forward.4} parent=93 // loop_footer_branch
            %398 = sbr.rel target = $region96
          $region101: #{unet_block_forward.4} parent=93 // loop_exit
            _
        $region94: #{unet_block_forward.4} parent=85 // pred_fallthru
          _
        // Predicated region
        $region117: #{unet_block_forward.4} parent=85 // pred_check
          _
        $region118: #{unet_block_forward.4} parent=85 // pred_check_branch
          %429 = sbr.rel (0) target = $region120
        $region119: #{unet_block_forward.4} parent=85 // pred_region
          %430 = vsyncadd %s388, 128
        $region120: #{unet_block_forward.4} parent=85 // pred_fallthru
          _
      $region86: #{unet_block_forward.4} parent=39 // pred_fallthru
        _
      %p431 = scmp.eq.s32.totalorder %s24, 1
      // Predicated region
      $region121: #{unet_block_forward.4} parent=39 // pred_check
        %p432 = pneg %p431
      $region122: #{unet_block_forward.4} parent=39 // pred_check_branch
        %434 = sbr.rel (%p432) target = $region124
      $region123: #{unet_block_forward.4} parent=39 // pred_region
        %s435 = scalar_lea.vmem [#allocation2], 8
        %436 = vst [vmem:[%s435] sm:$0xff] 0
      $region124: #{unet_block_forward.4} parent=39 // pred_fallthru
        _
      %v437 = vld [vmem:[%s2] sm:$0x1]
      %v438 = vld [vmem:[%s3] sm:$0x1]
      %v439 = vld [vmem:[%s297] sm:$0xf]
      %v440 = vld [vmem:[%s297 + $0x4] sm:$0xf]
      %v441 = vld [vmem:[%s297 + $0x8] sm:$0xf]
      %v442 = vld [vmem:[%s297 + $0xc] sm:$0xf]
      %v443 = vld [vmem:[%s297 + $0x10] sm:$0xf]
      %v444 = vld [vmem:[%s297 + $0x14] sm:$0xf]
      %v445 = vld [vmem:[%s297 + $0x18] sm:$0xf]
      %v446 = vld [vmem:[%s297 + $0x1c] sm:$0xf]
      %v447 = vld [vmem:[%s297 + $0x20] sm:$0xf]
      %v448 = vld [vmem:[%s297 + $0x24] sm:$0xf]
      %v449 = vld [vmem:[%s297 + $0x28] sm:$0xf]
      %v450 = vld [vmem:[%s297 + $0x2c] sm:$0xf]
      %v451 = vld [vmem:[%s297 + $0x30] sm:$0xf]
      %v452 = vld [vmem:[%s297 + $0x34] sm:$0xf]
      %v453 = vld [vmem:[%s297 + $0x38] sm:$0xf]
      %v454 = vld [vmem:[%s297 + $0x3c] sm:$0xf]
      %v455 = vunpack.c.l.bf16 %v439
      %v456 = vunpack.c.l.bf16 %v440
      %v457 = vunpack.c.l.bf16 %v441
      %v458 = vunpack.c.l.bf16 %v442
      %v459 = vunpack.c.l.bf16 %v443
      %v460 = vunpack.c.l.bf16 %v444
      %v461 = vunpack.c.l.bf16 %v445
      %v462 = vunpack.c.l.bf16 %v446
      %v463 = vunpack.c.l.bf16 %v447
      %v464 = vunpack.c.l.bf16 %v448
      %v465 = vunpack.c.l.bf16 %v449
      %v466 = vunpack.c.l.bf16 %v450
      %v467 = vunpack.c.l.bf16 %v451
      %v468 = vunpack.c.l.bf16 %v452
      %v469 = vunpack.c.l.bf16 %v453
      %v470 = vunpack.c.l.bf16 %v454
      %v472 = vlaneseq
      %v473 = vshrl.u32 %v472, 7
      %v474 = vsub.s32 0, %v473
      %v475 = vrot.slane %v437, %v474
      %v477 = vmul.f32 %v455, %v475
      %v478 = vmul.f32 %v456, %v475
      %v479 = vmul.f32 %v457, %v475
      %v480 = vmul.f32 %v458, %v475
      %v481 = vmul.f32 %v459, %v475
      %v482 = vmul.f32 %v460, %v475
      %v483 = vmul.f32 %v461, %v475
      %v484 = vmul.f32 %v462, %v475
      %v485 = vmul.f32 %v463, %v475
      %v486 = vmul.f32 %v464, %v475
      %v487 = vmul.f32 %v465, %v475
      %v488 = vmul.f32 %v466, %v475
      %v489 = vmul.f32 %v467, %v475
      %v490 = vmul.f32 %v468, %v475
      %v491 = vmul.f32 %v469, %v475
      %v492 = vmul.f32 %v470, %v475
      %v494 = vlaneseq
      %v495 = vshrl.u32 %v494, 7
      %v496 = vsub.s32 0, %v495
      %v497 = vrot.slane %v438, %v496
      %v499 = vadd.f32 %v477, %v497
      %v500 = vadd.f32 %v478, %v497
      %v501 = vadd.f32 %v479, %v497
      %v502 = vadd.f32 %v480, %v497
      %v503 = vadd.f32 %v481, %v497
      %v504 = vadd.f32 %v482, %v497
      %v505 = vadd.f32 %v483, %v497
      %v506 = vadd.f32 %v484, %v497
      %v507 = vadd.f32 %v485, %v497
      %v508 = vadd.f32 %v486, %v497
      %v509 = vadd.f32 %v487, %v497
      %v510 = vadd.f32 %v488, %v497
      %v511 = vadd.f32 %v489, %v497
      %v512 = vadd.f32 %v490, %v497
      %v513 = vadd.f32 %v491, %v497
      %v514 = vadd.f32 %v492, %v497
      %v515 = vmax.f32 %v499, 0.0
      %v516 = vmax.f32 %v500, 0.0
      %v517 = vmax.f32 %v501, 0.0
      %v518 = vmax.f32 %v502, 0.0
      %v519 = vmax.f32 %v503, 0.0
      %v520 = vmax.f32 %v504, 0.0
      %v521 = vmax.f32 %v505, 0.0
      %v522 = vmax.f32 %v506, 0.0
      %v523 = vmax.f32 %v507, 0.0
      %v524 = vmax.f32 %v508, 0.0
      %v525 = vmax.f32 %v509, 0.0
      %v526 = vmax.f32 %v510, 0.0
      %v527 = vmax.f32 %v511, 0.0
      %v528 = vmax.f32 %v512, 0.0
      %v529 = vmax.f32 %v513, 0.0
      %v530 = vmax.f32 %v514, 0.0
      %v531 = vpack.c.bf16 %v516, %v515
      %v532 = vpack.c.bf16 %v518, %v517
      %v533 = vpack.c.bf16 %v520, %v519
      %v534 = vpack.c.bf16 %v522, %v521
      %v535 = vpack.c.bf16 %v524, %v523
      %v536 = vpack.c.bf16 %v526, %v525
      %v537 = vpack.c.bf16 %v528, %v527
      %v538 = vpack.c.bf16 %v530, %v529
      // Predicated region
      $region125: #{unet_block_forward.4} parent=39 // pred_check
        %p539 = pneg %p320
      $region126: #{unet_block_forward.4} parent=39 // pred_check_branch
        %541 = sbr.rel (%p539) target = $region128
      $region127: #{unet_block_forward.4} parent=39 // pred_region
        %s542 = smul.u32 4, 1
        %s543 = smul.u32 %s542, 2
        %s544 = smul.u32 %s543, 1
        %s545 = sshll.u32 %s544, 4
        %546 = dma.done [#allocation3], %s545
      $region128: #{unet_block_forward.4} parent=39 // pred_fallthru
        _
      // Predicated region
      $region129: #{unet_block_forward.4} parent=39 // pred_check
        %p547 = pneg %p377
      $region130: #{unet_block_forward.4} parent=39 // pred_check_branch
        %549 = sbr.rel (%p547) target = $region132
      $region131: #{unet_block_forward.4} parent=39 // pred_region
        %s550 = scalar_lea.sflag [#allocation3], 1
        %s551 = smul.u32 4, 1
        %s552 = smul.u32 %s551, 2
        %s553 = smul.u32 %s552, 1
        %s554 = sshll.u32 %s553, 4
        %555 = dma.done %s550, %s554
      $region132: #{unet_block_forward.4} parent=39 // pred_fallthru
        _
      %v556 = vld [vmem:[#allocation2] sm:$0xff]
      %s557 = scalar_lea.vmem [#allocation2], 8
      %v558 = vld [vmem:[%s557] sm:$0xff]
      %s559 = scalar_select %p320, 1, 0
      %s560 = scvt.s32.f32 %s559
      %s561 = scalar_select %p377, 1, 0
      %s562 = scvt.s32.f32 %s561
      %v563 = vunpack.c.l.bf16 %v556
      %v564 = vunpack.c.h.bf16 %v556
      %v565 = vmul.f32 %v563, %v475
      %v566 = vmul.f32 %v564, %v475
      %v567 = vadd.f32 %v565, %v497
      %v568 = vadd.f32 %v566, %v497
      %v569 = vmax.f32 %v567, 0.0
      %v570 = vmax.f32 %v568, 0.0
      %v571 = vstv %s560
      %v572 = vmul.f32 %v569, %v571
      %v573 = vmul.f32 %v570, %v571
      %v574 = vpack.c.bf16 %v573, %v572
      %v575 = vunpack.c.l.bf16 %v558
      %v576 = vunpack.c.h.bf16 %v558
      %v577 = vmul.f32 %v575, %v475
      %v578 = vmul.f32 %v576, %v475
      %v579 = vadd.f32 %v577, %v497
      %v580 = vadd.f32 %v578, %v497
      %v581 = vmax.f32 %v579, 0.0
      %v582 = vmax.f32 %v580, 0.0
      %v583 = vstv %s562
      %v584 = vmul.f32 %v581, %v583
      %v585 = vmul.f32 %v582, %v583
      %v586 = vpack.c.bf16 %v585, %v584
      %v588 = vshrl.u32 %v574, 16
      %v590 = vrot.slane %v588, 7
      %v591 = vshll.u32 %v574, 16
      %v593 = vor.u32 %v590, %v591
      %v595 = vshrl.u32 %v531, 16
      %v597 = vrot.slane %v595, 7
      %v598 = vshll.u32 %v531, 16
      %v600 = vor.u32 %v597, %v598
      %v602 = vshrl.u32 %v532, 16
      %v604 = vrot.slane %v602, 7
      %v605 = vshll.u32 %v532, 16
      %v607 = vor.u32 %v604, %v605
      %v609 = vshrl.u32 %v533, 16
      %v611 = vrot.slane %v609, 7
      %v612 = vshll.u32 %v533, 16
      %v614 = vor.u32 %v611, %v612
      %v616 = vshrl.u32 %v534, 16
      %v618 = vrot.slane %v616, 7
      %v619 = vshll.u32 %v534, 16
      %v621 = vor.u32 %v618, %v619
      %v623 = vshrl.u32 %v535, 16
      %v625 = vrot.slane %v623, 7
      %v626 = vshll.u32 %v535, 16
      %v628 = vor.u32 %v625, %v626
      %v630 = vshrl.u32 %v536, 16
      %v632 = vrot.slane %v630, 7
      %v633 = vshll.u32 %v536, 16
      %v635 = vor.u32 %v632, %v633
      %v637 = vshrl.u32 %v537, 16
      %v639 = vrot.slane %v637, 7
      %v640 = vshll.u32 %v537, 16
      %v642 = vor.u32 %v639, %v640
      %v644 = vshrl.u32 %v538, 16
      %v646 = vrot.slane %v644, 7
      %v647 = vshll.u32 %v538, 16
      %v649 = vor.u32 %v646, %v647
      %v651 = vshrl.u32 %v586, 16
      %v653 = vrot.slane %v651, 7
      %v654 = vshll.u32 %v586, 16
      %v656 = vor.u32 %v653, %v654
      %vm667 = vcmask 1040384
      %vm668 = vsmask.f32 256
      %vm669 = vmand %vm667, %vm668
      %v670 = vsel %vm669, 0, %v593
      %v671 = vsel %vm669, 0, %v600
      %v672 = vsel %vm669, 0, %v607
      %v673 = vsel %vm669, 0, %v614
      %v674 = vsel %vm669, 0, %v621
      %v675 = vsel %vm669, 0, %v628
      %v676 = vsel %vm669, 0, %v635
      %v677 = vsel %vm669, 0, %v642
      %v678 = vsel %vm669, 0, %v649
      %v679 = vsel %vm669, 0, %v656
      %v680 = vrot.slane %v591, 1
      %v681 = vor.u32 %v588, %v680
      %v682 = vrot.slane %v598, 1
      %v683 = vor.u32 %v595, %v682
      %v684 = vrot.slane %v605, 1
      %v685 = vor.u32 %v602, %v684
      %v686 = vrot.slane %v612, 1
      %v687 = vor.u32 %v609, %v686
      %v688 = vrot.slane %v619, 1
      %v689 = vor.u32 %v616, %v688
      %v690 = vrot.slane %v626, 1
      %v691 = vor.u32 %v623, %v690
      %v692 = vrot.slane %v633, 1
      %v693 = vor.u32 %v630, %v692
      %v694 = vrot.slane %v640, 1
      %v695 = vor.u32 %v637, %v694
      %v696 = vrot.slane %v647, 1
      %v697 = vor.u32 %v644, %v696
      %v698 = vrot.slane %v654, 1
      %v699 = vor.u32 %v651, %v698
      %vm710 = vcmask 1047552
      %vm711 = vsmask.f32 7424
      %vm712 = vmand %vm710, %vm711
      %v713 = vsel %vm712, %v681, 0
      %v714 = vsel %vm712, %v683, 0
      %v715 = vsel %vm712, %v685, 0
      %v716 = vsel %vm712, %v687, 0
      %v717 = vsel %vm712, %v689, 0
      %v718 = vsel %vm712, %v691, 0
      %v719 = vsel %vm712, %v693, 0
      %v720 = vsel %vm712, %v695, 0
      %v721 = vsel %vm712, %v697, 0
      %v722 = vsel %vm712, %v699, 0
      %v723 = vld [vmem:[%s4] sm:$0xf]
      %v724 = vld [vmem:[%s4 + $0x4] sm:$0xf]
      %v725 = vld [vmem:[%s4 + $0x8] sm:$0xf]
      %v726 = vld [vmem:[%s4 + $0xc] sm:$0xf]
      %v727 = vld [vmem:[%s4 + $0x10] sm:$0xf]
      %v728 = vld [vmem:[%s4 + $0x14] sm:$0xf]
      %v729 = vld [vmem:[%s4 + $0x18] sm:$0xf]
      %v730 = vld [vmem:[%s4 + $0x1c] sm:$0xf]
      %v731 = vld [vmem:[%s4 + $0x20] sm:$0xf]
      %v732 = vld [vmem:[%s4 + $0x24] sm:$0xf]
      %v733 = vld [vmem:[%s4 + $0x28] sm:$0xf]
      %v734 = vld [vmem:[%s4 + $0x2c] sm:$0xf]
      %v735 = vld [vmem:[%s4 + $0x30] sm:$0xf]
      %v736 = vld [vmem:[%s4 + $0x34] sm:$0xf]
      %v737 = vld [vmem:[%s4 + $0x38] sm:$0xf]
      %v738 = vld [vmem:[%s4 + $0x3c] sm:$0xf]
      %v739 = vld [vmem:[%s4 + $0x40] sm:$0xf]
      %v740 = vld [vmem:[%s4 + $0x44] sm:$0xf]
      %v741 = vld [vmem:[%s4 + $0x48] sm:$0xf]
      %v742 = vld [vmem:[%s4 + $0x4c] sm:$0xf]
      %v743 = vld [vmem:[%s4 + $0x50] sm:$0xf]
      %v744 = vld [vmem:[%s4 + $0x54] sm:$0xf]
      %v745 = vld [vmem:[%s4 + $0x58] sm:$0xf]
      %v746 = vld [vmem:[%s4 + $0x5c] sm:$0xf]
      %v747 = vld [vmem:[%s4 + $0x60] sm:$0xf]
      %v748 = vld [vmem:[%s4 + $0x64] sm:$0xf]
      %v749 = vld [vmem:[%s4 + $0x68] sm:$0xf]
      %v750 = vld [vmem:[%s4 + $0x6c] sm:$0xf]
      %v751 = vld [vmem:[%s4 + $0x70] sm:$0xf]
      %v752 = vld [vmem:[%s4 + $0x74] sm:$0xf]
      %v753 = vld [vmem:[%s4 + $0x78] sm:$0xf]
      %v754 = vld [vmem:[%s4 + $0x7c] sm:$0xf]
      %v755 = vld [vmem:[%s4 + $0x80] sm:$0xf]
      %v756 = vld [vmem:[%s4 + $0x84] sm:$0xf]
      %v757 = vld [vmem:[%s4 + $0x88] sm:$0xf]
      %v758 = vld [vmem:[%s4 + $0x8c] sm:$0xf]
      %v759 = vld [vmem:[%s4 + $0x90] sm:$0xf]
      %v760 = vld [vmem:[%s4 + $0x94] sm:$0xf]
      %v761 = vld [vmem:[%s4 + $0x98] sm:$0xf]
      %v762 = vld [vmem:[%s4 + $0x9c] sm:$0xf]
      %v763 = vld [vmem:[%s4 + $0xa0] sm:$0xf]
      %v764 = vld [vmem:[%s4 + $0xa4] sm:$0xf]
      %v765 = vld [vmem:[%s4 + $0xa8] sm:$0xf]
      %v766 = vld [vmem:[%s4 + $0xac] sm:$0xf]
      %v767 = vld [vmem:[%s4 + $0xb0] sm:$0xf]
      %v768 = vld [vmem:[%s4 + $0xb4] sm:$0xf]
      %v769 = vld [vmem:[%s4 + $0xb8] sm:$0xf]
      %v770 = vld [vmem:[%s4 + $0xbc] sm:$0xf]
      %s771 = scalar_lea.vmem %s4, 192
      %v772 = vld [vmem:[%s771] sm:$0xf]
      %v773 = vld [vmem:[%s771 + $0x4] sm:$0xf]
      %v774 = vld [vmem:[%s771 + $0x8] sm:$0xf]
      %v775 = vld [vmem:[%s771 + $0xc] sm:$0xf]
      %v776 = vld [vmem:[%s771 + $0x10] sm:$0xf]
      %v777 = vld [vmem:[%s771 + $0x14] sm:$0xf]
      %v778 = vld [vmem:[%s771 + $0x18] sm:$0xf]
      %v779 = vld [vmem:[%s771 + $0x1c] sm:$0xf]
      %v780 = vld [vmem:[%s771 + $0x20] sm:$0xf]
      %v781 = vld [vmem:[%s771 + $0x24] sm:$0xf]
      %v782 = vld [vmem:[%s771 + $0x28] sm:$0xf]
      %v783 = vld [vmem:[%s771 + $0x2c] sm:$0xf]
      %v784 = vld [vmem:[%s771 + $0x30] sm:$0xf]
      %v785 = vld [vmem:[%s771 + $0x34] sm:$0xf]
      %v786 = vld [vmem:[%s771 + $0x38] sm:$0xf]
      %v787 = vld [vmem:[%s771 + $0x3c] sm:$0xf]
      %v788 = vld [vmem:[%s771 + $0x40] sm:$0xf]
      %v789 = vld [vmem:[%s771 + $0x44] sm:$0xf]
      %v790 = vld [vmem:[%s771 + $0x48] sm:$0xf]
      %v791 = vld [vmem:[%s771 + $0x4c] sm:$0xf]
      %v792 = vld [vmem:[%s771 + $0x50] sm:$0xf]
      %v793 = vld [vmem:[%s771 + $0x54] sm:$0xf]
      %v794 = vld [vmem:[%s771 + $0x58] sm:$0xf]
      %v795 = vld [vmem:[%s771 + $0x5c] sm:$0xf]
      %v796 = vld [vmem:[%s771 + $0x60] sm:$0xf]
      %v797 = vld [vmem:[%s771 + $0x64] sm:$0xf]
      %v798 = vld [vmem:[%s771 + $0x68] sm:$0xf]
      %v799 = vld [vmem:[%s771 + $0x6c] sm:$0xf]
      %v800 = vld [vmem:[%s771 + $0x70] sm:$0xf]
      %v801 = vld [vmem:[%s771 + $0x74] sm:$0xf]
      %v802 = vld [vmem:[%s771 + $0x78] sm:$0xf]
      %v803 = vld [vmem:[%s771 + $0x7c] sm:$0xf]
      %v804 = vld [vmem:[%s771 + $0x80] sm:$0xf]
      %v805 = vld [vmem:[%s771 + $0x84] sm:$0xf]
      %v806 = vld [vmem:[%s771 + $0x88] sm:$0xf]
      %v807 = vld [vmem:[%s771 + $0x8c] sm:$0xf]
      %v808 = vld [vmem:[%s771 + $0x90] sm:$0xf]
      %v809 = vld [vmem:[%s771 + $0x94] sm:$0xf]
      %v810 = vld [vmem:[%s771 + $0x98] sm:$0xf]
      %v811 = vld [vmem:[%s771 + $0x9c] sm:$0xf]
      %v812 = vld [vmem:[%s771 + $0xa0] sm:$0xf]
      %v813 = vld [vmem:[%s771 + $0xa4] sm:$0xf]
      %v814 = vld [vmem:[%s771 + $0xa8] sm:$0xf]
      %v815 = vld [vmem:[%s771 + $0xac] sm:$0xf]
      %v816 = vld [vmem:[%s771 + $0xb0] sm:$0xf]
      %v817 = vld [vmem:[%s771 + $0xb4] sm:$0xf]
      %v818 = vld [vmem:[%s771 + $0xb8] sm:$0xf]
      %v819 = vld [vmem:[%s771 + $0xbc] sm:$0xf]
      %v868 = vunpack.c.l.b16 %v772
      %v869 = vunpack.c.l.b16 %v773
      %v870 = vunpack.c.l.b16 %v774
      %v871 = vunpack.c.l.b16 %v775
      %v872 = vunpack.c.l.b16 %v776
      %v873 = vunpack.c.l.b16 %v777
      %v874 = vunpack.c.l.b16 %v778
      %v875 = vunpack.c.l.b16 %v779
      %v876 = vunpack.c.l.b16 %v780
      %v877 = vunpack.c.l.b16 %v781
      %v878 = vunpack.c.l.b16 %v782
      %v879 = vunpack.c.l.b16 %v783
      %v880 = vunpack.c.l.b16 %v784
      %v881 = vunpack.c.l.b16 %v785
      %v882 = vunpack.c.l.b16 %v786
      %v883 = vunpack.c.l.b16 %v787
      %v884 = vunpack.c.l.b16 %v788
      %v885 = vunpack.c.l.b16 %v789
      %v886 = vunpack.c.l.b16 %v790
      %v887 = vunpack.c.l.b16 %v791
      %v888 = vunpack.c.l.b16 %v792
      %v889 = vunpack.c.l.b16 %v793
      %v890 = vunpack.c.l.b16 %v794
      %v891 = vunpack.c.l.b16 %v795
      %v892 = vunpack.c.l.b16 %v796
      %v893 = vunpack.c.l.b16 %v797
      %v894 = vunpack.c.l.b16 %v798
      %v895 = vunpack.c.l.b16 %v799
      %v896 = vunpack.c.l.b16 %v800
      %v897 = vunpack.c.l.b16 %v801
      %v898 = vunpack.c.l.b16 %v802
      %v899 = vunpack.c.l.b16 %v803
      %v900 = vunpack.c.l.b16 %v804
      %v901 = vunpack.c.l.b16 %v805
      %v902 = vunpack.c.l.b16 %v806
      %v903 = vunpack.c.l.b16 %v807
      %v904 = vunpack.c.l.b16 %v808
      %v905 = vunpack.c.l.b16 %v809
      %v906 = vunpack.c.l.b16 %v810
      %v907 = vunpack.c.l.b16 %v811
      %v908 = vunpack.c.l.b16 %v812
      %v909 = vunpack.c.l.b16 %v813
      %v910 = vunpack.c.l.b16 %v814
      %v911 = vunpack.c.l.b16 %v815
      %v912 = vunpack.c.l.b16 %v816
      %v913 = vunpack.c.l.b16 %v817
      %v914 = vunpack.c.l.b16 %v818
      %v915 = vunpack.c.l.b16 %v819
      %v916 = vpack.c.b16 %v869, %v868
      %v917 = vpack.c.b16 %v871, %v870
      %v918 = vpack.c.b16 %v873, %v872
      %v919 = vpack.c.b16 %v875, %v874
      %v920 = vpack.c.b16 %v877, %v876
      %v921 = vpack.c.b16 %v879, %v878
      %v922 = vpack.c.b16 %v881, %v880
      %v923 = vpack.c.b16 %v883, %v882
      %v924 = vpack.c.b16 %v885, %v884
      %v925 = vpack.c.b16 %v887, %v886
      %v926 = vpack.c.b16 %v889, %v888
      %v927 = vpack.c.b16 %v891, %v890
      %v928 = vpack.c.b16 %v893, %v892
      %v929 = vpack.c.b16 %v895, %v894
      %v930 = vpack.c.b16 %v897, %v896
      %v931 = vpack.c.b16 %v899, %v898
      %v932 = vpack.c.b16 %v901, %v900
      %v933 = vpack.c.b16 %v903, %v902
      %v934 = vpack.c.b16 %v905, %v904
      %v935 = vpack.c.b16 %v907, %v906
      %v936 = vpack.c.b16 %v909, %v908
      %v937 = vpack.c.b16 %v911, %v910
      %v938 = vpack.c.b16 %v913, %v912
      %v939 = vpack.c.b16 %v915, %v914
      %964 = vmatprep.subr.bf16.mxu0 0
      %965 = vmatpush1.bf16.msra.mxu0 %v916
      %966 = vmatprep.subr.bf16.mxu0 0
      %967 = vmatpush1.bf16.msra.mxu0 %v917
      %968 = vmatprep.subr.bf16.mxu0 0
      %969 = vmatpush1.bf16.msra.mxu0 %v918
      %970 = vmatprep.subr.bf16.mxu0 0
      %971 = vmatpush1.bf16.msra.mxu0 %v919
      %972 = vmatprep.subr.bf16.mxu0 0
      %973 = vmatpush1.bf16.msra.mxu0 %v920
      %974 = vmatprep.subr.bf16.mxu0 0
      %975 = vmatpush1.bf16.msra.mxu0 %v921
      %976 = vmatprep.subr.bf16.mxu0 0
      %977 = vmatpush1.bf16.msra.mxu0 %v922
      %978 = vmatprep.subr.bf16.mxu0 0
      %979 = vmatpush1.bf16.msra.mxu0 %v923
      %980 = vmatprep.subr.bf16.mxu0 0
      %981 = vmatpush1.bf16.msra.mxu0 %v924
      %982 = vmatprep.subr.bf16.mxu0 0
      %983 = vmatpush1.bf16.msra.mxu0 %v925
      %984 = vmatprep.subr.bf16.mxu0 0
      %985 = vmatpush1.bf16.msra.mxu0 %v926
      %986 = vmatprep.subr.bf16.mxu0 0
      %987 = vmatpush1.bf16.msra.mxu0 %v927
      %988 = vmatprep.subr.bf16.mxu0 0
      %989 = vmatpush1.bf16.msra.mxu0 %v928
      %990 = vmatprep.subr.bf16.mxu0 0
      %991 = vmatpush1.bf16.msra.mxu0 %v929
      %992 = vmatprep.subr.bf16.mxu0 0
      %993 = vmatpush1.bf16.msra.mxu0 %v930
      %994 = vmatprep.subr.bf16.mxu0 0
      %995 = vmatpush1.bf16.msra.mxu0 %v931
      %996 = vmatprep.mubr.bf16.mxu0 %v531
      %997 = vmatmul.mubr.bf16.gmra.mrb[0].mxu0 %v671
      %v998 = vpop.f32.mrb[0].mxu0
      %v999 = vadd.f32 0.0, %v998
      %v1000 = vpop.f32.mrb[0].mxu0
      %v1001 = vpop.f32.mrb[0].mxu0
      %v1002 = vadd.f32 0.0, %v1001
      %v1003 = vpop.f32.mrb[0].mxu0
      %1004 = vmatprep.mubr.bf16.mxu0 %v532
      %1005 = vmatmul.mubr.bf16.gmra.mrb[0].mxu0 %v672
      %v1006 = vpop.f32.mrb[0].mxu0
      %v1007 = vadd.f32 0.0, %v1006
      %v1008 = vpop.f32.mrb[0].mxu0
      %v1009 = vpop.f32.mrb[0].mxu0
      %v1010 = vadd.f32 0.0, %v1009
      %v1011 = vpop.f32.mrb[0].mxu0
      %1012 = vmatprep.mubr.bf16.mxu0 %v533
      %1013 = vmatmul.mubr.bf16.gmra.mrb[0].mxu0 %v673
      %v1014 = vpop.f32.mrb[0].mxu0
      %v1015 = vadd.f32 0.0, %v1014
      %v1016 = vpop.f32.mrb[0].mxu0
      %v1017 = vpop.f32.mrb[0].mxu0
      %v1018 = vadd.f32 0.0, %v1017
      %v1019 = vpop.f32.mrb[0].mxu0
      %1020 = vmatprep.mubr.bf16.mxu0 %v534
      %1021 = vmatmul.mubr.bf16.gmra.mrb[0].mxu0 %v674
      %v1022 = vpop.f32.mrb[0].mxu0
      %v1023 = vadd.f32 0.0, %v1022
      %v1024 = vpop.f32.mrb[0].mxu0
      %v1025 = vpop.f32.mrb[0].mxu0
      %v1026 = vadd.f32 0.0, %v1025
      %v1027 = vpop.f32.mrb[0].mxu0
      %1028 = vmatprep.mubr.bf16.mxu0 %v535
      %1029 = vmatmul.mubr.bf16.gmra.mrb[0].mxu0 %v675
      %v1030 = vpop.f32.mrb[0].mxu0
      %v1031 = vadd.f32 0.0, %v1030
      %v1032 = vpop.f32.mrb[0].mxu0
      %v1033 = vpop.f32.mrb[0].mxu0
      %v1034 = vadd.f32 0.0, %v1033
      %v1035 = vpop.f32.mrb[0].mxu0
      %1036 = vmatprep.mubr.bf16.mxu0 %v536
      %1037 = vmatmul.mubr.bf16.gmra.mrb[0].mxu0 %v676
      %v1038 = vpop.f32.mrb[0].mxu0
      %v1039 = vadd.f32 0.0, %v1038
      %v1040 = vpop.f32.mrb[0].mxu0
      %v1041 = vpop.f32.mrb[0].mxu0
      %v1042 = vadd.f32 0.0, %v1041
      %v1043 = vpop.f32.mrb[0].mxu0
      %1044 = vmatprep.mubr.bf16.mxu0 %v537
      %1045 = vmatmul.mubr.bf16.gmra.mrb[0].mxu0 %v677
      %v1046 = vpop.f32.mrb[0].mxu0
      %v1047 = vadd.f32 0.0, %v1046
      %v1048 = vpop.f32.mrb[0].mxu0
      %v1049 = vpop.f32.mrb[0].mxu0
      %v1050 = vadd.f32 0.0, %v1049
      %v1051 = vpop.f32.mrb[0].mxu0
      %1052 = vmatprep.mubr.bf16.mxu0 %v538
      %1053 = vmatmul.mubr.bf16.gmra.mrb[0].mxu0 %v678
      %v1054 = vpop.f32.mrb[0].mxu0
      %v1055 = vadd.f32 0.0, %v1054
      %v1056 = vpop.f32.mrb[0].mxu0
      %v1057 = vpop.f32.mrb[0].mxu0
      %v1058 = vadd.f32 0.0, %v1057
      %v1059 = vpop.f32.mrb[0].mxu0
      %1060 = vdwg.mxu0
      %1061 = vmatprep.subr.bf16.mxu0 0
      %1062 = vmatpush1.bf16.msra.mxu0 %v932
      %1063 = vmatprep.subr.bf16.mxu0 0
      %1064 = vmatpush1.bf16.msra.mxu0 %v933
      %1065 = vmatprep.subr.bf16.mxu0 0
      %1066 = vmatpush1.bf16.msra.mxu0 %v934
      %1067 = vmatprep.subr.bf16.mxu0 0
      %1068 = vmatpush1.bf16.msra.mxu0 %v935
      %1069 = vmatprep.subr.bf16.mxu0 0
      %1070 = vmatpush1.bf16.msra.mxu0 %v936
      %1071 = vmatprep.subr.bf16.mxu0 0
      %1072 = vmatpush1.bf16.msra.mxu0 %v937
      %1073 = vmatprep.subr.bf16.mxu0 0
      %1074 = vmatpush1.bf16.msra.mxu0 %v938
      %1075 = vmatprep.subr.bf16.mxu0 0
      %1076 = vmatpush1.bf16.msra.mxu0 %v939
      %1077 = vmatprep.subr.bf16.mxu0 0
      %1078 = vmatpush1.bf16.msra.mxu0 0
      %1079 = vmatprep.subr.bf16.mxu0 0
      %1080 = vmatpush1.bf16.msra.mxu0 0
      %1081 = vmatprep.subr.bf16.mxu0 0
      %1082 = vmatpush1.bf16.msra.mxu0 0
      %1083 = vmatprep.subr.bf16.mxu0 0
      %1084 = vmatpush1.bf16.msra.mxu0 0
      %1085 = vmatprep.subr.bf16.mxu0 0
      %1086 = vmatpush1.bf16.msra.mxu0 0
      %1087 = vmatprep.subr.bf16.mxu0 0
      %1088 = vmatpush1.bf16.msra.mxu0 0
      %1089 = vmatprep.subr.bf16.mxu0 0
      %1090 = vmatpush1.bf16.msra.mxu0 0
      %1091 = vmatprep.subr.bf16.mxu0 0
      %1092 = vmatpush1.bf16.msra.mxu0 0
      %1093 = vmatprep.mubr.bf16.mxu0 0
      %1094 = vmatmul.mubr.bf16.gmra.mrb[0].mxu0 %v714
      %v1095 = vpop.f32.mrb[0].mxu0
      %v1096 = vadd.f32 %v999, %v1095
      %v1097 = vpop.f32.mrb[0].mxu0
      %v1098 = vpop.f32.mrb[0].mxu0
      %v1099 = vadd.f32 %v1002, %v1098
      %v1100 = vpop.f32.mrb[0].mxu0
      %1101 = vmatprep.mubr.bf16.mxu0 0
      %1102 = vmatmul.mubr.bf16.gmra.mrb[0].mxu0 %v715
      %v1103 = vpop.f32.mrb[0].mxu0
      %v1104 = vadd.f32 %v1007, %v1103
      %v1105 = vpop.f32.mrb[0].mxu0
      %v1106 = vpop.f32.mrb[0].mxu0
      %v1107 = vadd.f32 %v1010, %v1106
      %v1108 = vpop.f32.mrb[0].mxu0
      %1109 = vmatprep.mubr.bf16.mxu0 0
      %1110 = vmatmul.mubr.bf16.gmra.mrb[0].mxu0 %v716
      %v1111 = vpop.f32.mrb[0].mxu0
      %v1112 = vadd.f32 %v1015, %v1111
      %v1113 = vpop.f32.mrb[0].mxu0
      %v1114 = vpop.f32.mrb[0].mxu0
      %v1115 = vadd.f32 %v1018, %v1114
      %v1116 = vpop.f32.mrb[0].mxu0
      %1117 = vmatprep.mubr.bf16.mxu0 0
      %1118 = vmatmul.mubr.bf16.gmra.mrb[0].mxu0 %v717
      %v1119 = vpop.f32.mrb[0].mxu0
      %v1120 = vadd.f32 %v1023, %v1119
      %v1121 = vpop.f32.mrb[0].mxu0
      %v1122 = vpop.f32.mrb[0].mxu0
      %v1123 = vadd.f32 %v1026, %v1122
      %v1124 = vpop.f32.mrb[0].mxu0
      %1125 = vmatprep.mubr.bf16.mxu0 0
      %1126 = vmatmul.mubr.bf16.gmra.mrb[0].mxu0 %v718
      %v1127 = vpop.f32.mrb[0].mxu0
      %v1128 = vadd.f32 %v1031, %v1127
      %v1129 = vpop.f32.mrb[0].mxu0
      %v1130 = vpop.f32.mrb[0].mxu0
      %v1131 = vadd.f32 %v1034, %v1130
      %v1132 = vpop.f32.mrb[0].mxu0
      %1133 = vmatprep.mubr.bf16.mxu0 0
      %1134 = vmatmul.mubr.bf16.gmra.mrb[0].mxu0 %v719
      %v1135 = vpop.f32.mrb[0].mxu0
      %v1136 = vadd.f32 %v1039, %v1135
      %v1137 = vpop.f32.mrb[0].mxu0
      %v1138 = vpop.f32.mrb[0].mxu0
      %v1139 = vadd.f32 %v1042, %v1138
      %v1140 = vpop.f32.mrb[0].mxu0
      %1141 = vmatprep.mubr.bf16.mxu0 0
      %1142 = vmatmul.mubr.bf16.gmra.mrb[0].mxu0 %v720
      %v1143 = vpop.f32.mrb[0].mxu0
      %v1144 = vadd.f32 %v1047, %v1143
      %v1145 = vpop.f32.mrb[0].mxu0
      %v1146 = vpop.f32.mrb[0].mxu0
      %v1147 = vadd.f32 %v1050, %v1146
      %v1148 = vpop.f32.mrb[0].mxu0
      %1149 = vmatprep.mubr.bf16.mxu0 0
      %1150 = vmatmul.mubr.bf16.gmra.mrb[0].mxu0 %v721
      %v1151 = vpop.f32.mrb[0].mxu0
      %v1152 = vadd.f32 %v1055, %v1151
      %v1153 = vpop.f32.mrb[0].mxu0
      %v1154 = vpop.f32.mrb[0].mxu0
      %v1155 = vadd.f32 %v1058, %v1154
      %v1156 = vpop.f32.mrb[0].mxu0
      %1157 = vdwg.mxu0
      %v1206 = vunpack.c.l.b16 %v723
      %v1207 = vunpack.c.l.b16 %v724
      %v1208 = vunpack.c.l.b16 %v725
      %v1209 = vunpack.c.l.b16 %v726
      %v1210 = vunpack.c.l.b16 %v727
      %v1211 = vunpack.c.l.b16 %v728
      %v1212 = vunpack.c.l.b16 %v729
      %v1213 = vunpack.c.l.b16 %v730
      %v1214 = vunpack.c.l.b16 %v731
      %v1215 = vunpack.c.l.b16 %v732
      %v1216 = vunpack.c.l.b16 %v733
      %v1217 = vunpack.c.l.b16 %v734
      %v1218 = vunpack.c.l.b16 %v735
      %v1219 = vunpack.c.l.b16 %v736
      %v1220 = vunpack.c.l.b16 %v737
      %v1221 = vunpack.c.l.b16 %v738
      %v1222 = vunpack.c.l.b16 %v739
      %v1223 = vunpack.c.l.b16 %v740
      %v1224 = vunpack.c.l.b16 %v741
      %v1225 = vunpack.c.l.b16 %v742
      %v1226 = vunpack.c.l.b16 %v743
      %v1227 = vunpack.c.l.b16 %v744
      %v1228 = vunpack.c.l.b16 %v745
      %v1229 = vunpack.c.l.b16 %v746
      %v1230 = vunpack.c.l.b16 %v747
      %v1231 = vunpack.c.l.b16 %v748
      %v1232 = vunpack.c.l.b16 %v749
      %v1233 = vunpack.c.l.b16 %v750
      %v1234 = vunpack.c.l.b16 %v751
      %v1235 = vunpack.c.l.b16 %v752
      %v1236 = vunpack.c.l.b16 %v753
      %v1237 = vunpack.c.l.b16 %v754
      %v1238 = vunpack.c.l.b16 %v755
      %v1239 = vunpack.c.l.b16 %v756
      %v1240 = vunpack.c.l.b16 %v757
      %v1241 = vunpack.c.l.b16 %v758
      %v1242 = vunpack.c.l.b16 %v759
      %v1243 = vunpack.c.l.b16 %v760
      %v1244 = vunpack.c.l.b16 %v761
      %v1245 = vunpack.c.l.b16 %v762
      %v1246 = vunpack.c.l.b16 %v763
      %v1247 = vunpack.c.l.b16 %v764
      %v1248 = vunpack.c.l.b16 %v765
      %v1249 = vunpack.c.l.b16 %v766
      %v1250 = vunpack.c.l.b16 %v767
      %v1251 = vunpack.c.l.b16 %v768
      %v1252 = vunpack.c.l.b16 %v769
      %v1253 = vunpack.c.l.b16 %v770
      %v1254 = vpack.c.b16 %v1207, %v1206
      %v1255 = vpack.c.b16 %v1209, %v1208
      %v1256 = vpack.c.b16 %v1211, %v1210
      %v1257 = vpack.c.b16 %v1213, %v1212
      %v1258 = vpack.c.b16 %v1215, %v1214
      %v1259 = vpack.c.b16 %v1217, %v1216
      %v1260 = vpack.c.b16 %v1219, %v1218
      %v1261 = vpack.c.b16 %v1221, %v1220
      %v1262 = vpack.c.b16 %v1223, %v1222
      %v1263 = vpack.c.b16 %v1225, %v1224
      %v1264 = vpack.c.b16 %v1227, %v1226
      %v1265 = vpack.c.b16 %v1229, %v1228
      %v1266 = vpack.c.b16 %v1231, %v1230
      %v1267 = vpack.c.b16 %v1233, %v1232
      %v1268 = vpack.c.b16 %v1235, %v1234
      %v1269 = vpack.c.b16 %v1237, %v1236
      %v1270 = vpack.c.b16 %v1239, %v1238
      %v1271 = vpack.c.b16 %v1241, %v1240
      %v1272 = vpack.c.b16 %v1243, %v1242
      %v1273 = vpack.c.b16 %v1245, %v1244
      %v1274 = vpack.c.b16 %v1247, %v1246
      %v1275 = vpack.c.b16 %v1249, %v1248
      %v1276 = vpack.c.b16 %v1251, %v1250
      %v1277 = vpack.c.b16 %v1253, %v1252
      %1302 = vmatprep.subr.bf16.mxu0 0
      %1303 = vmatpush1.bf16.msra.mxu0 %v1254
      %1304 = vmatprep.subr.bf16.mxu0 0
      %1305 = vmatpush1.bf16.msra.mxu0 %v1255
      %1306 = vmatprep.subr.bf16.mxu0 0
      %1307 = vmatpush1.bf16.msra.mxu0 %v1256
      %1308 = vmatprep.subr.bf16.mxu0 0
      %1309 = vmatpush1.bf16.msra.mxu0 %v1257
      %1310 = vmatprep.subr.bf16.mxu0 0
      %1311 = vmatpush1.bf16.msra.mxu0 %v1258
      %1312 = vmatprep.subr.bf16.mxu0 0
      %1313 = vmatpush1.bf16.msra.mxu0 %v1259
      %1314 = vmatprep.subr.bf16.mxu0 0
      %1315 = vmatpush1.bf16.msra.mxu0 %v1260
      %1316 = vmatprep.subr.bf16.mxu0 0
      %1317 = vmatpush1.bf16.msra.mxu0 %v1261
      %1318 = vmatprep.subr.bf16.mxu0 0
      %1319 = vmatpush1.bf16.msra.mxu0 %v1262
      %1320 = vmatprep.subr.bf16.mxu0 0
      %1321 = vmatpush1.bf16.msra.mxu0 %v1263
      %1322 = vmatprep.subr.bf16.mxu0 0
      %1323 = vmatpush1.bf16.msra.mxu0 %v1264
      %1324 = vmatprep.subr.bf16.mxu0 0
      %1325 = vmatpush1.bf16.msra.mxu0 %v1265
      %1326 = vmatprep.subr.bf16.mxu0 0
      %1327 = vmatpush1.bf16.msra.mxu0 %v1266
      %1328 = vmatprep.subr.bf16.mxu0 0
      %1329 = vmatpush1.bf16.msra.mxu0 %v1267
      %1330 = vmatprep.subr.bf16.mxu0 0
      %1331 = vmatpush1.bf16.msra.mxu0 %v1268
      %1332 = vmatprep.subr.bf16.mxu0 0
      %1333 = vmatpush1.bf16.msra.mxu0 %v1269
      %1334 = vmatprep.mubr.bf16.mxu0 %v574
      %1335 = vmatmul.mubr.bf16.gmra.mrb[0].mxu0 %v670
      %v1336 = vpop.f32.mrb[0].mxu0
      %v1337 = vadd.f32 %v1096, %v1336
      %v1338 = vpop.f32.mrb[0].mxu0
      %v1339 = vpop.f32.mrb[0].mxu0
      %v1340 = vadd.f32 %v1099, %v1339
      %v1341 = vpop.f32.mrb[0].mxu0
      %1342 = vmatprep.mubr.bf16.mxu0 %v531
      %1343 = vmatmul.mubr.bf16.gmra.mrb[0].mxu0 %v671
      %v1344 = vpop.f32.mrb[0].mxu0
      %v1345 = vadd.f32 %v1104, %v1344
      %v1346 = vpop.f32.mrb[0].mxu0
      %v1347 = vpop.f32.mrb[0].mxu0
      %v1348 = vadd.f32 %v1107, %v1347
      %v1349 = vpop.f32.mrb[0].mxu0
      %1350 = vmatprep.mubr.bf16.mxu0 %v532
      %1351 = vmatmul.mubr.bf16.gmra.mrb[0].mxu0 %v672
      %v1352 = vpop.f32.mrb[0].mxu0
      %v1353 = vadd.f32 %v1112, %v1352
      %v1354 = vpop.f32.mrb[0].mxu0
      %v1355 = vpop.f32.mrb[0].mxu0
      %v1356 = vadd.f32 %v1115, %v1355
      %v1357 = vpop.f32.mrb[0].mxu0
      %1358 = vmatprep.mubr.bf16.mxu0 %v533
      %1359 = vmatmul.mubr.bf16.gmra.mrb[0].mxu0 %v673
      %v1360 = vpop.f32.mrb[0].mxu0
      %v1361 = vadd.f32 %v1120, %v1360
      %v1362 = vpop.f32.mrb[0].mxu0
      %v1363 = vpop.f32.mrb[0].mxu0
      %v1364 = vadd.f32 %v1123, %v1363
      %v1365 = vpop.f32.mrb[0].mxu0
      %1366 = vmatprep.mubr.bf16.mxu0 %v534
      %1367 = vmatmul.mubr.bf16.gmra.mrb[0].mxu0 %v674
      %v1368 = vpop.f32.mrb[0].mxu0
      %v1369 = vadd.f32 %v1128, %v1368
      %v1370 = vpop.f32.mrb[0].mxu0
      %v1371 = vpop.f32.mrb[0].mxu0
      %v1372 = vadd.f32 %v1131, %v1371
      %v1373 = vpop.f32.mrb[0].mxu0
      %1374 = vmatprep.mubr.bf16.mxu0 %v535
      %1375 = vmatmul.mubr.bf16.gmra.mrb[0].mxu0 %v675
      %v1376 = vpop.f32.mrb[0].mxu0
      %v1377 = vadd.f32 %v1136, %v1376
      %v1378 = vpop.f32.mrb[0].mxu0
      %v1379 = vpop.f32.mrb[0].mxu0
      %v1380 = vadd.f32 %v1139, %v1379
      %v1381 = vpop.f32.mrb[0].mxu0
      %1382 = vmatprep.mubr.bf16.mxu0 %v536
      %1383 = vmatmul.mubr.bf16.gmra.mrb[0].mxu0 %v676
      %v1384 = vpop.f32.mrb[0].mxu0
      %v1385 = vadd.f32 %v1144, %v1384
      %v1386 = vpop.f32.mrb[0].mxu0
      %v1387 = vpop.f32.mrb[0].mxu0
      %v1388 = vadd.f32 %v1147, %v1387
      %v1389 = vpop.f32.mrb[0].mxu0
      %1390 = vmatprep.mubr.bf16.mxu0 %v537
      %1391 = vmatmul.mubr.bf16.gmra.mrb[0].mxu0 %v677
      %v1392 = vpop.f32.mrb[0].mxu0
      %v1393 = vadd.f32 %v1152, %v1392
      %v1394 = vpop.f32.mrb[0].mxu0
      %v1395 = vpop.f32.mrb[0].mxu0
      %v1396 = vadd.f32 %v1155, %v1395
      %v1397 = vpop.f32.mrb[0].mxu0
      %1398 = vdwg.mxu0
      %1399 = vmatprep.subr.bf16.mxu0 0
      %1400 = vmatpush1.bf16.msra.mxu0 %v1270
      %1401 = vmatprep.subr.bf16.mxu0 0
      %1402 = vmatpush1.bf16.msra.mxu0 %v1271
      %1403 = vmatprep.subr.bf16.mxu0 0
      %1404 = vmatpush1.bf16.msra.mxu0 %v1272
      %1405 = vmatprep.subr.bf16.mxu0 0
      %1406 = vmatpush1.bf16.msra.mxu0 %v1273
      %1407 = vmatprep.subr.bf16.mxu0 0
      %1408 = vmatpush1.bf16.msra.mxu0 %v1274
      %1409 = vmatprep.subr.bf16.mxu0 0
      %1410 = vmatpush1.bf16.msra.mxu0 %v1275
      %1411 = vmatprep.subr.bf16.mxu0 0
      %1412 = vmatpush1.bf16.msra.mxu0 %v1276
      %1413 = vmatprep.subr.bf16.mxu0 0
      %1414 = vmatpush1.bf16.msra.mxu0 %v1277
      %1415 = vmatprep.subr.bf16.mxu0 0
      %1416 = vmatpush1.bf16.msra.mxu0 0
      %1417 = vmatprep.subr.bf16.mxu0 0
      %1418 = vmatpush1.bf16.msra.mxu0 0
      %1419 = vmatprep.subr.bf16.mxu0 0
      %1420 = vmatpush1.bf16.msra.mxu0 0
      %1421 = vmatprep.subr.bf16.mxu0 0
      %1422 = vmatpush1.bf16.msra.mxu0 0
      %1423 = vmatprep.subr.bf16.mxu0 0
      %1424 = vmatpush1.bf16.msra.mxu0 0
      %1425 = vmatprep.subr.bf16.mxu0 0
      %1426 = vmatpush1.bf16.msra.mxu0 0
      %1427 = vmatprep.subr.bf16.mxu0 0
      %1428 = vmatpush1.bf16.msra.mxu0 0
      %1429 = vmatprep.subr.bf16.mxu0 0
      %1430 = vmatpush1.bf16.msra.mxu0 0
      %1431 = vmatprep.mubr.bf16.mxu0 0
      %1432 = vmatmul.mubr.bf16.gmra.mrb[0].mxu0 %v713
      %v1433 = vpop.f32.mrb[0].mxu0
      %v1434 = vadd.f32 %v1337, %v1433
      %v1435 = vpop.f32.mrb[0].mxu0
      %v1436 = vpop.f32.mrb[0].mxu0
      %v1437 = vadd.f32 %v1340, %v1436
      %v1438 = vpop.f32.mrb[0].mxu0
      %1439 = vmatprep.mubr.bf16.mxu0 0
      %1440 = vmatmul.mubr.bf16.gmra.mrb[0].mxu0 %v714
      %v1441 = vpop.f32.mrb[0].mxu0
      %v1442 = vadd.f32 %v1345, %v1441
      %v1443 = vpop.f32.mrb[0].mxu0
      %v1444 = vpop.f32.mrb[0].mxu0
      %v1445 = vadd.f32 %v1348, %v1444
      %v1446 = vpop.f32.mrb[0].mxu0
      %1447 = vmatprep.mubr.bf16.mxu0 0
      %1448 = vmatmul.mubr.bf16.gmra.mrb[0].mxu0 %v715
      %v1449 = vpop.f32.mrb[0].mxu0
      %v1450 = vadd.f32 %v1353, %v1449
      %v1451 = vpop.f32.mrb[0].mxu0
      %v1452 = vpop.f32.mrb[0].mxu0
      %v1453 = vadd.f32 %v1356, %v1452
      %v1454 = vpop.f32.mrb[0].mxu0
      %1455 = vmatprep.mubr.bf16.mxu0 0
      %1456 = vmatmul.mubr.bf16.gmra.mrb[0].mxu0 %v716
      %v1457 = vpop.f32.mrb[0].mxu0
      %v1458 = vadd.f32 %v1361, %v1457
      %v1459 = vpop.f32.mrb[0].mxu0
      %v1460 = vpop.f32.mrb[0].mxu0
      %v1461 = vadd.f32 %v1364, %v1460
      %v1462 = vpop.f32.mrb[0].mxu0
      %1463 = vmatprep.mubr.bf16.mxu0 0
      %1464 = vmatmul.mubr.bf16.gmra.mrb[0].mxu0 %v717
      %v1465 = vpop.f32.mrb[0].mxu0
      %v1466 = vadd.f32 %v1369, %v1465
      %v1467 = vpop.f32.mrb[0].mxu0
      %v1468 = vpop.f32.mrb[0].mxu0
      %v1469 = vadd.f32 %v1372, %v1468
      %v1470 = vpop.f32.mrb[0].mxu0
      %1471 = vmatprep.mubr.bf16.mxu0 0
      %1472 = vmatmul.mubr.bf16.gmra.mrb[0].mxu0 %v718
      %v1473 = vpop.f32.mrb[0].mxu0
      %v1474 = vadd.f32 %v1377, %v1473
      %v1475 = vpop.f32.mrb[0].mxu0
      %v1476 = vpop.f32.mrb[0].mxu0
      %v1477 = vadd.f32 %v1380, %v1476
      %v1478 = vpop.f32.mrb[0].mxu0
      %1479 = vmatprep.mubr.bf16.mxu0 0
      %1480 = vmatmul.mubr.bf16.gmra.mrb[0].mxu0 %v719
      %v1481 = vpop.f32.mrb[0].mxu0
      %v1482 = vadd.f32 %v1385, %v1481
      %v1483 = vpop.f32.mrb[0].mxu0
      %v1484 = vpop.f32.mrb[0].mxu0
      %v1485 = vadd.f32 %v1388, %v1484
      %v1486 = vpop.f32.mrb[0].mxu0
      %1487 = vmatprep.mubr.bf16.mxu0 0
      %1488 = vmatmul.mubr.bf16.gmra.mrb[0].mxu0 %v720
      %v1489 = vpop.f32.mrb[0].mxu0
      %v1490 = vadd.f32 %v1393, %v1489
      %v1491 = vpop.f32.mrb[0].mxu0
      %v1492 = vpop.f32.mrb[0].mxu0
      %v1493 = vadd.f32 %v1396, %v1492
      %v1494 = vpop.f32.mrb[0].mxu0
      %1495 = vdwg.mxu0
      %s1496 = scalar_lea.vmem %s4, 384
      %v1497 = vld [vmem:[%s1496] sm:$0xf]
      %v1498 = vld [vmem:[%s1496 + $0x4] sm:$0xf]
      %v1499 = vld [vmem:[%s1496 + $0x8] sm:$0xf]
      %v1500 = vld [vmem:[%s1496 + $0xc] sm:$0xf]
      %v1501 = vld [vmem:[%s1496 + $0x10] sm:$0xf]
      %v1502 = vld [vmem:[%s1496 + $0x14] sm:$0xf]
      %v1503 = vld [vmem:[%s1496 + $0x18] sm:$0xf]
      %v1504 = vld [vmem:[%s1496 + $0x1c] sm:$0xf]
      %v1505 = vld [vmem:[%s1496 + $0x20] sm:$0xf]
      %v1506 = vld [vmem:[%s1496 + $0x24] sm:$0xf]
      %v1507 = vld [vmem:[%s1496 + $0x28] sm:$0xf]
      %v1508 = vld [vmem:[%s1496 + $0x2c] sm:$0xf]
      %v1509 = vld [vmem:[%s1496 + $0x30] sm:$0xf]
      %v1510 = vld [vmem:[%s1496 + $0x34] sm:$0xf]
      %v1511 = vld [vmem:[%s1496 + $0x38] sm:$0xf]
      %v1512 = vld [vmem:[%s1496 + $0x3c] sm:$0xf]
      %v1513 = vld [vmem:[%s1496 + $0x40] sm:$0xf]
      %v1514 = vld [vmem:[%s1496 + $0x44] sm:$0xf]
      %v1515 = vld [vmem:[%s1496 + $0x48] sm:$0xf]
      %v1516 = vld [vmem:[%s1496 + $0x4c] sm:$0xf]
      %v1517 = vld [vmem:[%s1496 + $0x50] sm:$0xf]
      %v1518 = vld [vmem:[%s1496 + $0x54] sm:$0xf]
      %v1519 = vld [vmem:[%s1496 + $0x58] sm:$0xf]
      %v1520 = vld [vmem:[%s1496 + $0x5c] sm:$0xf]
      %v1521 = vld [vmem:[%s1496 + $0x60] sm:$0xf]
      %v1522 = vld [vmem:[%s1496 + $0x64] sm:$0xf]
      %v1523 = vld [vmem:[%s1496 + $0x68] sm:$0xf]
      %v1524 = vld [vmem:[%s1496 + $0x6c] sm:$0xf]
      %v1525 = vld [vmem:[%s1496 + $0x70] sm:$0xf]
      %v1526 = vld [vmem:[%s1496 + $0x74] sm:$0xf]
      %v1527 = vld [vmem:[%s1496 + $0x78] sm:$0xf]
      %v1528 = vld [vmem:[%s1496 + $0x7c] sm:$0xf]
      %v1529 = vld [vmem:[%s1496 + $0x80] sm:$0xf]
      %v1530 = vld [vmem:[%s1496 + $0x84] sm:$0xf]
      %v1531 = vld [vmem:[%s1496 + $0x88] sm:$0xf]
      %v1532 = vld [vmem:[%s1496 + $0x8c] sm:$0xf]
      %v1533 = vld [vmem:[%s1496 + $0x90] sm:$0xf]
      %v1534 = vld [vmem:[%s1496 + $0x94] sm:$0xf]
      %v1535 = vld [vmem:[%s1496 + $0x98] sm:$0xf]
      %v1536 = vld [vmem:[%s1496 + $0x9c] sm:$0xf]
      %v1537 = vld [vmem:[%s1496 + $0xa0] sm:$0xf]
      %v1538 = vld [vmem:[%s1496 + $0xa4] sm:$0xf]
      %v1539 = vld [vmem:[%s1496 + $0xa8] sm:$0xf]
      %v1540 = vld [vmem:[%s1496 + $0xac] sm:$0xf]
      %v1541 = vld [vmem:[%s1496 + $0xb0] sm:$0xf]
      %v1542 = vld [vmem:[%s1496 + $0xb4] sm:$0xf]
      %v1543 = vld [vmem:[%s1496 + $0xb8] sm:$0xf]
      %v1544 = vld [vmem:[%s1496 + $0xbc] sm:$0xf]
      %v1593 = vunpack.c.l.b16 %v1497
      %v1594 = vunpack.c.l.b16 %v1498
      %v1595 = vunpack.c.l.b16 %v1499
      %v1596 = vunpack.c.l.b16 %v1500
      %v1597 = vunpack.c.l.b16 %v1501
      %v1598 = vunpack.c.l.b16 %v1502
      %v1599 = vunpack.c.l.b16 %v1503
      %v1600 = vunpack.c.l.b16 %v1504
      %v1601 = vunpack.c.l.b16 %v1505
      %v1602 = vunpack.c.l.b16 %v1506
      %v1603 = vunpack.c.l.b16 %v1507
      %v1604 = vunpack.c.l.b16 %v1508
      %v1605 = vunpack.c.l.b16 %v1509
      %v1606 = vunpack.c.l.b16 %v1510
      %v1607 = vunpack.c.l.b16 %v1511
      %v1608 = vunpack.c.l.b16 %v1512
      %v1609 = vunpack.c.l.b16 %v1513
      %v1610 = vunpack.c.l.b16 %v1514
      %v1611 = vunpack.c.l.b16 %v1515
      %v1612 = vunpack.c.l.b16 %v1516
      %v1613 = vunpack.c.l.b16 %v1517
      %v1614 = vunpack.c.l.b16 %v1518
      %v1615 = vunpack.c.l.b16 %v1519
      %v1616 = vunpack.c.l.b16 %v1520
      %v1617 = vunpack.c.l.b16 %v1521
      %v1618 = vunpack.c.l.b16 %v1522
      %v1619 = vunpack.c.l.b16 %v1523
      %v1620 = vunpack.c.l.b16 %v1524
      %v1621 = vunpack.c.l.b16 %v1525
      %v1622 = vunpack.c.l.b16 %v1526
      %v1623 = vunpack.c.l.b16 %v1527
      %v1624 = vunpack.c.l.b16 %v1528
      %v1625 = vunpack.c.l.b16 %v1529
      %v1626 = vunpack.c.l.b16 %v1530
      %v1627 = vunpack.c.l.b16 %v1531
      %v1628 = vunpack.c.l.b16 %v1532
      %v1629 = vunpack.c.l.b16 %v1533
      %v1630 = vunpack.c.l.b16 %v1534
      %v1631 = vunpack.c.l.b16 %v1535
      %v1632 = vunpack.c.l.b16 %v1536
      %v1633 = vunpack.c.l.b16 %v1537
      %v1634 = vunpack.c.l.b16 %v1538
      %v1635 = vunpack.c.l.b16 %v1539
      %v1636 = vunpack.c.l.b16 %v1540
      %v1637 = vunpack.c.l.b16 %v1541
      %v1638 = vunpack.c.l.b16 %v1542
      %v1639 = vunpack.c.l.b16 %v1543
      %v1640 = vunpack.c.l.b16 %v1544
      %v1641 = vpack.c.b16 %v1594, %v1593
      %v1642 = vpack.c.b16 %v1596, %v1595
      %v1643 = vpack.c.b16 %v1598, %v1597
      %v1644 = vpack.c.b16 %v1600, %v1599
      %v1645 = vpack.c.b16 %v1602, %v1601
      %v1646 = vpack.c.b16 %v1604, %v1603
      %v1647 = vpack.c.b16 %v1606, %v1605
      %v1648 = vpack.c.b16 %v1608, %v1607
      %v1649 = vpack.c.b16 %v1610, %v1609
      %v1650 = vpack.c.b16 %v1612, %v1611
      %v1651 = vpack.c.b16 %v1614, %v1613
      %v1652 = vpack.c.b16 %v1616, %v1615
      %v1653 = vpack.c.b16 %v1618, %v1617
      %v1654 = vpack.c.b16 %v1620, %v1619
      %v1655 = vpack.c.b16 %v1622, %v1621
      %v1656 = vpack.c.b16 %v1624, %v1623
      %v1657 = vpack.c.b16 %v1626, %v1625
      %v1658 = vpack.c.b16 %v1628, %v1627
      %v1659 = vpack.c.b16 %v1630, %v1629
      %v1660 = vpack.c.b16 %v1632, %v1631
      %v1661 = vpack.c.b16 %v1634, %v1633
      %v1662 = vpack.c.b16 %v1636, %v1635
      %v1663 = vpack.c.b16 %v1638, %v1637
      %v1664 = vpack.c.b16 %v1640, %v1639
      %1689 = vmatprep.subr.bf16.mxu0 0
      %1690 = vmatpush1.bf16.msra.mxu0 %v1641
      %1691 = vmatprep.subr.bf16.mxu0 0
      %1692 = vmatpush1.bf16.msra.mxu0 %v1642
      %1693 = vmatprep.subr.bf16.mxu0 0
      %1694 = vmatpush1.bf16.msra.mxu0 %v1643
      %1695 = vmatprep.subr.bf16.mxu0 0
      %1696 = vmatpush1.bf16.msra.mxu0 %v1644
      %1697 = vmatprep.subr.bf16.mxu0 0
      %1698 = vmatpush1.bf16.msra.mxu0 %v1645
      %1699 = vmatprep.subr.bf16.mxu0 0
      %1700 = vmatpush1.bf16.msra.mxu0 %v1646
      %1701 = vmatprep.subr.bf16.mxu0 0
      %1702 = vmatpush1.bf16.msra.mxu0 %v1647
      %1703 = vmatprep.subr.bf16.mxu0 0
      %1704 = vmatpush1.bf16.msra.mxu0 %v1648
      %1705 = vmatprep.subr.bf16.mxu0 0
      %1706 = vmatpush1.bf16.msra.mxu0 %v1649
      %1707 = vmatprep.subr.bf16.mxu0 0
      %1708 = vmatpush1.bf16.msra.mxu0 %v1650
      %1709 = vmatprep.subr.bf16.mxu0 0
      %1710 = vmatpush1.bf16.msra.mxu0 %v1651
      %1711 = vmatprep.subr.bf16.mxu0 0
      %1712 = vmatpush1.bf16.msra.mxu0 %v1652
      %1713 = vmatprep.subr.bf16.mxu0 0
      %1714 = vmatpush1.bf16.msra.mxu0 %v1653
      %1715 = vmatprep.subr.bf16.mxu0 0
      %1716 = vmatpush1.bf16.msra.mxu0 %v1654
      %1717 = vmatprep.subr.bf16.mxu0 0
      %1718 = vmatpush1.bf16.msra.mxu0 %v1655
      %1719 = vmatprep.subr.bf16.mxu0 0
      %1720 = vmatpush1.bf16.msra.mxu0 %v1656
      %1721 = vmatprep.mubr.bf16.mxu0 %v532
      %1722 = vmatmul.mubr.bf16.gmra.mrb[0].mxu0 %v672
      %v1723 = vpop.f32.mrb[0].mxu0
      %v1724 = vadd.f32 0.0, %v1723
      %v1725 = vpop.f32.mrb[0].mxu0
      %v1726 = vpop.f32.mrb[0].mxu0
      %v1727 = vadd.f32 0.0, %v1726
      %v1728 = vpop.f32.mrb[0].mxu0
      %1729 = vmatprep.mubr.bf16.mxu0 %v533
      %1730 = vmatmul.mubr.bf16.gmra.mrb[0].mxu0 %v673
      %v1731 = vpop.f32.mrb[0].mxu0
      %v1732 = vadd.f32 0.0, %v1731
      %v1733 = vpop.f32.mrb[0].mxu0
      %v1734 = vpop.f32.mrb[0].mxu0
      %v1735 = vadd.f32 0.0, %v1734
      %v1736 = vpop.f32.mrb[0].mxu0
      %1737 = vmatprep.mubr.bf16.mxu0 %v534
      %1738 = vmatmul.mubr.bf16.gmra.mrb[0].mxu0 %v674
      %v1739 = vpop.f32.mrb[0].mxu0
      %v1740 = vadd.f32 0.0, %v1739
      %v1741 = vpop.f32.mrb[0].mxu0
      %v1742 = vpop.f32.mrb[0].mxu0
      %v1743 = vadd.f32 0.0, %v1742
      %v1744 = vpop.f32.mrb[0].mxu0
      %1745 = vmatprep.mubr.bf16.mxu0 %v535
      %1746 = vmatmul.mubr.bf16.gmra.mrb[0].mxu0 %v675
      %v1747 = vpop.f32.mrb[0].mxu0
      %v1748 = vadd.f32 0.0, %v1747
      %v1749 = vpop.f32.mrb[0].mxu0
      %v1750 = vpop.f32.mrb[0].mxu0
      %v1751 = vadd.f32 0.0, %v1750
      %v1752 = vpop.f32.mrb[0].mxu0
      %1753 = vmatprep.mubr.bf16.mxu0 %v536
      %1754 = vmatmul.mubr.bf16.gmra.mrb[0].mxu0 %v676
      %v1755 = vpop.f32.mrb[0].mxu0
      %v1756 = vadd.f32 0.0, %v1755
      %v1757 = vpop.f32.mrb[0].mxu0
      %v1758 = vpop.f32.mrb[0].mxu0
      %v1759 = vadd.f32 0.0, %v1758
      %v1760 = vpop.f32.mrb[0].mxu0
      %1761 = vmatprep.mubr.bf16.mxu0 %v537
      %1762 = vmatmul.mubr.bf16.gmra.mrb[0].mxu0 %v677
      %v1763 = vpop.f32.mrb[0].mxu0
      %v1764 = vadd.f32 0.0, %v1763
      %v1765 = vpop.f32.mrb[0].mxu0
      %v1766 = vpop.f32.mrb[0].mxu0
      %v1767 = vadd.f32 0.0, %v1766
      %v1768 = vpop.f32.mrb[0].mxu0
      %1769 = vmatprep.mubr.bf16.mxu0 %v538
      %1770 = vmatmul.mubr.bf16.gmra.mrb[0].mxu0 %v678
      %v1771 = vpop.f32.mrb[0].mxu0
      %v1772 = vadd.f32 0.0, %v1771
      %v1773 = vpop.f32.mrb[0].mxu0
      %v1774 = vpop.f32.mrb[0].mxu0
      %v1775 = vadd.f32 0.0, %v1774
      %v1776 = vpop.f32.mrb[0].mxu0
      %1777 = vmatprep.mubr.bf16.mxu0 %v586
      %1778 = vmatmul.mubr.bf16.gmra.mrb[0].mxu0 %v679
      %v1779 = vpop.f32.mrb[0].mxu0
      %v1780 = vadd.f32 0.0, %v1779
      %v1781 = vpop.f32.mrb[0].mxu0
      %v1782 = vpop.f32.mrb[0].mxu0
      %v1783 = vadd.f32 0.0, %v1782
      %v1784 = vpop.f32.mrb[0].mxu0
      %1785 = vdwg.mxu0
      %1786 = vmatprep.subr.bf16.mxu0 0
      %1787 = vmatpush1.bf16.msra.mxu0 %v1657
      %1788 = vmatprep.subr.bf16.mxu0 0
      %1789 = vmatpush1.bf16.msra.mxu0 %v1658
      %1790 = vmatprep.subr.bf16.mxu0 0
      %1791 = vmatpush1.bf16.msra.mxu0 %v1659
      %1792 = vmatprep.subr.bf16.mxu0 0
      %1793 = vmatpush1.bf16.msra.mxu0 %v1660
      %1794 = vmatprep.subr.bf16.mxu0 0
      %1795 = vmatpush1.bf16.msra.mxu0 %v1661
      %1796 = vmatprep.subr.bf16.mxu0 0
      %1797 = vmatpush1.bf16.msra.mxu0 %v1662
      %1798 = vmatprep.subr.bf16.mxu0 0
      %1799 = vmatpush1.bf16.msra.mxu0 %v1663
      %1800 = vmatprep.subr.bf16.mxu0 0
      %1801 = vmatpush1.bf16.msra.mxu0 %v1664
      %1802 = vmatprep.subr.bf16.mxu0 0
      %1803 = vmatpush1.bf16.msra.mxu0 0
      %1804 = vmatprep.subr.bf16.mxu0 0
      %1805 = vmatpush1.bf16.msra.mxu0 0
      %1806 = vmatprep.subr.bf16.mxu0 0
      %1807 = vmatpush1.bf16.msra.mxu0 0
      %1808 = vmatprep.subr.bf16.mxu0 0
      %1809 = vmatpush1.bf16.msra.mxu0 0
      %1810 = vmatprep.subr.bf16.mxu0 0
      %1811 = vmatpush1.bf16.msra.mxu0 0
      %1812 = vmatprep.subr.bf16.mxu0 0
      %1813 = vmatpush1.bf16.msra.mxu0 0
      %1814 = vmatprep.subr.bf16.mxu0 0
      %1815 = vmatpush1.bf16.msra.mxu0 0
      %1816 = vmatprep.subr.bf16.mxu0 0
      %1817 = vmatpush1.bf16.msra.mxu0 0
      %1818 = vmatprep.mubr.bf16.mxu0 0
      %1819 = vmatmul.mubr.bf16.gmra.mrb[0].mxu0 %v715
      %v1820 = vpop.f32.mrb[0].mxu0
      %v1821 = vadd.f32 %v1724, %v1820
      %v1822 = vpop.f32.mrb[0].mxu0
      %v1823 = vpop.f32.mrb[0].mxu0
      %v1824 = vadd.f32 %v1727, %v1823
      %v1825 = vpop.f32.mrb[0].mxu0
      %1826 = vmatprep.mubr.bf16.mxu0 0
      %1827 = vmatmul.mubr.bf16.gmra.mrb[0].mxu0 %v716
      %v1828 = vpop.f32.mrb[0].mxu0
      %v1829 = vadd.f32 %v1732, %v1828
      %v1830 = vpop.f32.mrb[0].mxu0
      %v1831 = vpop.f32.mrb[0].mxu0
      %v1832 = vadd.f32 %v1735, %v1831
      %v1833 = vpop.f32.mrb[0].mxu0
      %1834 = vmatprep.mubr.bf16.mxu0 0
      %1835 = vmatmul.mubr.bf16.gmra.mrb[0].mxu0 %v717
      %v1836 = vpop.f32.mrb[0].mxu0
      %v1837 = vadd.f32 %v1740, %v1836
      %v1838 = vpop.f32.mrb[0].mxu0
      %v1839 = vpop.f32.mrb[0].mxu0
      %v1840 = vadd.f32 %v1743, %v1839
      %v1841 = vpop.f32.mrb[0].mxu0
      %1842 = vmatprep.mubr.bf16.mxu0 0
      %1843 = vmatmul.mubr.bf16.gmra.mrb[0].mxu0 %v718
      %v1844 = vpop.f32.mrb[0].mxu0
      %v1845 = vadd.f32 %v1748, %v1844
      %v1846 = vpop.f32.mrb[0].mxu0
      %v1847 = vpop.f32.mrb[0].mxu0
      %v1848 = vadd.f32 %v1751, %v1847
      %v1849 = vpop.f32.mrb[0].mxu0
      %1850 = vmatprep.mubr.bf16.mxu0 0
      %1851 = vmatmul.mubr.bf16.gmra.mrb[0].mxu0 %v719
      %v1852 = vpop.f32.mrb[0].mxu0
      %v1853 = vadd.f32 %v1756, %v1852
      %v1854 = vpop.f32.mrb[0].mxu0
      %v1855 = vpop.f32.mrb[0].mxu0
      %v1856 = vadd.f32 %v1759, %v1855
      %v1857 = vpop.f32.mrb[0].mxu0
      %1858 = vmatprep.mubr.bf16.mxu0 0
      %1859 = vmatmul.mubr.bf16.gmra.mrb[0].mxu0 %v720
      %v1860 = vpop.f32.mrb[0].mxu0
      %v1861 = vadd.f32 %v1764, %v1860
      %v1862 = vpop.f32.mrb[0].mxu0
      %v1863 = vpop.f32.mrb[0].mxu0
      %v1864 = vadd.f32 %v1767, %v1863
      %v1865 = vpop.f32.mrb[0].mxu0
      %1866 = vmatprep.mubr.bf16.mxu0 0
      %1867 = vmatmul.mubr.bf16.gmra.mrb[0].mxu0 %v721
      %v1868 = vpop.f32.mrb[0].mxu0
      %v1869 = vadd.f32 %v1772, %v1868
      %v1870 = vpop.f32.mrb[0].mxu0
      %v1871 = vpop.f32.mrb[0].mxu0
      %v1872 = vadd.f32 %v1775, %v1871
      %v1873 = vpop.f32.mrb[0].mxu0
      %1874 = vmatprep.mubr.bf16.mxu0 0
      %1875 = vmatmul.mubr.bf16.gmra.mrb[0].mxu0 %v722
      %v1876 = vpop.f32.mrb[0].mxu0
      %v1877 = vadd.f32 %v1780, %v1876
      %v1878 = vpop.f32.mrb[0].mxu0
      %v1879 = vpop.f32.mrb[0].mxu0
      %v1880 = vadd.f32 %v1783, %v1879
      %v1881 = vpop.f32.mrb[0].mxu0
      %1882 = vdwg.mxu0
      %v1883 = vadd.f32 %v1434, %v1821
      %v1884 = vadd.f32 %v1437, %v1824
      %v1885 = vadd.f32 %v1442, %v1829
      %v1886 = vadd.f32 %v1445, %v1832
      %v1887 = vadd.f32 %v1450, %v1837
      %v1888 = vadd.f32 %v1453, %v1840
      %v1889 = vadd.f32 %v1458, %v1845
      %v1890 = vadd.f32 %v1461, %v1848
      %v1891 = vadd.f32 %v1466, %v1853
      %v1892 = vadd.f32 %v1469, %v1856
      %v1893 = vadd.f32 %v1474, %v1861
      %v1894 = vadd.f32 %v1477, %v1864
      %v1895 = vadd.f32 %v1482, %v1869
      %v1896 = vadd.f32 %v1485, %v1872
      %v1897 = vadd.f32 %v1490, %v1877
      %v1898 = vadd.f32 %v1493, %v1880
      %v1899 = vld [vmem:[%s5] sm:$0x1]
      %v1901 = vlaneseq
      %v1902 = vshrl.u32 %v1901, 7
      %v1903 = vsub.s32 0, %v1902
      %v1904 = vrot.slane %v1899, %v1903
      %v1906 = vadd.f32 %v1883, %v1904
      %v1907 = vadd.f32 %v1884, %v1904
      %v1908 = vadd.f32 %v1885, %v1904
      %v1909 = vadd.f32 %v1886, %v1904
      %v1910 = vadd.f32 %v1887, %v1904
      %v1911 = vadd.f32 %v1888, %v1904
      %v1912 = vadd.f32 %v1889, %v1904
      %v1913 = vadd.f32 %v1890, %v1904
      %v1914 = vadd.f32 %v1891, %v1904
      %v1915 = vadd.f32 %v1892, %v1904
      %v1916 = vadd.f32 %v1893, %v1904
      %v1917 = vadd.f32 %v1894, %v1904
      %v1918 = vadd.f32 %v1895, %v1904
      %v1919 = vadd.f32 %v1896, %v1904
      %v1920 = vadd.f32 %v1897, %v1904
      %v1921 = vadd.f32 %v1898, %v1904
      %v1922 = vadd.f32 %v1906, %v1907
      %v1923 = vadd.f32 %v1922, %v1908
      %v1924 = vadd.f32 %v1923, %v1909
      %v1925 = vadd.f32 %v1924, %v1910
      %v1926 = vadd.f32 %v1925, %v1911
      %v1927 = vadd.f32 %v1926, %v1912
      %v1928 = vadd.f32 %v1927, %v1913
      %v1929 = vadd.f32 %v1928, %v1914
      %v1930 = vadd.f32 %v1929, %v1915
      %v1931 = vadd.f32 %v1930, %v1916
      %v1932 = vadd.f32 %v1931, %v1917
      %v1933 = vadd.f32 %v1932, %v1918
      %v1934 = vadd.f32 %v1933, %v1919
      %v1935 = vadd.f32 %v1934, %v1920
      %v1936 = vadd.f32 %v1935, %v1921
      %v1937 = vrot.slane %v1936, 4
      %v1938 = vadd.f32 %v1936, %v1937
      %v1939 = vrot.slane %v1938, 2
      %v1940 = vadd.f32 %v1938, %v1939
      %v1941 = vrot.slane %v1940, 1
      %v1942 = vadd.f32 %v1940, %v1941
      %v1943 = vmul.f32 %v1906, %v1906
      %v1944 = vmul.f32 %v1907, %v1907
      %v1945 = vmul.f32 %v1908, %v1908
      %v1946 = vmul.f32 %v1909, %v1909
      %v1947 = vmul.f32 %v1910, %v1910
      %v1948 = vmul.f32 %v1911, %v1911
      %v1949 = vmul.f32 %v1912, %v1912
      %v1950 = vmul.f32 %v1913, %v1913
      %v1951 = vmul.f32 %v1914, %v1914
      %v1952 = vmul.f32 %v1915, %v1915
      %v1953 = vmul.f32 %v1916, %v1916
      %v1954 = vmul.f32 %v1917, %v1917
      %v1955 = vmul.f32 %v1918, %v1918
      %v1956 = vmul.f32 %v1919, %v1919
      %v1957 = vmul.f32 %v1920, %v1920
      %v1958 = vmul.f32 %v1921, %v1921
      %v1959 = vadd.f32 %v1943, %v1944
      %v1960 = vadd.f32 %v1959, %v1945
      %v1961 = vadd.f32 %v1960, %v1946
      %v1962 = vadd.f32 %v1961, %v1947
      %v1963 = vadd.f32 %v1962, %v1948
      %v1964 = vadd.f32 %v1963, %v1949
      %v1965 = vadd.f32 %v1964, %v1950
      %v1966 = vadd.f32 %v1965, %v1951
      %v1967 = vadd.f32 %v1966, %v1952
      %v1968 = vadd.f32 %v1967, %v1953
      %v1969 = vadd.f32 %v1968, %v1954
      %v1970 = vadd.f32 %v1969, %v1955
      %v1971 = vadd.f32 %v1970, %v1956
      %v1972 = vadd.f32 %v1971, %v1957
      %v1973 = vadd.f32 %v1972, %v1958
      %v1974 = vrot.slane %v1973, 4
      %v1975 = vadd.f32 %v1973, %v1974
      %v1976 = vrot.slane %v1975, 2
      %v1977 = vadd.f32 %v1975, %v1976
      %v1978 = vrot.slane %v1977, 1
      %v1979 = vadd.f32 %v1977, %v1978
      %vm1980 = vcmask 1040384
      %v1981 = vsel %vm1980, %v1942, %v1979
      %1982 = vst [vmem:[%s317] sm:$0x3] %v1981
      %v1983 = vpack.c.bf16 %v1907, %v1906
      %v1984 = vpack.c.bf16 %v1909, %v1908
      %v1985 = vpack.c.bf16 %v1911, %v1910
      %v1986 = vpack.c.bf16 %v1913, %v1912
      %v1987 = vpack.c.bf16 %v1915, %v1914
      %v1988 = vpack.c.bf16 %v1917, %v1916
      %v1989 = vpack.c.bf16 %v1919, %v1918
      %v1990 = vpack.c.bf16 %v1921, %v1920
      %v1999 = vunpack.c.l.b16 %v1983
      %v2000 = vunpack.c.h.b16 %v1983
      %v2001 = vunpack.c.l.b16 %v1984
      %v2002 = vunpack.c.h.b16 %v1984
      %v2003 = vunpack.c.l.b16 %v1985
      %v2004 = vunpack.c.h.b16 %v1985
      %v2005 = vunpack.c.l.b16 %v1986
      %v2006 = vunpack.c.h.b16 %v1986
      %v2007 = vunpack.c.l.b16 %v1987
      %v2008 = vunpack.c.h.b16 %v1987
      %v2009 = vunpack.c.l.b16 %v1988
      %v2010 = vunpack.c.h.b16 %v1988
      %v2011 = vunpack.c.l.b16 %v1989
      %v2012 = vunpack.c.h.b16 %v1989
      %v2013 = vunpack.c.l.b16 %v1990
      %v2014 = vunpack.c.h.b16 %v1990
      %v2015 = vpack.c.b16 %v1999, %v1999
      %v2016 = vpack.c.b16 %v2000, %v2000
      %v2017 = vpack.c.b16 %v2001, %v2001
      %v2018 = vpack.c.b16 %v2002, %v2002
      %v2019 = vpack.c.b16 %v2003, %v2003
      %v2020 = vpack.c.b16 %v2004, %v2004
      %v2021 = vpack.c.b16 %v2005, %v2005
      %v2022 = vpack.c.b16 %v2006, %v2006
      %v2023 = vpack.c.b16 %v2007, %v2007
      %v2024 = vpack.c.b16 %v2008, %v2008
      %v2025 = vpack.c.b16 %v2009, %v2009
      %v2026 = vpack.c.b16 %v2010, %v2010
      %v2027 = vpack.c.b16 %v2011, %v2011
      %v2028 = vpack.c.b16 %v2012, %v2012
      %v2029 = vpack.c.b16 %v2013, %v2013
      %v2030 = vpack.c.b16 %v2014, %v2014
      %2047 = vst [vmem:[%s308] sm:$0xf] %v2015
      %2048 = vst [vmem:[%s308 + $0x4] sm:$0xf] %v2016
      %2049 = vst [vmem:[%s308 + $0x8] sm:$0xf] %v2017
      %2050 = vst [vmem:[%s308 + $0xc] sm:$0xf] %v2018
      %2051 = vst [vmem:[%s308 + $0x10] sm:$0xf] %v2019
      %2052 = vst [vmem:[%s308 + $0x14] sm:$0xf] %v2020
      %2053 = vst [vmem:[%s308 + $0x18] sm:$0xf] %v2021
      %2054 = vst [vmem:[%s308 + $0x1c] sm:$0xf] %v2022
      %2055 = vst [vmem:[%s308 + $0x20] sm:$0xf] %v2023
      %2056 = vst [vmem:[%s308 + $0x24] sm:$0xf] %v2024
      %2057 = vst [vmem:[%s308 + $0x28] sm:$0xf] %v2025
      %2058 = vst [vmem:[%s308 + $0x2c] sm:$0xf] %v2026
      %2059 = vst [vmem:[%s308 + $0x30] sm:$0xf] %v2027
      %2060 = vst [vmem:[%s308 + $0x34] sm:$0xf] %v2028
      %2061 = vst [vmem:[%s308 + $0x38] sm:$0xf] %v2029
      %2062 = vst [vmem:[%s308 + $0x3c] sm:$0xf] %v2030
      %s2063 = smul.u32 8, %s24
      %p2064 = scmp.lt.s32.totalorder %s23, 1
      %s2065 = scalar_select %p2064, %s23, 1
      %p2066 = scmp.lt.s32.totalorder %s2063, 15
      %s2067 = scalar_select %p2066, %s2063, 15
      %s2068 = smul.addr %s2067, 2
      %s2069 = smul.addr %s2065, 32
      %s2070 = sadd.s32 %s2068, %s2069
      %s2071 = smul.addr %s2070, 4
      %s2072 = scalar_lea.vmem %s6, %s2071
      %p2073 = scmp.lt.s32.totalorder %s23, 1
      %s2074 = scalar_select %p2073, %s23, 1
      %p2075 = scmp.lt.s32.totalorder %s24, 1
      %s2076 = scalar_select %p2075, %s24, 1
      %s2077 = smul.addr %s2074, 2
      %s2078 = sadd.s32 %s2076, %s2077
      %s2079 = smul.addr %s2078, 2
      %s2080 = scalar_lea.vmem %s7, %s2079
      // Predicated region
      $region133: #{unet_block_forward.4} parent=39 // pred_check
        %p2081 = pneg %p163
      $region134: #{unet_block_forward.4} parent=39 // pred_check_branch
        %2083 = sbr.rel (%p2081) target = $region136
      $region135: #{unet_block_forward.4} parent=39 // pred_region
        %s2084 = smul.u32 8, %s24
      $region136: #{unet_block_forward.4} parent=39 // pred_fallthru
        _
      // Predicated region
      $region137: #{unet_block_forward.4} parent=39 // pred_check
        %p2085 = pneg %p191
      $region138: #{unet_block_forward.4} parent=39 // pred_check_branch
        %2087 = sbr.rel (%p2085) target = $region140
      $region139: #{unet_block_forward.4} parent=39 // pred_region
        _
      $region140: #{unet_block_forward.4} parent=39 // pred_fallthru
        _
    $region40: #{unet_block_forward.4} parent=5 // pred_fallthru
      _
    %p2088 = scmp.le.s32.totalorder 2, %s14
    // Predicated region
    $region141: #{unet_block_forward.4} parent=5 // pred_check
      %p2089 = pneg %p2088
    $region142: #{unet_block_forward.4} parent=5 // pred_check_branch
      %2091 = sbr.rel (%p2089) target = $region144
    $region143: #{unet_block_forward.4} parent=5 // pred_region
      %s2092 = ssub.s32 %s14, 2
      // Predicated region
      $region145: #{unet_block_forward.4} parent=143 // pred_check
        %p2093 = pneg %p169
      $region146: #{unet_block_forward.4} parent=143 // pred_check_branch
        %2095 = sbr.rel (%p2093) target = $region148
      $region147: #{unet_block_forward.4} parent=143 // pred_region
        %s2096 = smul.u32 8, %s26
        %p2097 = scmp.lt.s32.totalorder %s25, 1
        %s2098 = scalar_select %p2097, %s25, 1
        %p2099 = scmp.lt.s32.totalorder %s2096, 15
        %s2100 = scalar_select %p2099, %s2096, 15
        %s2101 = smul.addr %s2100, 2
        %s2102 = smul.addr %s2098, 32
        %s2103 = sadd.s32 %s2101, %s2102
        %s2104 = smul.addr %s2103, 4
        %s2105 = scalar_lea.vmem %s6, %s2104
      $region148: #{unet_block_forward.4} parent=143 // pred_fallthru
        _
      // Predicated region
      $region149: #{unet_block_forward.4} parent=143 // pred_check
        %p2106 = pneg %p197
      $region150: #{unet_block_forward.4} parent=143 // pred_check_branch
        %2108 = sbr.rel (%p2106) target = $region152
      $region151: #{unet_block_forward.4} parent=143 // pred_region
        %p2109 = scmp.lt.s32.totalorder %s25, 1
        %s2110 = scalar_select %p2109, %s25, 1
        %p2111 = scmp.lt.s32.totalorder %s26, 1
        %s2112 = scalar_select %p2111, %s26, 1
        %s2113 = smul.addr %s2110, 2
        %s2114 = sadd.s32 %s2112, %s2113
        %s2115 = smul.addr %s2114, 2
        %s2116 = scalar_lea.vmem %s7, %s2115
      $region152: #{unet_block_forward.4} parent=143 // pred_fallthru
        _
    $region144: #{unet_block_forward.4} parent=5 // pred_fallthru
      _
  $region6: #{unet_block_forward.4} parent=0 // loop_footer
    %s18 = sadd.s32 1, %s14
  $region7: #{unet_block_forward.4} parent=0 // loop_footer_branch
    %13 = sbr.rel target = $region3
  $region8: #{unet_block_forward.4} parent=0 // loop_exit
    _
  %2117 = vsyncmov [#allocation3]
  %s2118 = vpop.sfrf %2117
  %p2119 = scmp.eq.s32.totalorder %s2118, 0
  %p2120 = pneg %p2119
  %2122 = shalt.err (%p2120)
  %s2123 = scalar_lea.sflag [#allocation3], 1
  %2124 = vsyncmov %s2123
  %s2125 = vpop.sfrf %2124
  %p2126 = scmp.eq.s32.totalorder %s2125, 0
  %p2127 = pneg %p2126
  %2129 = shalt.err (%p2127)

</llo_original>
